<compile_context>
chip_gen: v6e
topology: v6e:2x2x1
jax: 0.10.0
libtpu: 0.0.40
codegen_flags: <defaults>
</compile_context>

<pallas_src>
import functools

import jax
import jax.numpy as jnp
from jax.experimental import pallas as pl
from jax.experimental.pallas import tpu as pltpu


def _fused_conv_conv_kernel(x_ref, w1_ref, b1_ref, w2_ref, b2_ref, o_ref,
                            h1_ref, *, kh, kw, img_w):
    """One block of images per grid step, channel-major, full-map formulation.

    x_ref : (1, 1, width + pad)    flattened pixels of the block (+ zero tail pad)
    w1_ref: (c_mid, kh*kw)         conv1 weight, tap-minor
    b1_ref: (c_mid, 1)
    w2_ref: (kh*kw, c_out, c_mid)  conv2 weight, one (c_out, c_mid) matrix per tap
    b2_ref: (c_out, 1)
    o_ref : (1, c_out, width)      full-map conv2 output (valid cols cropped by wrapper)
    h1_ref: (c_mid, width + pad)   VMEM scratch holding the conv1 map
    """
    c_mid = w1_ref.shape[0]
    c_out = w2_ref.shape[1]
    width = o_ref.shape[2]
    pad = h1_ref.shape[1] - width

    xv = x_ref[0]                                        # (1, width + pad)

    # ---- conv1 (cin == 1): 25-tap scalar-broadcast MAC on the VPU ----------
    # acc1[c, j] = b1[c] + sum_t w1[c, t] * x[j + off_t]; no im2col tensor.
    acc1 = jnp.broadcast_to(b1_ref[...], (c_mid, width))
    for ky in range(kh):
        for kx in range(kw):
            t = ky * kw + kx
            off = ky * img_w + kx
            xs = xv[:, off:off + width]                  # (1, width) shifted pixels
            acc1 = acc1 + w1_ref[:, t:t + 1] * xs        # (c_mid,1)*(1,width)
    h1_ref[:, :width] = acc1                             # conv1 map stays in VMEM
    h1_ref[:, width:] = jnp.zeros((c_mid, pad), jnp.float32)

    # ---- conv2: 25 accumulating (c_out,c_mid)x(c_mid,width) MXU matmuls ----
    # The per-tap RHS is just a lane-shifted slice of the resident conv1 map;
    # no concatenate / patch materialization, per-step VMEM is flat in blk.
    acc2 = jnp.broadcast_to(b2_ref[...], (c_out, width))
    for ky in range(kh):
        for kx in range(kw):
            t = ky * kw + kx
            off = ky * img_w + kx
            slab = h1_ref[:, off:off + width]            # (c_mid, width)
            acc2 = acc2 + jnp.dot(w2_ref[t], slab,
                                  preferred_element_type=jnp.float32)
    o_ref[0] = acc2.astype(o_ref.dtype)


def _pick_block(n, target=32):
    """Images per grid step: large enough to amortize per-step overhead, but keep
    >= 2 grid steps when n >= 2 so both v7x TensorCores get work."""
    if n <= 1:
        return 1
    b = max(1, min(target, n // 2))
    while n % b:
        b -= 1
    return b


def fused_two_conv(x_nchw, w1m, b1c, w2t, b2c, *, kh, kw, block_target=32):
    """Valid, stride-1 Conv2d(1,Cmid,k) -> Conv2d(Cmid,Cout,k), fused in one kernel."""
    n, c_in, h, w = x_nchw.shape
    assert c_in == 1, "first conv expects a single input channel"
    c_mid = w1m.shape[0]
    c_out = w2t.shape[1]
    h2o, w2o = h - 2 * (kh - 1), w - 2 * (kw - 1)

    blk = _pick_block(n, block_target)
    n_blocks = n // blk
    width = blk * h * w                                  # lane-dense working width
    max_off = (kh - 1) * w + (kw - 1)
    pad = pl.cdiv(max_off, 128) * 128                    # lane-tile aligned tail pad

    # Flatten each block's images onto the lane axis; zero-pad the tail so the
    # in-kernel shifted slices never run out of bounds (wrapped / padded columns
    # only ever feed output positions that the final crop discards).
    xf = x_nchw.reshape(n_blocks, 1, width)
    xf = jnp.pad(xf, ((0, 0), (0, 0), (0, pad)))

    kernel = functools.partial(_fused_conv_conv_kernel, kh=kh, kw=kw, img_w=w)
    out = pl.pallas_call(
        kernel,
        out_shape=jax.ShapeDtypeStruct((n_blocks, c_out, width), x_nchw.dtype),
        grid_spec=pltpu.PrefetchScalarGridSpec(
            num_scalar_prefetch=0,
            grid=(n_blocks,),                            # >= 2 steps when n >= 2
            in_specs=[
                pl.BlockSpec((1, 1, width + pad), lambda i: (i, 0, 0)),
                pl.BlockSpec((c_mid, kh * kw), lambda i: (0, 0)),
                pl.BlockSpec((c_mid, 1), lambda i: (0, 0)),
                pl.BlockSpec((kh * kw, c_out, c_mid), lambda i: (0, 0, 0)),
                pl.BlockSpec((c_out, 1), lambda i: (0, 0)),
            ],
            out_specs=pl.BlockSpec((1, c_out, width), lambda i: (i, 0, 0)),
            scratch_shapes=[pltpu.VMEM((c_mid, width + pad), jnp.float32)],
        ),
        compiler_params=pltpu.CompilerParams(
            dimension_semantics=("parallel",)),
    )(xf, w1m, b1c, w2t, b2c)

    # (n_blocks, c_out, blk*H*W) -> (N, c_out, H, W), then crop the valid region.
    out = out.reshape(n_blocks, c_out, blk, h, w)
    out = out.transpose(0, 2, 1, 3, 4).reshape(n, c_out, h, w)
    return out[:, :, :h2o, :w2o]


class MyModulePallas:
    """JAX/Pallas port of the PyTorch myModule: Conv2d(1,20,5) -> Conv2d(20,20,5)."""

    K = 5  # kernel size of both convs

    def __init__(self, key):
        k1, k2, k3, k4 = jax.random.split(key, 4)
        fan1 = 1 * self.K * self.K
        fan2 = 20 * self.K * self.K
        # PyTorch layout is OIHW; deterministic init, then repack channel-major
        # for the kernel: w1 -> (c_mid, 25), w2 -> (25, c_out, c_mid).
        w1_oihw = jax.random.uniform(k1, (20, 1, 5, 5), jnp.float32,
                                     -1.0, 1.0) / jnp.sqrt(fan1)
        b1 = jax.random.uniform(k2, (20,), jnp.float32, -1.0, 1.0) / jnp.sqrt(fan1)
        w2_oihw = jax.random.uniform(k3, (20, 20, 5, 5), jnp.float32,
                                     -1.0, 1.0) / jnp.sqrt(fan2)
        b2 = jax.random.uniform(k4, (20,), jnp.float32, -1.0, 1.0) / jnp.sqrt(fan2)
        self.w1_oihw, self.w2_oihw = w1_oihw, w2_oihw   # kept for reference check
        self.b1, self.b2 = b1, b2
        self.w1m = w1_oihw.reshape(20, self.K * self.K)                      # (c_mid, 25)
        self.b1c = b1.reshape(20, 1)
        self.w2t = jnp.transpose(w2_oihw, (2, 3, 0, 1)).reshape(
            self.K * self.K, 20, 20)                                         # (25, c_out, c_mid)
        self.b2c = b2.reshape(20, 1)

        k = self.K

        @jax.jit
        def _forward(x_nchw, w1m, b1c, w2t, b2c):
            return fused_two_conv(x_nchw, w1m, b1c, w2t, b2c, kh=k, kw=k)

        self._forward = _forward

    def __call__(self, x_nchw):
        n, _, h, w = x_nchw.shape
        h1o, w1o = h - self.K + 1, w - self.K + 1
        h2o, w2o = h1o - self.K + 1, w1o - self.K + 1
        # Shapes are static; print them without dispatching any extra ops.
        print(f"[1]\t origin forward conv2 input.shape={(n, 20, h1o, w1o)}")
        y = self._forward(x_nchw, self.w1m, self.b1c, self.w2t, self.b2c)
        print(f"[2]\t origin forward conv2 output.shape={(n, 20, h2o, w2o)}")
        return y


if __name__ == "__main__":
    key = jax.random.PRNGKey(0)
    kp, kx = jax.random.split(key)
    model = MyModulePallas(kp)

    # Conv2d(1, 20, 5) expects 1 input channel; 16x16 spatial -> 12x12 -> 8x8.
    x = jax.random.normal(kx, (2, 1, 16, 16), jnp.float32)

    out = model(x)
    jax.block_until_ready(out)

    # Sanity check against the XLA reference convolution.
    def ref_forward(x_nchw, m):
        y = jax.lax.conv_general_dilated(x_nchw, m.w1_oihw, (1, 1), "VALID",
                                         dimension_numbers=("NCHW", "OIHW", "NCHW"))
        y = y + m.b1.reshape(1, -1, 1, 1)
        y = jax.lax.conv_general_dilated(y, m.w2_oihw, (1, 1), "VALID",
                                         dimension_numbers=("NCHW", "OIHW", "NCHW"))
        y = y + m.b2.reshape(1, -1, 1, 1)
        return y

    ref = ref_forward(x, model)
    assert out.shape == (2, 20, 8, 8), out.shape
    assert jnp.allclose(out, ref, atol=1e-4, rtol=1e-4)
    print("KERNEL_OK")
</pallas_src>

<mosaic_0001>
module attributes {stable_mosaic.version = 11 : i64} {
  func.func @_fused_conv_conv_kernel(%arg0: i32, %arg1: memref<1x1x384xf32, #tpu.memory_space<vmem>>, %arg2: memref<20x25xf32, #tpu.memory_space<vmem>>, %arg3: memref<20x1xf32, #tpu.memory_space<vmem>>, %arg4: memref<25x20x20xf32, #tpu.memory_space<vmem>>, %arg5: memref<20x1xf32, #tpu.memory_space<vmem>>, %arg6: memref<1x20x256xf32, #tpu.memory_space<vmem>>, %arg7: memref<20x384xf32, #tpu.memory_space<vmem>>) attributes {dimension_semantics = [#tpu.dimension_semantics<parallel>], iteration_bounds = array<i64: 2>, scalar_prefetch = 0 : i64, scratch_operands = 1 : i64, tpu.core_type = #tpu.core_type<tc>, window_params = [{transform_indices = @transform_0, window_bounds = array<i64: 1, 1, 384>}, {pipeline_mode = #tpu.pipeline_mode<synchronous>, transform_indices = @transform_1, window_bounds = array<i64: 20, 25>}, {pipeline_mode = #tpu.pipeline_mode<synchronous>, transform_indices = @transform_2, window_bounds = array<i64: 20, 1>}, {pipeline_mode = #tpu.pipeline_mode<synchronous>, transform_indices = @transform_3, window_bounds = array<i64: 25, 20, 20>}, {pipeline_mode = #tpu.pipeline_mode<synchronous>, transform_indices = @transform_4, window_bounds = array<i64: 20, 1>}, {transform_indices = @transform_5, window_bounds = array<i64: 1, 20, 256>}]} {
    %c0 = arith.constant 0 : index
    %c0_0 = arith.constant 0 : index
    %c0_1 = arith.constant 0 : index
    %0 = vector.load %arg1[%c0, %c0_0, %c0_1] : memref<1x1x384xf32, #tpu.memory_space<vmem>>, vector<1x1x384xf32>
    %1 = vector.shape_cast %0 : vector<1x1x384xf32> to vector<1x384xf32>
    %c0_2 = arith.constant 0 : index
    %c0_3 = arith.constant 0 : index
    %2 = vector.load %arg3[%c0_2, %c0_3] : memref<20x1xf32, #tpu.memory_space<vmem>>, vector<20x1xf32>
    %3 = vector.shape_cast %2 : vector<20x1xf32> to vector<20x1xf32>
    %4 = vector.broadcast %3 : vector<20x1xf32> to vector<20x256xf32>
    %5 = vector.extract_strided_slice %1 {offsets = [0, 0], sizes = [1, 256], strides = [1, 1]} : vector<1x384xf32> to vector<1x256xf32>
    %c0_4 = arith.constant 0 : index
    %c0_5 = arith.constant 0 : index
    %6 = vector.load %arg2[%c0_4, %c0_5] : memref<20x25xf32, #tpu.memory_space<vmem>>, vector<20x1xf32>
    %7 = vector.broadcast %6 : vector<20x1xf32> to vector<20x256xf32>
    %8 = vector.broadcast %5 : vector<1x256xf32> to vector<20x256xf32>
    %9 = arith.mulf %7, %8 : vector<20x256xf32>
    %10 = arith.addf %4, %9 : vector<20x256xf32>
    %11 = vector.extract_strided_slice %1 {offsets = [0, 1], sizes = [1, 256], strides = [1, 1]} : vector<1x384xf32> to vector<1x256xf32>
    %c0_6 = arith.constant 0 : index
    %c1 = arith.constant 1 : index
    %12 = vector.load %arg2[%c0_6, %c1] : memref<20x25xf32, #tpu.memory_space<vmem>>, vector<20x1xf32>
    %13 = vector.broadcast %12 : vector<20x1xf32> to vector<20x256xf32>
    %14 = vector.broadcast %11 : vector<1x256xf32> to vector<20x256xf32>
    %15 = arith.mulf %13, %14 : vector<20x256xf32>
    %16 = arith.addf %10, %15 : vector<20x256xf32>
    %17 = vector.extract_strided_slice %1 {offsets = [0, 2], sizes = [1, 256], strides = [1, 1]} : vector<1x384xf32> to vector<1x256xf32>
    %c0_7 = arith.constant 0 : index
    %c2 = arith.constant 2 : index
    %18 = vector.load %arg2[%c0_7, %c2] : memref<20x25xf32, #tpu.memory_space<vmem>>, vector<20x1xf32>
    %19 = vector.broadcast %18 : vector<20x1xf32> to vector<20x256xf32>
    %20 = vector.broadcast %17 : vector<1x256xf32> to vector<20x256xf32>
    %21 = arith.mulf %19, %20 : vector<20x256xf32>
    %22 = arith.addf %16, %21 : vector<20x256xf32>
    %23 = vector.extract_strided_slice %1 {offsets = [0, 3], sizes = [1, 256], strides = [1, 1]} : vector<1x384xf32> to vector<1x256xf32>
    %c0_8 = arith.constant 0 : index
    %c3 = arith.constant 3 : index
    %24 = vector.load %arg2[%c0_8, %c3] : memref<20x25xf32, #tpu.memory_space<vmem>>, vector<20x1xf32>
    %25 = vector.broadcast %24 : vector<20x1xf32> to vector<20x256xf32>
    %26 = vector.broadcast %23 : vector<1x256xf32> to vector<20x256xf32>
    %27 = arith.mulf %25, %26 : vector<20x256xf32>
    %28 = arith.addf %22, %27 : vector<20x256xf32>
    %29 = vector.extract_strided_slice %1 {offsets = [0, 4], sizes = [1, 256], strides = [1, 1]} : vector<1x384xf32> to vector<1x256xf32>
    %c0_9 = arith.constant 0 : index
    %c4 = arith.constant 4 : index
    %30 = vector.load %arg2[%c0_9, %c4] : memref<20x25xf32, #tpu.memory_space<vmem>>, vector<20x1xf32>
    %31 = vector.broadcast %30 : vector<20x1xf32> to vector<20x256xf32>
    %32 = vector.broadcast %29 : vector<1x256xf32> to vector<20x256xf32>
    %33 = arith.mulf %31, %32 : vector<20x256xf32>
    %34 = arith.addf %28, %33 : vector<20x256xf32>
    %35 = vector.extract_strided_slice %1 {offsets = [0, 16], sizes = [1, 256], strides = [1, 1]} : vector<1x384xf32> to vector<1x256xf32>
    %c0_10 = arith.constant 0 : index
    %c5 = arith.constant 5 : index
    %36 = vector.load %arg2[%c0_10, %c5] : memref<20x25xf32, #tpu.memory_space<vmem>>, vector<20x1xf32>
    %37 = vector.broadcast %36 : vector<20x1xf32> to vector<20x256xf32>
    %38 = vector.broadcast %35 : vector<1x256xf32> to vector<20x256xf32>
    %39 = arith.mulf %37, %38 : vector<20x256xf32>
    %40 = arith.addf %34, %39 : vector<20x256xf32>
    %41 = vector.extract_strided_slice %1 {offsets = [0, 17], sizes = [1, 256], strides = [1, 1]} : vector<1x384xf32> to vector<1x256xf32>
    %c0_11 = arith.constant 0 : index
    %c6 = arith.constant 6 : index
    %42 = vector.load %arg2[%c0_11, %c6] : memref<20x25xf32, #tpu.memory_space<vmem>>, vector<20x1xf32>
    %43 = vector.broadcast %42 : vector<20x1xf32> to vector<20x256xf32>
    %44 = vector.broadcast %41 : vector<1x256xf32> to vector<20x256xf32>
    %45 = arith.mulf %43, %44 : vector<20x256xf32>
    %46 = arith.addf %40, %45 : vector<20x256xf32>
    %47 = vector.extract_strided_slice %1 {offsets = [0, 18], sizes = [1, 256], strides = [1, 1]} : vector<1x384xf32> to vector<1x256xf32>
    %c0_12 = arith.constant 0 : index
    %c7 = arith.constant 7 : index
    %48 = vector.load %arg2[%c0_12, %c7] : memref<20x25xf32, #tpu.memory_space<vmem>>, vector<20x1xf32>
    %49 = vector.broadcast %48 : vector<20x1xf32> to vector<20x256xf32>
    %50 = vector.broadcast %47 : vector<1x256xf32> to vector<20x256xf32>
    %51 = arith.mulf %49, %50 : vector<20x256xf32>
    %52 = arith.addf %46, %51 : vector<20x256xf32>
    %53 = vector.extract_strided_slice %1 {offsets = [0, 19], sizes = [1, 256], strides = [1, 1]} : vector<1x384xf32> to vector<1x256xf32>
    %c0_13 = arith.constant 0 : index
    %c8 = arith.constant 8 : index
    %54 = vector.load %arg2[%c0_13, %c8] : memref<20x25xf32, #tpu.memory_space<vmem>>, vector<20x1xf32>
    %55 = vector.broadcast %54 : vector<20x1xf32> to vector<20x256xf32>
    %56 = vector.broadcast %53 : vector<1x256xf32> to vector<20x256xf32>
    %57 = arith.mulf %55, %56 : vector<20x256xf32>
    %58 = arith.addf %52, %57 : vector<20x256xf32>
    %59 = vector.extract_strided_slice %1 {offsets = [0, 20], sizes = [1, 256], strides = [1, 1]} : vector<1x384xf32> to vector<1x256xf32>
    %c0_14 = arith.constant 0 : index
    %c9 = arith.constant 9 : index
    %60 = vector.load %arg2[%c0_14, %c9] : memref<20x25xf32, #tpu.memory_space<vmem>>, vector<20x1xf32>
    %61 = vector.broadcast %60 : vector<20x1xf32> to vector<20x256xf32>
    %62 = vector.broadcast %59 : vector<1x256xf32> to vector<20x256xf32>
    %63 = arith.mulf %61, %62 : vector<20x256xf32>
    %64 = arith.addf %58, %63 : vector<20x256xf32>
    %65 = vector.extract_strided_slice %1 {offsets = [0, 32], sizes = [1, 256], strides = [1, 1]} : vector<1x384xf32> to vector<1x256xf32>
    %c0_15 = arith.constant 0 : index
    %c10 = arith.constant 10 : index
    %66 = vector.load %arg2[%c0_15, %c10] : memref<20x25xf32, #tpu.memory_space<vmem>>, vector<20x1xf32>
    %67 = vector.broadcast %66 : vector<20x1xf32> to vector<20x256xf32>
    %68 = vector.broadcast %65 : vector<1x256xf32> to vector<20x256xf32>
    %69 = arith.mulf %67, %68 : vector<20x256xf32>
    %70 = arith.addf %64, %69 : vector<20x256xf32>
    %71 = vector.extract_strided_slice %1 {offsets = [0, 33], sizes = [1, 256], strides = [1, 1]} : vector<1x384xf32> to vector<1x256xf32>
    %c0_16 = arith.constant 0 : index
    %c11 = arith.constant 11 : index
    %72 = vector.load %arg2[%c0_16, %c11] : memref<20x25xf32, #tpu.memory_space<vmem>>, vector<20x1xf32>
    %73 = vector.broadcast %72 : vector<20x1xf32> to vector<20x256xf32>
    %74 = vector.broadcast %71 : vector<1x256xf32> to vector<20x256xf32>
    %75 = arith.mulf %73, %74 : vector<20x256xf32>
    %76 = arith.addf %70, %75 : vector<20x256xf32>
    %77 = vector.extract_strided_slice %1 {offsets = [0, 34], sizes = [1, 256], strides = [1, 1]} : vector<1x384xf32> to vector<1x256xf32>
    %c0_17 = arith.constant 0 : index
    %c12 = arith.constant 12 : index
    %78 = vector.load %arg2[%c0_17, %c12] : memref<20x25xf32, #tpu.memory_space<vmem>>, vector<20x1xf32>
    %79 = vector.broadcast %78 : vector<20x1xf32> to vector<20x256xf32>
    %80 = vector.broadcast %77 : vector<1x256xf32> to vector<20x256xf32>
    %81 = arith.mulf %79, %80 : vector<20x256xf32>
    %82 = arith.addf %76, %81 : vector<20x256xf32>
    %83 = vector.extract_strided_slice %1 {offsets = [0, 35], sizes = [1, 256], strides = [1, 1]} : vector<1x384xf32> to vector<1x256xf32>
    %c0_18 = arith.constant 0 : index
    %c13 = arith.constant 13 : index
    %84 = vector.load %arg2[%c0_18, %c13] : memref<20x25xf32, #tpu.memory_space<vmem>>, vector<20x1xf32>
    %85 = vector.broadcast %84 : vector<20x1xf32> to vector<20x256xf32>
    %86 = vector.broadcast %83 : vector<1x256xf32> to vector<20x256xf32>
    %87 = arith.mulf %85, %86 : vector<20x256xf32>
    %88 = arith.addf %82, %87 : vector<20x256xf32>
    %89 = vector.extract_strided_slice %1 {offsets = [0, 36], sizes = [1, 256], strides = [1, 1]} : vector<1x384xf32> to vector<1x256xf32>
    %c0_19 = arith.constant 0 : index
    %c14 = arith.constant 14 : index
    %90 = vector.load %arg2[%c0_19, %c14] : memref<20x25xf32, #tpu.memory_space<vmem>>, vector<20x1xf32>
    %91 = vector.broadcast %90 : vector<20x1xf32> to vector<20x256xf32>
    %92 = vector.broadcast %89 : vector<1x256xf32> to vector<20x256xf32>
    %93 = arith.mulf %91, %92 : vector<20x256xf32>
    %94 = arith.addf %88, %93 : vector<20x256xf32>
    %95 = vector.extract_strided_slice %1 {offsets = [0, 48], sizes = [1, 256], strides = [1, 1]} : vector<1x384xf32> to vector<1x256xf32>
    %c0_20 = arith.constant 0 : index
    %c15 = arith.constant 15 : index
    %96 = vector.load %arg2[%c0_20, %c15] : memref<20x25xf32, #tpu.memory_space<vmem>>, vector<20x1xf32>
    %97 = vector.broadcast %96 : vector<20x1xf32> to vector<20x256xf32>
    %98 = vector.broadcast %95 : vector<1x256xf32> to vector<20x256xf32>
    %99 = arith.mulf %97, %98 : vector<20x256xf32>
    %100 = arith.addf %94, %99 : vector<20x256xf32>
    %101 = vector.extract_strided_slice %1 {offsets = [0, 49], sizes = [1, 256], strides = [1, 1]} : vector<1x384xf32> to vector<1x256xf32>
    %c0_21 = arith.constant 0 : index
    %c16 = arith.constant 16 : index
    %102 = vector.load %arg2[%c0_21, %c16] : memref<20x25xf32, #tpu.memory_space<vmem>>, vector<20x1xf32>
    %103 = vector.broadcast %102 : vector<20x1xf32> to vector<20x256xf32>
    %104 = vector.broadcast %101 : vector<1x256xf32> to vector<20x256xf32>
    %105 = arith.mulf %103, %104 : vector<20x256xf32>
    %106 = arith.addf %100, %105 : vector<20x256xf32>
    %107 = vector.extract_strided_slice %1 {offsets = [0, 50], sizes = [1, 256], strides = [1, 1]} : vector<1x384xf32> to vector<1x256xf32>
    %c0_22 = arith.constant 0 : index
    %c17 = arith.constant 17 : index
    %108 = vector.load %arg2[%c0_22, %c17] : memref<20x25xf32, #tpu.memory_space<vmem>>, vector<20x1xf32>
    %109 = vector.broadcast %108 : vector<20x1xf32> to vector<20x256xf32>
    %110 = vector.broadcast %107 : vector<1x256xf32> to vector<20x256xf32>
    %111 = arith.mulf %109, %110 : vector<20x256xf32>
    %112 = arith.addf %106, %111 : vector<20x256xf32>
    %113 = vector.extract_strided_slice %1 {offsets = [0, 51], sizes = [1, 256], strides = [1, 1]} : vector<1x384xf32> to vector<1x256xf32>
    %c0_23 = arith.constant 0 : index
    %c18 = arith.constant 18 : index
    %114 = vector.load %arg2[%c0_23, %c18] : memref<20x25xf32, #tpu.memory_space<vmem>>, vector<20x1xf32>
    %115 = vector.broadcast %114 : vector<20x1xf32> to vector<20x256xf32>
    %116 = vector.broadcast %113 : vector<1x256xf32> to vector<20x256xf32>
    %117 = arith.mulf %115, %116 : vector<20x256xf32>
    %118 = arith.addf %112, %117 : vector<20x256xf32>
    %119 = vector.extract_strided_slice %1 {offsets = [0, 52], sizes = [1, 256], strides = [1, 1]} : vector<1x384xf32> to vector<1x256xf32>
    %c0_24 = arith.constant 0 : index
    %c19 = arith.constant 19 : index
    %120 = vector.load %arg2[%c0_24, %c19] : memref<20x25xf32, #tpu.memory_space<vmem>>, vector<20x1xf32>
    %121 = vector.broadcast %120 : vector<20x1xf32> to vector<20x256xf32>
    %122 = vector.broadcast %119 : vector<1x256xf32> to vector<20x256xf32>
    %123 = arith.mulf %121, %122 : vector<20x256xf32>
    %124 = arith.addf %118, %123 : vector<20x256xf32>
    %125 = vector.extract_strided_slice %1 {offsets = [0, 64], sizes = [1, 256], strides = [1, 1]} : vector<1x384xf32> to vector<1x256xf32>
    %c0_25 = arith.constant 0 : index
    %c20 = arith.constant 20 : index
    %126 = vector.load %arg2[%c0_25, %c20] : memref<20x25xf32, #tpu.memory_space<vmem>>, vector<20x1xf32>
    %127 = vector.broadcast %126 : vector<20x1xf32> to vector<20x256xf32>
    %128 = vector.broadcast %125 : vector<1x256xf32> to vector<20x256xf32>
    %129 = arith.mulf %127, %128 : vector<20x256xf32>
    %130 = arith.addf %124, %129 : vector<20x256xf32>
    %131 = vector.extract_strided_slice %1 {offsets = [0, 65], sizes = [1, 256], strides = [1, 1]} : vector<1x384xf32> to vector<1x256xf32>
    %c0_26 = arith.constant 0 : index
    %c21 = arith.constant 21 : index
    %132 = vector.load %arg2[%c0_26, %c21] : memref<20x25xf32, #tpu.memory_space<vmem>>, vector<20x1xf32>
    %133 = vector.broadcast %132 : vector<20x1xf32> to vector<20x256xf32>
    %134 = vector.broadcast %131 : vector<1x256xf32> to vector<20x256xf32>
    %135 = arith.mulf %133, %134 : vector<20x256xf32>
    %136 = arith.addf %130, %135 : vector<20x256xf32>
    %137 = vector.extract_strided_slice %1 {offsets = [0, 66], sizes = [1, 256], strides = [1, 1]} : vector<1x384xf32> to vector<1x256xf32>
    %c0_27 = arith.constant 0 : index
    %c22 = arith.constant 22 : index
    %138 = vector.load %arg2[%c0_27, %c22] : memref<20x25xf32, #tpu.memory_space<vmem>>, vector<20x1xf32>
    %139 = vector.broadcast %138 : vector<20x1xf32> to vector<20x256xf32>
    %140 = vector.broadcast %137 : vector<1x256xf32> to vector<20x256xf32>
    %141 = arith.mulf %139, %140 : vector<20x256xf32>
    %142 = arith.addf %136, %141 : vector<20x256xf32>
    %143 = vector.extract_strided_slice %1 {offsets = [0, 67], sizes = [1, 256], strides = [1, 1]} : vector<1x384xf32> to vector<1x256xf32>
    %c0_28 = arith.constant 0 : index
    %c23 = arith.constant 23 : index
    %144 = vector.load %arg2[%c0_28, %c23] : memref<20x25xf32, #tpu.memory_space<vmem>>, vector<20x1xf32>
    %145 = vector.broadcast %144 : vector<20x1xf32> to vector<20x256xf32>
    %146 = vector.broadcast %143 : vector<1x256xf32> to vector<20x256xf32>
    %147 = arith.mulf %145, %146 : vector<20x256xf32>
    %148 = arith.addf %142, %147 : vector<20x256xf32>
    %149 = vector.extract_strided_slice %1 {offsets = [0, 68], sizes = [1, 256], strides = [1, 1]} : vector<1x384xf32> to vector<1x256xf32>
    %c0_29 = arith.constant 0 : index
    %c24 = arith.constant 24 : index
    %150 = vector.load %arg2[%c0_29, %c24] : memref<20x25xf32, #tpu.memory_space<vmem>>, vector<20x1xf32>
    %151 = vector.broadcast %150 : vector<20x1xf32> to vector<20x256xf32>
    %152 = vector.broadcast %149 : vector<1x256xf32> to vector<20x256xf32>
    %153 = arith.mulf %151, %152 : vector<20x256xf32>
    %154 = arith.addf %148, %153 : vector<20x256xf32>
    %c0_30 = arith.constant 0 : index
    %c0_31 = arith.constant 0 : index
    %155 = vector.load %arg7[%c0_30, %c0_31] : memref<20x384xf32, #tpu.memory_space<vmem>>, vector<20x256xf32>
    tpu.vector_store %arg7[%c0_30, %c0_31], %154 {strides = array<i32>} : memref<20x384xf32, #tpu.memory_space<vmem>>, vector<20x256xf32>,
    %cst = arith.constant 0.000000e+00 : f32
    %156 = vector.broadcast %cst : f32 to vector<20x128xf32>
    %c0_32 = arith.constant 0 : index
    %c256 = arith.constant 256 : index
    %157 = vector.load %arg7[%c0_32, %c256] : memref<20x384xf32, #tpu.memory_space<vmem>>, vector<20x128xf32>
    tpu.vector_store %arg7[%c0_32, %c256], %156 {strides = array<i32>} : memref<20x384xf32, #tpu.memory_space<vmem>>, vector<20x128xf32>,
    %c0_33 = arith.constant 0 : index
    %c0_34 = arith.constant 0 : index
    %158 = vector.load %arg5[%c0_33, %c0_34] : memref<20x1xf32, #tpu.memory_space<vmem>>, vector<20x1xf32>
    %159 = vector.shape_cast %158 : vector<20x1xf32> to vector<20x1xf32>
    %160 = vector.broadcast %159 : vector<20x1xf32> to vector<20x256xf32>
    %c0_35 = arith.constant 0 : index
    %c0_36 = arith.constant 0 : index
    %161 = vector.load %arg7[%c0_35, %c0_36] : memref<20x384xf32, #tpu.memory_space<vmem>>, vector<20x256xf32>
    %c0_37 = arith.constant 0 : index
    %c0_38 = arith.constant 0 : index
    %c0_39 = arith.constant 0 : index
    %162 = vector.load %arg4[%c0_37, %c0_38, %c0_39] : memref<25x20x20xf32, #tpu.memory_space<vmem>>, vector<1x20x20xf32>
    %163 = vector.shape_cast %162 : vector<1x20x20xf32> to vector<20x20xf32>
    %cst_40 = arith.constant dense<0.000000e+00> : vector<20x256xf32>
    %164 = tpu.matmul %163, %161, %cst_40 {dimension_numbers = #tpu.dot_dimension_numbers<[1], [0], [0], [1], [0, 0, 1, 1], [], []>} : vector<20x20xf32>, vector<20x256xf32>, vector<20x256xf32> -> vector<20x256xf32>
    %165 = arith.addf %160, %164 : vector<20x256xf32>
    %c0_41 = arith.constant 0 : index
    %c1_42 = arith.constant 1 : index
    %166 = vector.load %arg7[%c0_41, %c1_42] : memref<20x384xf32, #tpu.memory_space<vmem>>, vector<20x256xf32>
    %c1_43 = arith.constant 1 : index
    %c0_44 = arith.constant 0 : index
    %c0_45 = arith.constant 0 : index
    %167 = vector.load %arg4[%c1_43, %c0_44, %c0_45] : memref<25x20x20xf32, #tpu.memory_space<vmem>>, vector<1x20x20xf32>
    %168 = vector.shape_cast %167 : vector<1x20x20xf32> to vector<20x20xf32>
    %cst_46 = arith.constant dense<0.000000e+00> : vector<20x256xf32>
    %169 = tpu.matmul %168, %166, %cst_46 {dimension_numbers = #tpu.dot_dimension_numbers<[1], [0], [0], [1], [0, 0, 1, 1], [], []>} : vector<20x20xf32>, vector<20x256xf32>, vector<20x256xf32> -> vector<20x256xf32>
    %170 = arith.addf %165, %169 : vector<20x256xf32>
    %c0_47 = arith.constant 0 : index
    %c2_48 = arith.constant 2 : index
    %171 = vector.load %arg7[%c0_47, %c2_48] : memref<20x384xf32, #tpu.memory_space<vmem>>, vector<20x256xf32>
    %c2_49 = arith.constant 2 : index
    %c0_50 = arith.constant 0 : index
    %c0_51 = arith.constant 0 : index
    %172 = vector.load %arg4[%c2_49, %c0_50, %c0_51] : memref<25x20x20xf32, #tpu.memory_space<vmem>>, vector<1x20x20xf32>
    %173 = vector.shape_cast %172 : vector<1x20x20xf32> to vector<20x20xf32>
    %cst_52 = arith.constant dense<0.000000e+00> : vector<20x256xf32>
    %174 = tpu.matmul %173, %171, %cst_52 {dimension_numbers = #tpu.dot_dimension_numbers<[1], [0], [0], [1], [0, 0, 1, 1], [], []>} : vector<20x20xf32>, vector<20x256xf32>, vector<20x256xf32> -> vector<20x256xf32>
    %175 = arith.addf %170, %174 : vector<20x256xf32>
    %c0_53 = arith.constant 0 : index
    %c3_54 = arith.constant 3 : index
    %176 = vector.load %arg7[%c0_53, %c3_54] : memref<20x384xf32, #tpu.memory_space<vmem>>, vector<20x256xf32>
    %c3_55 = arith.constant 3 : index
    %c0_56 = arith.constant 0 : index
    %c0_57 = arith.constant 0 : index
    %177 = vector.load %arg4[%c3_55, %c0_56, %c0_57] : memref<25x20x20xf32, #tpu.memory_space<vmem>>, vector<1x20x20xf32>
    %178 = vector.shape_cast %177 : vector<1x20x20xf32> to vector<20x20xf32>
    %cst_58 = arith.constant dense<0.000000e+00> : vector<20x256xf32>
    %179 = tpu.matmul %178, %176, %cst_58 {dimension_numbers = #tpu.dot_dimension_numbers<[1], [0], [0], [1], [0, 0, 1, 1], [], []>} : vector<20x20xf32>, vector<20x256xf32>, vector<20x256xf32> -> vector<20x256xf32>
    %180 = arith.addf %175, %179 : vector<20x256xf32>
    %c0_59 = arith.constant 0 : index
    %c4_60 = arith.constant 4 : index
    %181 = vector.load %arg7[%c0_59, %c4_60] : memref<20x384xf32, #tpu.memory_space<vmem>>, vector<20x256xf32>
    %c4_61 = arith.constant 4 : index
    %c0_62 = arith.constant 0 : index
    %c0_63 = arith.constant 0 : index
    %182 = vector.load %arg4[%c4_61, %c0_62, %c0_63] : memref<25x20x20xf32, #tpu.memory_space<vmem>>, vector<1x20x20xf32>
    %183 = vector.shape_cast %182 : vector<1x20x20xf32> to vector<20x20xf32>
    %cst_64 = arith.constant dense<0.000000e+00> : vector<20x256xf32>
    %184 = tpu.matmul %183, %181, %cst_64 {dimension_numbers = #tpu.dot_dimension_numbers<[1], [0], [0], [1], [0, 0, 1, 1], [], []>} : vector<20x20xf32>, vector<20x256xf32>, vector<20x256xf32> -> vector<20x256xf32>
    %185 = arith.addf %180, %184 : vector<20x256xf32>
    %c0_65 = arith.constant 0 : index
    %c16_66 = arith.constant 16 : index
    %186 = vector.load %arg7[%c0_65, %c16_66] : memref<20x384xf32, #tpu.memory_space<vmem>>, vector<20x256xf32>
    %c5_67 = arith.constant 5 : index
    %c0_68 = arith.constant 0 : index
    %c0_69 = arith.constant 0 : index
    %187 = vector.load %arg4[%c5_67, %c0_68, %c0_69] : memref<25x20x20xf32, #tpu.memory_space<vmem>>, vector<1x20x20xf32>
    %188 = vector.shape_cast %187 : vector<1x20x20xf32> to vector<20x20xf32>
    %cst_70 = arith.constant dense<0.000000e+00> : vector<20x256xf32>
    %189 = tpu.matmul %188, %186, %cst_70 {dimension_numbers = #tpu.dot_dimension_numbers<[1], [0], [0], [1], [0, 0, 1, 1], [], []>} : vector<20x20xf32>, vector<20x256xf32>, vector<20x256xf32> -> vector<20x256xf32>
    %190 = arith.addf %185, %189 : vector<20x256xf32>
    %c0_71 = arith.constant 0 : index
    %c17_72 = arith.constant 17 : index
    %191 = vector.load %arg7[%c0_71, %c17_72] : memref<20x384xf32, #tpu.memory_space<vmem>>, vector<20x256xf32>
    %c6_73 = arith.constant 6 : index
    %c0_74 = arith.constant 0 : index
    %c0_75 = arith.constant 0 : index
    %192 = vector.load %arg4[%c6_73, %c0_74, %c0_75] : memref<25x20x20xf32, #tpu.memory_space<vmem>>, vector<1x20x20xf32>
    %193 = vector.shape_cast %192 : vector<1x20x20xf32> to vector<20x20xf32>
    %cst_76 = arith.constant dense<0.000000e+00> : vector<20x256xf32>
    %194 = tpu.matmul %193, %191, %cst_76 {dimension_numbers = #tpu.dot_dimension_numbers<[1], [0], [0], [1], [0, 0, 1, 1], [], []>} : vector<20x20xf32>, vector<20x256xf32>, vector<20x256xf32> -> vector<20x256xf32>
    %195 = arith.addf %190, %194 : vector<20x256xf32>
    %c0_77 = arith.constant 0 : index
    %c18_78 = arith.constant 18 : index
    %196 = vector.load %arg7[%c0_77, %c18_78] : memref<20x384xf32, #tpu.memory_space<vmem>>, vector<20x256xf32>
    %c7_79 = arith.constant 7 : index
    %c0_80 = arith.constant 0 : index
    %c0_81 = arith.constant 0 : index
    %197 = vector.load %arg4[%c7_79, %c0_80, %c0_81] : memref<25x20x20xf32, #tpu.memory_space<vmem>>, vector<1x20x20xf32>
    %198 = vector.shape_cast %197 : vector<1x20x20xf32> to vector<20x20xf32>
    %cst_82 = arith.constant dense<0.000000e+00> : vector<20x256xf32>
    %199 = tpu.matmul %198, %196, %cst_82 {dimension_numbers = #tpu.dot_dimension_numbers<[1], [0], [0], [1], [0, 0, 1, 1], [], []>} : vector<20x20xf32>, vector<20x256xf32>, vector<20x256xf32> -> vector<20x256xf32>
    %200 = arith.addf %195, %199 : vector<20x256xf32>
    %c0_83 = arith.constant 0 : index
    %c19_84 = arith.constant 19 : index
    %201 = vector.load %arg7[%c0_83, %c19_84] : memref<20x384xf32, #tpu.memory_space<vmem>>, vector<20x256xf32>
    %c8_85 = arith.constant 8 : index
    %c0_86 = arith.constant 0 : index
    %c0_87 = arith.constant 0 : index
    %202 = vector.load %arg4[%c8_85, %c0_86, %c0_87] : memref<25x20x20xf32, #tpu.memory_space<vmem>>, vector<1x20x20xf32>
    %203 = vector.shape_cast %202 : vector<1x20x20xf32> to vector<20x20xf32>
    %cst_88 = arith.constant dense<0.000000e+00> : vector<20x256xf32>
    %204 = tpu.matmul %203, %201, %cst_88 {dimension_numbers = #tpu.dot_dimension_numbers<[1], [0], [0], [1], [0, 0, 1, 1], [], []>} : vector<20x20xf32>, vector<20x256xf32>, vector<20x256xf32> -> vector<20x256xf32>
    %205 = arith.addf %200, %204 : vector<20x256xf32>
    %c0_89 = arith.constant 0 : index
    %c20_90 = arith.constant 20 : index
    %206 = vector.load %arg7[%c0_89, %c20_90] : memref<20x384xf32, #tpu.memory_space<vmem>>, vector<20x256xf32>
    %c9_91 = arith.constant 9 : index
    %c0_92 = arith.constant 0 : index
    %c0_93 = arith.constant 0 : index
    %207 = vector.load %arg4[%c9_91, %c0_92, %c0_93] : memref<25x20x20xf32, #tpu.memory_space<vmem>>, vector<1x20x20xf32>
    %208 = vector.shape_cast %207 : vector<1x20x20xf32> to vector<20x20xf32>
    %cst_94 = arith.constant dense<0.000000e+00> : vector<20x256xf32>
    %209 = tpu.matmul %208, %206, %cst_94 {dimension_numbers = #tpu.dot_dimension_numbers<[1], [0], [0], [1], [0, 0, 1, 1], [], []>} : vector<20x20xf32>, vector<20x256xf32>, vector<20x256xf32> -> vector<20x256xf32>
    %210 = arith.addf %205, %209 : vector<20x256xf32>
    %c0_95 = arith.constant 0 : index
    %c32 = arith.constant 32 : index
    %211 = vector.load %arg7[%c0_95, %c32] : memref<20x384xf32, #tpu.memory_space<vmem>>, vector<20x256xf32>
    %c10_96 = arith.constant 10 : index
    %c0_97 = arith.constant 0 : index
    %c0_98 = arith.constant 0 : index
    %212 = vector.load %arg4[%c10_96, %c0_97, %c0_98] : memref<25x20x20xf32, #tpu.memory_space<vmem>>, vector<1x20x20xf32>
    %213 = vector.shape_cast %212 : vector<1x20x20xf32> to vector<20x20xf32>
    %cst_99 = arith.constant dense<0.000000e+00> : vector<20x256xf32>
    %214 = tpu.matmul %213, %211, %cst_99 {dimension_numbers = #tpu.dot_dimension_numbers<[1], [0], [0], [1], [0, 0, 1, 1], [], []>} : vector<20x20xf32>, vector<20x256xf32>, vector<20x256xf32> -> vector<20x256xf32>
    %215 = arith.addf %210, %214 : vector<20x256xf32>
    %c0_100 = arith.constant 0 : index
    %c33 = arith.constant 33 : index
    %216 = vector.load %arg7[%c0_100, %c33] : memref<20x384xf32, #tpu.memory_space<vmem>>, vector<20x256xf32>
    %c11_101 = arith.constant 11 : index
    %c0_102 = arith.constant 0 : index
    %c0_103 = arith.constant 0 : index
    %217 = vector.load %arg4[%c11_101, %c0_102, %c0_103] : memref<25x20x20xf32, #tpu.memory_space<vmem>>, vector<1x20x20xf32>
    %218 = vector.shape_cast %217 : vector<1x20x20xf32> to vector<20x20xf32>
    %cst_104 = arith.constant dense<0.000000e+00> : vector<20x256xf32>
    %219 = tpu.matmul %218, %216, %cst_104 {dimension_numbers = #tpu.dot_dimension_numbers<[1], [0], [0], [1], [0, 0, 1, 1], [], []>} : vector<20x20xf32>, vector<20x256xf32>, vector<20x256xf32> -> vector<20x256xf32>
    %220 = arith.addf %215, %219 : vector<20x256xf32>
    %c0_105 = arith.constant 0 : index
    %c34 = arith.constant 34 : index
    %221 = vector.load %arg7[%c0_105, %c34] : memref<20x384xf32, #tpu.memory_space<vmem>>, vector<20x256xf32>
    %c12_106 = arith.constant 12 : index
    %c0_107 = arith.constant 0 : index
    %c0_108 = arith.constant 0 : index
    %222 = vector.load %arg4[%c12_106, %c0_107, %c0_108] : memref<25x20x20xf32, #tpu.memory_space<vmem>>, vector<1x20x20xf32>
    %223 = vector.shape_cast %222 : vector<1x20x20xf32> to vector<20x20xf32>
    %cst_109 = arith.constant dense<0.000000e+00> : vector<20x256xf32>
    %224 = tpu.matmul %223, %221, %cst_109 {dimension_numbers = #tpu.dot_dimension_numbers<[1], [0], [0], [1], [0, 0, 1, 1], [], []>} : vector<20x20xf32>, vector<20x256xf32>, vector<20x256xf32> -> vector<20x256xf32>
    %225 = arith.addf %220, %224 : vector<20x256xf32>
    %c0_110 = arith.constant 0 : index
    %c35 = arith.constant 35 : index
    %226 = vector.load %arg7[%c0_110, %c35] : memref<20x384xf32, #tpu.memory_space<vmem>>, vector<20x256xf32>
    %c13_111 = arith.constant 13 : index
    %c0_112 = arith.constant 0 : index
    %c0_113 = arith.constant 0 : index
    %227 = vector.load %arg4[%c13_111, %c0_112, %c0_113] : memref<25x20x20xf32, #tpu.memory_space<vmem>>, vector<1x20x20xf32>
    %228 = vector.shape_cast %227 : vector<1x20x20xf32> to vector<20x20xf32>
    %cst_114 = arith.constant dense<0.000000e+00> : vector<20x256xf32>
    %229 = tpu.matmul %228, %226, %cst_114 {dimension_numbers = #tpu.dot_dimension_numbers<[1], [0], [0], [1], [0, 0, 1, 1], [], []>} : vector<20x20xf32>, vector<20x256xf32>, vector<20x256xf32> -> vector<20x256xf32>
    %230 = arith.addf %225, %229 : vector<20x256xf32>
    %c0_115 = arith.constant 0 : index
    %c36 = arith.constant 36 : index
    %231 = vector.load %arg7[%c0_115, %c36] : memref<20x384xf32, #tpu.memory_space<vmem>>, vector<20x256xf32>
    %c14_116 = arith.constant 14 : index
    %c0_117 = arith.constant 0 : index
    %c0_118 = arith.constant 0 : index
    %232 = vector.load %arg4[%c14_116, %c0_117, %c0_118] : memref<25x20x20xf32, #tpu.memory_space<vmem>>, vector<1x20x20xf32>
    %233 = vector.shape_cast %232 : vector<1x20x20xf32> to vector<20x20xf32>
    %cst_119 = arith.constant dense<0.000000e+00> : vector<20x256xf32>
    %234 = tpu.matmul %233, %231, %cst_119 {dimension_numbers = #tpu.dot_dimension_numbers<[1], [0], [0], [1], [0, 0, 1, 1], [], []>} : vector<20x20xf32>, vector<20x256xf32>, vector<20x256xf32> -> vector<20x256xf32>
    %235 = arith.addf %230, %234 : vector<20x256xf32>
    %c0_120 = arith.constant 0 : index
    %c48 = arith.constant 48 : index
    %236 = vector.load %arg7[%c0_120, %c48] : memref<20x384xf32, #tpu.memory_space<vmem>>, vector<20x256xf32>
    %c15_121 = arith.constant 15 : index
    %c0_122 = arith.constant 0 : index
    %c0_123 = arith.constant 0 : index
    %237 = vector.load %arg4[%c15_121, %c0_122, %c0_123] : memref<25x20x20xf32, #tpu.memory_space<vmem>>, vector<1x20x20xf32>
    %238 = vector.shape_cast %237 : vector<1x20x20xf32> to vector<20x20xf32>
    %cst_124 = arith.constant dense<0.000000e+00> : vector<20x256xf32>
    %239 = tpu.matmul %238, %236, %cst_124 {dimension_numbers = #tpu.dot_dimension_numbers<[1], [0], [0], [1], [0, 0, 1, 1], [], []>} : vector<20x20xf32>, vector<20x256xf32>, vector<20x256xf32> -> vector<20x256xf32>
    %240 = arith.addf %235, %239 : vector<20x256xf32>
    %c0_125 = arith.constant 0 : index
    %c49 = arith.constant 49 : index
    %241 = vector.load %arg7[%c0_125, %c49] : memref<20x384xf32, #tpu.memory_space<vmem>>, vector<20x256xf32>
    %c16_126 = arith.constant 16 : index
    %c0_127 = arith.constant 0 : index
    %c0_128 = arith.constant 0 : index
    %242 = vector.load %arg4[%c16_126, %c0_127, %c0_128] : memref<25x20x20xf32, #tpu.memory_space<vmem>>, vector<1x20x20xf32>
    %243 = vector.shape_cast %242 : vector<1x20x20xf32> to vector<20x20xf32>
    %cst_129 = arith.constant dense<0.000000e+00> : vector<20x256xf32>
    %244 = tpu.matmul %243, %241, %cst_129 {dimension_numbers = #tpu.dot_dimension_numbers<[1], [0], [0], [1], [0, 0, 1, 1], [], []>} : vector<20x20xf32>, vector<20x256xf32>, vector<20x256xf32> -> vector<20x256xf32>
    %245 = arith.addf %240, %244 : vector<20x256xf32>
    %c0_130 = arith.constant 0 : index
    %c50 = arith.constant 50 : index
    %246 = vector.load %arg7[%c0_130, %c50] : memref<20x384xf32, #tpu.memory_space<vmem>>, vector<20x256xf32>
    %c17_131 = arith.constant 17 : index
    %c0_132 = arith.constant 0 : index
    %c0_133 = arith.constant 0 : index
    %247 = vector.load %arg4[%c17_131, %c0_132, %c0_133] : memref<25x20x20xf32, #tpu.memory_space<vmem>>, vector<1x20x20xf32>
    %248 = vector.shape_cast %247 : vector<1x20x20xf32> to vector<20x20xf32>
    %cst_134 = arith.constant dense<0.000000e+00> : vector<20x256xf32>
    %249 = tpu.matmul %248, %246, %cst_134 {dimension_numbers = #tpu.dot_dimension_numbers<[1], [0], [0], [1], [0, 0, 1, 1], [], []>} : vector<20x20xf32>, vector<20x256xf32>, vector<20x256xf32> -> vector<20x256xf32>
    %250 = arith.addf %245, %249 : vector<20x256xf32>
    %c0_135 = arith.constant 0 : index
    %c51 = arith.constant 51 : index
    %251 = vector.load %arg7[%c0_135, %c51] : memref<20x384xf32, #tpu.memory_space<vmem>>, vector<20x256xf32>
    %c18_136 = arith.constant 18 : index
    %c0_137 = arith.constant 0 : index
    %c0_138 = arith.constant 0 : index
    %252 = vector.load %arg4[%c18_136, %c0_137, %c0_138] : memref<25x20x20xf32, #tpu.memory_space<vmem>>, vector<1x20x20xf32>
    %253 = vector.shape_cast %252 : vector<1x20x20xf32> to vector<20x20xf32>
    %cst_139 = arith.constant dense<0.000000e+00> : vector<20x256xf32>
    %254 = tpu.matmul %253, %251, %cst_139 {dimension_numbers = #tpu.dot_dimension_numbers<[1], [0], [0], [1], [0, 0, 1, 1], [], []>} : vector<20x20xf32>, vector<20x256xf32>, vector<20x256xf32> -> vector<20x256xf32>
    %255 = arith.addf %250, %254 : vector<20x256xf32>
    %c0_140 = arith.constant 0 : index
    %c52 = arith.constant 52 : index
    %256 = vector.load %arg7[%c0_140, %c52] : memref<20x384xf32, #tpu.memory_space<vmem>>, vector<20x256xf32>
    %c19_141 = arith.constant 19 : index
    %c0_142 = arith.constant 0 : index
    %c0_143 = arith.constant 0 : index
    %257 = vector.load %arg4[%c19_141, %c0_142, %c0_143] : memref<25x20x20xf32, #tpu.memory_space<vmem>>, vector<1x20x20xf32>
    %258 = vector.shape_cast %257 : vector<1x20x20xf32> to vector<20x20xf32>
    %cst_144 = arith.constant dense<0.000000e+00> : vector<20x256xf32>
    %259 = tpu.matmul %258, %256, %cst_144 {dimension_numbers = #tpu.dot_dimension_numbers<[1], [0], [0], [1], [0, 0, 1, 1], [], []>} : vector<20x20xf32>, vector<20x256xf32>, vector<20x256xf32> -> vector<20x256xf32>
    %260 = arith.addf %255, %259 : vector<20x256xf32>
    %c0_145 = arith.constant 0 : index
    %c64 = arith.constant 64 : index
    %261 = vector.load %arg7[%c0_145, %c64] : memref<20x384xf32, #tpu.memory_space<vmem>>, vector<20x256xf32>
    %c20_146 = arith.constant 20 : index
    %c0_147 = arith.constant 0 : index
    %c0_148 = arith.constant 0 : index
    %262 = vector.load %arg4[%c20_146, %c0_147, %c0_148] : memref<25x20x20xf32, #tpu.memory_space<vmem>>, vector<1x20x20xf32>
    %263 = vector.shape_cast %262 : vector<1x20x20xf32> to vector<20x20xf32>
    %cst_149 = arith.constant dense<0.000000e+00> : vector<20x256xf32>
    %264 = tpu.matmul %263, %261, %cst_149 {dimension_numbers = #tpu.dot_dimension_numbers<[1], [0], [0], [1], [0, 0, 1, 1], [], []>} : vector<20x20xf32>, vector<20x256xf32>, vector<20x256xf32> -> vector<20x256xf32>
    %265 = arith.addf %260, %264 : vector<20x256xf32>
    %c0_150 = arith.constant 0 : index
    %c65 = arith.constant 65 : index
    %266 = vector.load %arg7[%c0_150, %c65] : memref<20x384xf32, #tpu.memory_space<vmem>>, vector<20x256xf32>
    %c21_151 = arith.constant 21 : index
    %c0_152 = arith.constant 0 : index
    %c0_153 = arith.constant 0 : index
    %267 = vector.load %arg4[%c21_151, %c0_152, %c0_153] : memref<25x20x20xf32, #tpu.memory_space<vmem>>, vector<1x20x20xf32>
    %268 = vector.shape_cast %267 : vector<1x20x20xf32> to vector<20x20xf32>
    %cst_154 = arith.constant dense<0.000000e+00> : vector<20x256xf32>
    %269 = tpu.matmul %268, %266, %cst_154 {dimension_numbers = #tpu.dot_dimension_numbers<[1], [0], [0], [1], [0, 0, 1, 1], [], []>} : vector<20x20xf32>, vector<20x256xf32>, vector<20x256xf32> -> vector<20x256xf32>
    %270 = arith.addf %265, %269 : vector<20x256xf32>
    %c0_155 = arith.constant 0 : index
    %c66 = arith.constant 66 : index
    %271 = vector.load %arg7[%c0_155, %c66] : memref<20x384xf32, #tpu.memory_space<vmem>>, vector<20x256xf32>
    %c22_156 = arith.constant 22 : index
    %c0_157 = arith.constant 0 : index
    %c0_158 = arith.constant 0 : index
    %272 = vector.load %arg4[%c22_156, %c0_157, %c0_158] : memref<25x20x20xf32, #tpu.memory_space<vmem>>, vector<1x20x20xf32>
    %273 = vector.shape_cast %272 : vector<1x20x20xf32> to vector<20x20xf32>
    %cst_159 = arith.constant dense<0.000000e+00> : vector<20x256xf32>
    %274 = tpu.matmul %273, %271, %cst_159 {dimension_numbers = #tpu.dot_dimension_numbers<[1], [0], [0], [1], [0, 0, 1, 1], [], []>} : vector<20x20xf32>, vector<20x256xf32>, vector<20x256xf32> -> vector<20x256xf32>
    %275 = arith.addf %270, %274 : vector<20x256xf32>
    %c0_160 = arith.constant 0 : index
    %c67 = arith.constant 67 : index
    %276 = vector.load %arg7[%c0_160, %c67] : memref<20x384xf32, #tpu.memory_space<vmem>>, vector<20x256xf32>
    %c23_161 = arith.constant 23 : index
    %c0_162 = arith.constant 0 : index
    %c0_163 = arith.constant 0 : index
    %277 = vector.load %arg4[%c23_161, %c0_162, %c0_163] : memref<25x20x20xf32, #tpu.memory_space<vmem>>, vector<1x20x20xf32>
    %278 = vector.shape_cast %277 : vector<1x20x20xf32> to vector<20x20xf32>
    %cst_164 = arith.constant dense<0.000000e+00> : vector<20x256xf32>
    %279 = tpu.matmul %278, %276, %cst_164 {dimension_numbers = #tpu.dot_dimension_numbers<[1], [0], [0], [1], [0, 0, 1, 1], [], []>} : vector<20x20xf32>, vector<20x256xf32>, vector<20x256xf32> -> vector<20x256xf32>
    %280 = arith.addf %275, %279 : vector<20x256xf32>
    %c0_165 = arith.constant 0 : index
    %c68 = arith.constant 68 : index
    %281 = vector.load %arg7[%c0_165, %c68] : memref<20x384xf32, #tpu.memory_space<vmem>>, vector<20x256xf32>
    %c24_166 = arith.constant 24 : index
    %c0_167 = arith.constant 0 : index
    %c0_168 = arith.constant 0 : index
    %282 = vector.load %arg4[%c24_166, %c0_167, %c0_168] : memref<25x20x20xf32, #tpu.memory_space<vmem>>, vector<1x20x20xf32>
    %283 = vector.shape_cast %282 : vector<1x20x20xf32> to vector<20x20xf32>
    %cst_169 = arith.constant dense<0.000000e+00> : vector<20x256xf32>
    %284 = tpu.matmul %283, %281, %cst_169 {dimension_numbers = #tpu.dot_dimension_numbers<[1], [0], [0], [1], [0, 0, 1, 1], [], []>} : vector<20x20xf32>, vector<20x256xf32>, vector<20x256xf32> -> vector<20x256xf32>
    %285 = arith.addf %280, %284 : vector<20x256xf32>
    %c0_170 = arith.constant 0 : index
    %c0_171 = arith.constant 0 : index
    %c0_172 = arith.constant 0 : index
    %286 = vector.load %arg6[%c0_170, %c0_171, %c0_172] : memref<1x20x256xf32, #tpu.memory_space<vmem>>, vector<1x20x256xf32>
    %287 = vector.shape_cast %286 : vector<1x20x256xf32> to vector<20x256xf32>
    %288 = vector.shape_cast %285 : vector<20x256xf32> to vector<1x20x256xf32>
    tpu.vector_store %arg6[%c0_170, %c0_171, %c0_172], %288 {strides = array<i32>} : memref<1x20x256xf32, #tpu.memory_space<vmem>>, vector<1x20x256xf32>,
    return
  }
  func.func @transform_0(%arg0: i32) -> (i32, i32, i32) {
    %c0_i32 = arith.constant 0 : i32
    %c0_i32_0 = arith.constant 0 : i32
    %c0_i32_1 = arith.constant 0 : i32
    return %arg0, %c0_i32, %c0_i32_0 : i32, i32, i32
  }
  func.func @transform_1(%arg0: i32) -> (i32, i32) {
    %c0_i32 = arith.constant 0 : i32
    %c0_i32_0 = arith.constant 0 : i32
    %c0_i32_1 = arith.constant 0 : i32
    return %c0_i32, %c0_i32_0 : i32, i32
  }
  func.func @transform_2(%arg0: i32) -> (i32, i32) {
    %c0_i32 = arith.constant 0 : i32
    %c0_i32_0 = arith.constant 0 : i32
    %c0_i32_1 = arith.constant 0 : i32
    return %c0_i32, %c0_i32_0 : i32, i32
  }
  func.func @transform_3(%arg0: i32) -> (i32, i32, i32) {
    %c0_i32 = arith.constant 0 : i32
    %c0_i32_0 = arith.constant 0 : i32
    %c0_i32_1 = arith.constant 0 : i32
    %c0_i32_2 = arith.constant 0 : i32
    return %c0_i32, %c0_i32_0, %c0_i32_1 : i32, i32, i32
  }
  func.func @transform_4(%arg0: i32) -> (i32, i32) {
    %c0_i32 = arith.constant 0 : i32
    %c0_i32_0 = arith.constant 0 : i32
    %c0_i32_1 = arith.constant 0 : i32
    return %c0_i32, %c0_i32_0 : i32, i32
  }
  func.func @transform_5(%arg0: i32) -> (i32, i32, i32) {
    %c0_i32 = arith.constant 0 : i32
    %c0_i32_0 = arith.constant 0 : i32
    %c0_i32_1 = arith.constant 0 : i32
    return %arg0, %c0_i32, %c0_i32_0 : i32, i32, i32
  }
}

</mosaic_0001>

<llo_original>
// kernel: _forward.1
$region0: #{_forward.1}
  #allocation0 [shape = 'u32[]', space=smem, size = 0x4, offset = 0x4, fixed_abs, tag = 'smem constant byte address 0x4 - core index']
  #allocation1 [shape = 'u32[144,128]{1,0:T(1,128)}', space=vmem, size = 0x12000, scoped, tag = 'internal scratch']
  #allocation2 [shape = 'f32[20,384]{1,0:T(8,128)}', space=vmem, size = 0x9000, scoped, tag = 'scratch operand']
  %s0 = inlined_call_operand.vmem [shape: f32[2,1,384], index: 0, kind: input, shape index: {}]
  %s1 = inlined_call_operand.vmem [shape: f32[20,25], index: 1, kind: input, shape index: {}]
  %s2 = inlined_call_operand.vmem [shape: f32[20,1], index: 2, kind: input, shape index: {}]
  %s3 = inlined_call_operand.vmem [shape: f32[25,20,20], index: 3, kind: input, shape index: {}]
  %s4 = inlined_call_operand.vmem [shape: f32[20,1], index: 4, kind: input, shape index: {}]
  %s5 = inlined_call_operand.vmem [shape: f32[2,20,256], index: 5, kind: output, shape index: {}]
  %s6 = sld [smem:[#allocation0]]
  $region53: #{_forward.1} parent=0
    _
  %s8 = ssub.s32 1, %s6
  %s9 = scalar_select 0, %s8, %s6
  loop: start=0, step=1, limit=4
  $region2: #{_forward.1} parent=0 // loop_pre_header
    _
  $region3: #{_forward.1} parent=0 // loop_header
    %s11 = sphi 0, %s15
    %p12 = scmp.ge.s32.totalorder %s11, 4
    %s21 = sphi 0, %s23
    %s24 = sphi 0, %s21
    %s25 = sphi 0, %s24
    %s41 = sphi 0, %s25
    %s45 = sphi 0, %s45
    %s47 = sphi 0, %s45
    %s48 = sphi 0, %s47
    %s62 = sphi 0, %s48
    %s66 = sphi 0, %s66
    %s68 = sphi 0, %s66
    %s69 = sphi 0, %s68
    %s83 = sphi 0, %s69
    %s87 = sphi 0, %s87
    %s89 = sphi 0, %s87
    %s90 = sphi 0, %s89
    %s104 = sphi 0, %s90
    %s108 = sphi 0, %s108
    %s110 = sphi 0, %s108
    %s111 = sphi 0, %s110
    %s125 = sphi 0, %s111
    %s131 = sphi 0, %s133
    %s134 = sphi 0, %s131
    %s135 = sphi 0, %s134
    %s151 = sphi 0, %s135
  $region4: #{_forward.1} parent=0 // loop_header_branch
    %14 = sbr.rel (%p12) target = $region8
  $region5: #{_forward.1} parent=0 // loop_body
    %s16 = ssub.s32 %s11, 1
    %s17 = ssub.s32 %s11, 2
    %s18 = sadd.s32 %s11, 1
    %s19 = ssub.s32 %s11, %s18
    %p20 = scmp.eq.s32.totalorder %s19, 0
    %s22 = sadd.s32 %s21, 1
    %s23 = scalar_select %p20, %s21, %s22
    %p26 = pneg %p20
    %p27 = scmp.eq.s32.totalorder %s11, 1
    %p28 = por %p26, %p27
    %p29 = scmp.ne.s32.totalorder %s21, %s24
    %p30 = scmp.eq.s32.totalorder %s11, 0
    %p31 = por %p29, %p30
    %p32 = scmp.ne.s32.totalorder %s21, %s24
    %p33 = scmp.eq.s32.totalorder %s16, 1
    %p34 = por %p32, %p33
    %p35 = scmp.ne.s32.totalorder %s24, %s25
    %p36 = scmp.eq.s32.totalorder %s16, 0
    %p37 = por %p35, %p36
    %p38 = scmp.ne.s32.totalorder %s24, %s25
    %p39 = scmp.eq.s32.totalorder %s17, 1
    %p40 = por %p38, %p39
    %p42 = scmp.ne.s32.totalorder %s25, %s41
    %p43 = scmp.eq.s32.totalorder %s17, 0
    %p44 = por %p42, %p43
    %s46 = sadd.s32 %s45, 1
    %p49 = scmp.eq.s32.totalorder %s11, 1
    %p50 = scmp.ne.s32.totalorder %s45, %s47
    %p51 = scmp.eq.s32.totalorder %s11, 0
    %p52 = por %p50, %p51
    %p53 = scmp.ne.s32.totalorder %s45, %s47
    %p54 = scmp.eq.s32.totalorder %s16, 1
    %p55 = por %p53, %p54
    %p56 = scmp.ne.s32.totalorder %s47, %s48
    %p57 = scmp.eq.s32.totalorder %s16, 0
    %p58 = por %p56, %p57
    %p59 = scmp.ne.s32.totalorder %s47, %s48
    %p60 = scmp.eq.s32.totalorder %s17, 1
    %p61 = por %p59, %p60
    %p63 = scmp.ne.s32.totalorder %s48, %s62
    %p64 = scmp.eq.s32.totalorder %s17, 0
    %p65 = por %p63, %p64
    %s67 = sadd.s32 %s66, 1
    %p70 = scmp.eq.s32.totalorder %s11, 1
    %p71 = scmp.ne.s32.totalorder %s66, %s68
    %p72 = scmp.eq.s32.totalorder %s11, 0
    %p73 = por %p71, %p72
    %p74 = scmp.ne.s32.totalorder %s66, %s68
    %p75 = scmp.eq.s32.totalorder %s16, 1
    %p76 = por %p74, %p75
    %p77 = scmp.ne.s32.totalorder %s68, %s69
    %p78 = scmp.eq.s32.totalorder %s16, 0
    %p79 = por %p77, %p78
    %p80 = scmp.ne.s32.totalorder %s68, %s69
    %p81 = scmp.eq.s32.totalorder %s17, 1
    %p82 = por %p80, %p81
    %p84 = scmp.ne.s32.totalorder %s69, %s83
    %p85 = scmp.eq.s32.totalorder %s17, 0
    %p86 = por %p84, %p85
    %s88 = sadd.s32 %s87, 1
    %p91 = scmp.eq.s32.totalorder %s11, 1
    %p92 = scmp.ne.s32.totalorder %s87, %s89
    %p93 = scmp.eq.s32.totalorder %s11, 0
    %p94 = por %p92, %p93
    %p95 = scmp.ne.s32.totalorder %s87, %s89
    %p96 = scmp.eq.s32.totalorder %s16, 1
    %p97 = por %p95, %p96
    %p98 = scmp.ne.s32.totalorder %s89, %s90
    %p99 = scmp.eq.s32.totalorder %s16, 0
    %p100 = por %p98, %p99
    %p101 = scmp.ne.s32.totalorder %s89, %s90
    %p102 = scmp.eq.s32.totalorder %s17, 1
    %p103 = por %p101, %p102
    %p105 = scmp.ne.s32.totalorder %s90, %s104
    %p106 = scmp.eq.s32.totalorder %s17, 0
    %p107 = por %p105, %p106
    %s109 = sadd.s32 %s108, 1
    %p112 = scmp.eq.s32.totalorder %s11, 1
    %p113 = scmp.ne.s32.totalorder %s108, %s110
    %p114 = scmp.eq.s32.totalorder %s11, 0
    %p115 = por %p113, %p114
    %p116 = scmp.ne.s32.totalorder %s108, %s110
    %p117 = scmp.eq.s32.totalorder %s16, 1
    %p118 = por %p116, %p117
    %p119 = scmp.ne.s32.totalorder %s110, %s111
    %p120 = scmp.eq.s32.totalorder %s16, 0
    %p121 = por %p119, %p120
    %p122 = scmp.ne.s32.totalorder %s110, %s111
    %p123 = scmp.eq.s32.totalorder %s17, 1
    %p124 = por %p122, %p123
    %p126 = scmp.ne.s32.totalorder %s111, %s125
    %p127 = scmp.eq.s32.totalorder %s17, 0
    %p128 = por %p126, %p127
    %s129 = ssub.s32 %s11, %s18
    %p130 = scmp.eq.s32.totalorder %s129, 0
    %s132 = sadd.s32 %s131, 1
    %s133 = scalar_select %p130, %s131, %s132
    %p136 = pneg %p130
    %p137 = scmp.eq.s32.totalorder %s11, 1
    %p138 = por %p136, %p137
    %p139 = scmp.ne.s32.totalorder %s131, %s134
    %p140 = scmp.eq.s32.totalorder %s11, 0
    %p141 = por %p139, %p140
    %p142 = scmp.ne.s32.totalorder %s131, %s134
    %p143 = scmp.eq.s32.totalorder %s16, 1
    %p144 = por %p142, %p143
    %p145 = scmp.ne.s32.totalorder %s134, %s135
    %p146 = scmp.eq.s32.totalorder %s16, 0
    %p147 = por %p145, %p146
    %p148 = scmp.ne.s32.totalorder %s134, %s135
    %p149 = scmp.eq.s32.totalorder %s17, 1
    %p150 = por %p148, %p149
    %p152 = scmp.ne.s32.totalorder %s135, %s151
    %p153 = scmp.eq.s32.totalorder %s17, 0
    %p154 = por %p152, %p153
    %p155 = scmp.le.s32.totalorder 1, %s11
    %p156 = scmp.lt.s32.totalorder %s11, 3
    %p157 = pnand %p155, %p156
    %p158 = pneg %p157
    // Predicated region
    $region9: #{_forward.1} parent=5 // pred_check
      _
    $region10: #{_forward.1} parent=5 // pred_check_branch
      %160 = sbr.rel (%p157) target = $region12
    $region11: #{_forward.1} parent=5 // pred_region
      %s161 = ssub.s32 %s11, 1
      // Predicated region
      $region13: #{_forward.1} parent=11 // pred_check
        %p162 = pneg %p58
      $region14: #{_forward.1} parent=11 // pred_check_branch
        %164 = sbr.rel (%p162) target = $region16
      $region15: #{_forward.1} parent=11 // pred_region
        _
      $region16: #{_forward.1} parent=11 // pred_fallthru
        _
      // Predicated region
      $region17: #{_forward.1} parent=11 // pred_check
        %p165 = pneg %p79
      $region18: #{_forward.1} parent=11 // pred_check_branch
        %167 = sbr.rel (%p165) target = $region20
      $region19: #{_forward.1} parent=11 // pred_region
        _
      $region20: #{_forward.1} parent=11 // pred_fallthru
        _
      // Predicated region
      $region21: #{_forward.1} parent=11 // pred_check
        %p168 = pneg %p100
      $region22: #{_forward.1} parent=11 // pred_check_branch
        %170 = sbr.rel (%p168) target = $region24
      $region23: #{_forward.1} parent=11 // pred_region
        _
      $region24: #{_forward.1} parent=11 // pred_fallthru
        _
      // Predicated region
      $region25: #{_forward.1} parent=11 // pred_check
        %p171 = pneg %p121
      $region26: #{_forward.1} parent=11 // pred_check_branch
        %173 = sbr.rel (%p171) target = $region28
      $region27: #{_forward.1} parent=11 // pred_region
        _
      $region28: #{_forward.1} parent=11 // pred_fallthru
        _
    $region12: #{_forward.1} parent=5 // pred_fallthru
      _
    %p174 = scmp.lt.s32.totalorder %s11, 2
    // Predicated region
    $region29: #{_forward.1} parent=5 // pred_check
      %p175 = pneg %p174
    $region30: #{_forward.1} parent=5 // pred_check_branch
      %177 = sbr.rel (%p175) target = $region32
    $region31: #{_forward.1} parent=5 // pred_region
      // Predicated region
      $region33: #{_forward.1} parent=31 // pred_check
        %p178 = pneg %p31
      $region34: #{_forward.1} parent=31 // pred_check_branch
        %180 = sbr.rel (%p178) target = $region36
      $region35: #{_forward.1} parent=31 // pred_region
        %p181 = scmp.lt.s32.totalorder %s11, 1
        %s182 = scalar_select %p181, %s11, 1
        %s183 = smul.addr %s182, 3
        %s184 = scalar_lea.vmem %s0, %s183
      $region36: #{_forward.1} parent=31 // pred_fallthru
        _
    $region32: #{_forward.1} parent=5 // pred_fallthru
      _
    %p185 = scmp.le.s32.totalorder 1, %s11
    %p186 = scmp.lt.s32.totalorder %s11, 3
    %p187 = pnand %p185, %p186
    %p188 = pneg %p187
    // Predicated region
    $region37: #{_forward.1} parent=5 // pred_check
      _
    $region38: #{_forward.1} parent=5 // pred_check_branch
      %190 = sbr.rel (%p187) target = $region40
    $region39: #{_forward.1} parent=5 // pred_region
      %s191 = ssub.s32 %s11, 1
      %p192 = scmp.lt.s32.totalorder %s16, 1
      %s193 = scalar_select %p192, %s16, 1
      %s194 = smul.addr %s193, 3
      %s195 = scalar_lea.vmem %s0, %s194
      %p196 = pneg %p37
      %p197 = pneg %p34
      %p198 = pneg %p58
      %p199 = pneg %p55
      %p200 = pneg %p79
      %p201 = pneg %p76
      %p202 = pneg %p100
      %p203 = pneg %p97
      %p204 = pneg %p121
      %p205 = pneg %p118
      %p206 = pneg %p147
      %p207 = pneg %p144
      %p208 = scmp.lt.s32.totalorder %s16, 1
      %s209 = scalar_select %p208, %s16, 1
      %s210 = smul.addr %s209, 6
      %s211 = smul.addr %s210, 8
      %s212 = scalar_lea.vmem %s5, %s211
      %p213 = scmp.lt.s32.totalorder %s16, 1
      %s214 = scalar_select %p213, %s16, 1
      %s215 = smul.addr %s214, 3
      %s216 = scalar_lea.vmem %s0, %s215
      %p217 = scmp.lt.s32.totalorder %s16, 1
      %s218 = scalar_select %p217, %s16, 1
      %s219 = smul.addr %s218, 6
      %s220 = smul.addr %s219, 8
      %s221 = scalar_lea.vmem %s5, %s220
      %v222 = vld [vmem:[%s216] sm:$0x7]
      %v223 = vld [vmem:[%s2] sm:$0xff]
      %v224 = vld [vmem:[%s2 + $0x8] sm:$0xff]
      %v225 = vld [vmem:[%s2 + $0x10] sm:$0xf]
      %227 = vset.pattern.permute.xlu0 0
      %228 = vperm.xlu0 %227, %v223
      %v229 = vpop.permute.xlu0 %228
      %232 = vset.pattern.permute.xlu0 0
      %233 = vperm.xlu0 %232, %v224
      %v234 = vpop.permute.xlu0 %233
      %237 = vset.pattern.permute.xlu0 0
      %238 = vperm.xlu0 %237, %v225
      %v239 = vpop.permute.xlu0 %238
      %v241 = vld [vmem:[%s1] sm:$0xff]
      %v242 = vld [vmem:[%s1 + $0x8] sm:$0xff]
      %v243 = vld [vmem:[%s1 + $0x10] sm:$0xf]
      %245 = vset.pattern.permute.xlu0 0
      %246 = vperm.xlu0 %245, %v241
      %v247 = vpop.permute.xlu0 %246
      %250 = vset.pattern.permute.xlu0 0
      %251 = vperm.xlu0 %250, %v242
      %v252 = vpop.permute.xlu0 %251
      %255 = vset.pattern.permute.xlu0 0
      %256 = vperm.xlu0 %255, %v243
      %v257 = vpop.permute.xlu0 %256
      %v260 = vlaneseq
      %v261 = vshrl.u32 %v260, 7
      %v262 = vsub.s32 0, %v261
      %v263 = vrot.slane %v222, %v262
      %v264 = vlaneseq
      %v265 = vshrl.u32 %v264, 7
      %v266 = vsub.s32 1, %v265
      %v267 = vrot.slane %v222, %v266
      %v270 = vmul.f32 %v247, %v263
      %v271 = vmul.f32 %v247, %v267
      %v272 = vmul.f32 %v252, %v263
      %v273 = vmul.f32 %v252, %v267
      %v274 = vmul.f32 %v257, %v263
      %v275 = vmul.f32 %v257, %v267
      %v276 = vadd.f32 %v229, %v270
      %v277 = vadd.f32 %v229, %v271
      %v278 = vadd.f32 %v234, %v272
      %v279 = vadd.f32 %v234, %v273
      %v280 = vadd.f32 %v239, %v274
      %v281 = vadd.f32 %v239, %v275
      %282 = vset.pattern.permute.xlu0 1
      %283 = vperm.xlu0 %282, %v241
      %v284 = vpop.permute.xlu0 %283
      %286 = vset.pattern.permute.xlu0 1
      %287 = vperm.xlu0 %286, %v242
      %v288 = vpop.permute.xlu0 %287
      %290 = vset.pattern.permute.xlu0 1
      %291 = vperm.xlu0 %290, %v243
      %v292 = vpop.permute.xlu0 %291
      %v294 = vlaneseq
      %v295 = vshrl.u32 %v294, 7
      %v296 = vsub.s32 2, %v295
      %v297 = vrot.slane %v222, %v296
      %v299 = vmul.f32 %v284, %v263
      %v300 = vmul.f32 %v284, %v267
      %v301 = vmul.f32 %v284, %v297
      %v302 = vmul.f32 %v288, %v263
      %v303 = vmul.f32 %v288, %v267
      %v304 = vmul.f32 %v288, %v297
      %v305 = vmul.f32 %v292, %v263
      %v306 = vmul.f32 %v292, %v267
      %v307 = vmul.f32 %v292, %v297
      %317 = vrot.lane.b32.xlu0 %v299, 127
      %v318 = vpop.permute.xlu0 %317
      %319 = vrot.lane.b32.xlu0 %v300, 127
      %v320 = vpop.permute.xlu0 %319
      %321 = vrot.lane.b32.xlu0 %v301, 127
      %v322 = vpop.permute.xlu0 %321
      %323 = vrot.lane.b32.xlu0 %v302, 127
      %v324 = vpop.permute.xlu0 %323
      %325 = vrot.lane.b32.xlu0 %v303, 127
      %v326 = vpop.permute.xlu0 %325
      %327 = vrot.lane.b32.xlu0 %v304, 127
      %v328 = vpop.permute.xlu0 %327
      %329 = vrot.lane.b32.xlu0 %v305, 127
      %v330 = vpop.permute.xlu0 %329
      %331 = vrot.lane.b32.xlu0 %v306, 127
      %v332 = vpop.permute.xlu0 %331
      %333 = vrot.lane.b32.xlu0 %v307, 127
      %v334 = vpop.permute.xlu0 %333
      %vm335 = vcmask 1039360
      %v336 = vsel %vm335, %v318, %v320
      %v337 = vsel %vm335, %v320, %v322
      %v338 = vsel %vm335, %v324, %v326
      %v339 = vsel %vm335, %v326, %v328
      %v340 = vsel %vm335, %v330, %v332
      %v341 = vsel %vm335, %v332, %v334
      %v348 = vadd.f32 %v276, %v336
      %v349 = vadd.f32 %v277, %v337
      %v350 = vadd.f32 %v278, %v338
      %v351 = vadd.f32 %v279, %v339
      %v352 = vadd.f32 %v280, %v340
      %v353 = vadd.f32 %v281, %v341
      %354 = vset.pattern.permute.xlu0 2
      %355 = vperm.xlu0 %354, %v241
      %v356 = vpop.permute.xlu0 %355
      %358 = vset.pattern.permute.xlu0 2
      %359 = vperm.xlu0 %358, %v242
      %v360 = vpop.permute.xlu0 %359
      %362 = vset.pattern.permute.xlu0 2
      %363 = vperm.xlu0 %362, %v243
      %v364 = vpop.permute.xlu0 %363
      %v366 = vmul.f32 %v356, %v263
      %v367 = vmul.f32 %v356, %v267
      %v368 = vmul.f32 %v356, %v297
      %v369 = vmul.f32 %v360, %v263
      %v370 = vmul.f32 %v360, %v267
      %v371 = vmul.f32 %v360, %v297
      %v372 = vmul.f32 %v364, %v263
      %v373 = vmul.f32 %v364, %v267
      %v374 = vmul.f32 %v364, %v297
      %384 = vrot.lane.b32.xlu0 %v366, 126
      %v385 = vpop.permute.xlu0 %384
      %386 = vrot.lane.b32.xlu0 %v367, 126
      %v387 = vpop.permute.xlu0 %386
      %388 = vrot.lane.b32.xlu0 %v368, 126
      %v389 = vpop.permute.xlu0 %388
      %390 = vrot.lane.b32.xlu0 %v369, 126
      %v391 = vpop.permute.xlu0 %390
      %392 = vrot.lane.b32.xlu0 %v370, 126
      %v393 = vpop.permute.xlu0 %392
      %394 = vrot.lane.b32.xlu0 %v371, 126
      %v395 = vpop.permute.xlu0 %394
      %396 = vrot.lane.b32.xlu0 %v372, 126
      %v397 = vpop.permute.xlu0 %396
      %398 = vrot.lane.b32.xlu0 %v373, 126
      %v399 = vpop.permute.xlu0 %398
      %400 = vrot.lane.b32.xlu0 %v374, 126
      %v401 = vpop.permute.xlu0 %400
      %vm402 = vcmask 1031168
      %v403 = vsel %vm402, %v385, %v387
      %v404 = vsel %vm402, %v387, %v389
      %v405 = vsel %vm402, %v391, %v393
      %v406 = vsel %vm402, %v393, %v395
      %v407 = vsel %vm402, %v397, %v399
      %v408 = vsel %vm402, %v399, %v401
      %v415 = vadd.f32 %v348, %v403
      %v416 = vadd.f32 %v349, %v404
      %v417 = vadd.f32 %v350, %v405
      %v418 = vadd.f32 %v351, %v406
      %v419 = vadd.f32 %v352, %v407
      %v420 = vadd.f32 %v353, %v408
      %421 = vset.pattern.permute.xlu0 3
      %422 = vperm.xlu0 %421, %v241
      %v423 = vpop.permute.xlu0 %422
      %425 = vset.pattern.permute.xlu0 3
      %426 = vperm.xlu0 %425, %v242
      %v427 = vpop.permute.xlu0 %426
      %429 = vset.pattern.permute.xlu0 3
      %430 = vperm.xlu0 %429, %v243
      %v431 = vpop.permute.xlu0 %430
      %v433 = vmul.f32 %v423, %v263
      %v434 = vmul.f32 %v423, %v267
      %v435 = vmul.f32 %v423, %v297
      %v436 = vmul.f32 %v427, %v263
      %v437 = vmul.f32 %v427, %v267
      %v438 = vmul.f32 %v427, %v297
      %v439 = vmul.f32 %v431, %v263
      %v440 = vmul.f32 %v431, %v267
      %v441 = vmul.f32 %v431, %v297
      %451 = vrot.lane.b32.xlu0 %v433, 125
      %v452 = vpop.permute.xlu0 %451
      %453 = vrot.lane.b32.xlu0 %v434, 125
      %v454 = vpop.permute.xlu0 %453
      %455 = vrot.lane.b32.xlu0 %v435, 125
      %v456 = vpop.permute.xlu0 %455
      %457 = vrot.lane.b32.xlu0 %v436, 125
      %v458 = vpop.permute.xlu0 %457
      %459 = vrot.lane.b32.xlu0 %v437, 125
      %v460 = vpop.permute.xlu0 %459
      %461 = vrot.lane.b32.xlu0 %v438, 125
      %v462 = vpop.permute.xlu0 %461
      %463 = vrot.lane.b32.xlu0 %v439, 125
      %v464 = vpop.permute.xlu0 %463
      %465 = vrot.lane.b32.xlu0 %v440, 125
      %v466 = vpop.permute.xlu0 %465
      %467 = vrot.lane.b32.xlu0 %v441, 125
      %v468 = vpop.permute.xlu0 %467
      %vm469 = vcmask 1022976
      %v470 = vsel %vm469, %v452, %v454
      %v471 = vsel %vm469, %v454, %v456
      %v472 = vsel %vm469, %v458, %v460
      %v473 = vsel %vm469, %v460, %v462
      %v474 = vsel %vm469, %v464, %v466
      %v475 = vsel %vm469, %v466, %v468
      %v482 = vadd.f32 %v415, %v470
      %v483 = vadd.f32 %v416, %v471
      %v484 = vadd.f32 %v417, %v472
      %v485 = vadd.f32 %v418, %v473
      %v486 = vadd.f32 %v419, %v474
      %v487 = vadd.f32 %v420, %v475
      %488 = vset.pattern.permute.xlu0 4
      %489 = vperm.xlu0 %488, %v241
      %v490 = vpop.permute.xlu0 %489
      %492 = vset.pattern.permute.xlu0 4
      %493 = vperm.xlu0 %492, %v242
      %v494 = vpop.permute.xlu0 %493
      %496 = vset.pattern.permute.xlu0 4
      %497 = vperm.xlu0 %496, %v243
      %v498 = vpop.permute.xlu0 %497
      %v500 = vmul.f32 %v490, %v263
      %v501 = vmul.f32 %v490, %v267
      %v502 = vmul.f32 %v490, %v297
      %v503 = vmul.f32 %v494, %v263
      %v504 = vmul.f32 %v494, %v267
      %v505 = vmul.f32 %v494, %v297
      %v506 = vmul.f32 %v498, %v263
      %v507 = vmul.f32 %v498, %v267
      %v508 = vmul.f32 %v498, %v297
      %518 = vrot.lane.b32.xlu0 %v500, 124
      %v519 = vpop.permute.xlu0 %518
      %520 = vrot.lane.b32.xlu0 %v501, 124
      %v521 = vpop.permute.xlu0 %520
      %522 = vrot.lane.b32.xlu0 %v502, 124
      %v523 = vpop.permute.xlu0 %522
      %524 = vrot.lane.b32.xlu0 %v503, 124
      %v525 = vpop.permute.xlu0 %524
      %526 = vrot.lane.b32.xlu0 %v504, 124
      %v527 = vpop.permute.xlu0 %526
      %528 = vrot.lane.b32.xlu0 %v505, 124
      %v529 = vpop.permute.xlu0 %528
      %530 = vrot.lane.b32.xlu0 %v506, 124
      %v531 = vpop.permute.xlu0 %530
      %532 = vrot.lane.b32.xlu0 %v507, 124
      %v533 = vpop.permute.xlu0 %532
      %534 = vrot.lane.b32.xlu0 %v508, 124
      %v535 = vpop.permute.xlu0 %534
      %vm536 = vcmask 1014784
      %v537 = vsel %vm536, %v519, %v521
      %v538 = vsel %vm536, %v521, %v523
      %v539 = vsel %vm536, %v525, %v527
      %v540 = vsel %vm536, %v527, %v529
      %v541 = vsel %vm536, %v531, %v533
      %v542 = vsel %vm536, %v533, %v535
      %v549 = vadd.f32 %v482, %v537
      %v550 = vadd.f32 %v483, %v538
      %v551 = vadd.f32 %v484, %v539
      %v552 = vadd.f32 %v485, %v540
      %v553 = vadd.f32 %v486, %v541
      %v554 = vadd.f32 %v487, %v542
      %555 = vset.pattern.permute.xlu0 5
      %556 = vperm.xlu0 %555, %v241
      %v557 = vpop.permute.xlu0 %556
      %559 = vset.pattern.permute.xlu0 5
      %560 = vperm.xlu0 %559, %v242
      %v561 = vpop.permute.xlu0 %560
      %563 = vset.pattern.permute.xlu0 5
      %564 = vperm.xlu0 %563, %v243
      %v565 = vpop.permute.xlu0 %564
      %v567 = vmul.f32 %v557, %v263
      %v568 = vmul.f32 %v557, %v267
      %v569 = vmul.f32 %v557, %v297
      %v570 = vmul.f32 %v561, %v263
      %v571 = vmul.f32 %v561, %v267
      %v572 = vmul.f32 %v561, %v297
      %v573 = vmul.f32 %v565, %v263
      %v574 = vmul.f32 %v565, %v267
      %v575 = vmul.f32 %v565, %v297
      %585 = vrot.lane.b32.xlu0 %v567, 112
      %v586 = vpop.permute.xlu0 %585
      %587 = vrot.lane.b32.xlu0 %v568, 112
      %v588 = vpop.permute.xlu0 %587
      %589 = vrot.lane.b32.xlu0 %v569, 112
      %v590 = vpop.permute.xlu0 %589
      %591 = vrot.lane.b32.xlu0 %v570, 112
      %v592 = vpop.permute.xlu0 %591
      %593 = vrot.lane.b32.xlu0 %v571, 112
      %v594 = vpop.permute.xlu0 %593
      %595 = vrot.lane.b32.xlu0 %v572, 112
      %v596 = vpop.permute.xlu0 %595
      %597 = vrot.lane.b32.xlu0 %v573, 112
      %v598 = vpop.permute.xlu0 %597
      %599 = vrot.lane.b32.xlu0 %v574, 112
      %v600 = vpop.permute.xlu0 %599
      %601 = vrot.lane.b32.xlu0 %v575, 112
      %v602 = vpop.permute.xlu0 %601
      %vm603 = vcmask 916480
      %v604 = vsel %vm603, %v586, %v588
      %v605 = vsel %vm603, %v588, %v590
      %v606 = vsel %vm603, %v592, %v594
      %v607 = vsel %vm603, %v594, %v596
      %v608 = vsel %vm603, %v598, %v600
      %v609 = vsel %vm603, %v600, %v602
      %v616 = vadd.f32 %v549, %v604
      %v617 = vadd.f32 %v550, %v605
      %v618 = vadd.f32 %v551, %v606
      %v619 = vadd.f32 %v552, %v607
      %v620 = vadd.f32 %v553, %v608
      %v621 = vadd.f32 %v554, %v609
      %622 = vset.pattern.permute.xlu0 6
      %623 = vperm.xlu0 %622, %v241
      %v624 = vpop.permute.xlu0 %623
      %626 = vset.pattern.permute.xlu0 6
      %627 = vperm.xlu0 %626, %v242
      %v628 = vpop.permute.xlu0 %627
      %630 = vset.pattern.permute.xlu0 6
      %631 = vperm.xlu0 %630, %v243
      %v632 = vpop.permute.xlu0 %631
      %v634 = vmul.f32 %v624, %v263
      %v635 = vmul.f32 %v624, %v267
      %v636 = vmul.f32 %v624, %v297
      %v637 = vmul.f32 %v628, %v263
      %v638 = vmul.f32 %v628, %v267
      %v639 = vmul.f32 %v628, %v297
      %v640 = vmul.f32 %v632, %v263
      %v641 = vmul.f32 %v632, %v267
      %v642 = vmul.f32 %v632, %v297
      %652 = vrot.lane.b32.xlu0 %v634, 111
      %v653 = vpop.permute.xlu0 %652
      %654 = vrot.lane.b32.xlu0 %v635, 111
      %v655 = vpop.permute.xlu0 %654
      %656 = vrot.lane.b32.xlu0 %v636, 111
      %v657 = vpop.permute.xlu0 %656
      %658 = vrot.lane.b32.xlu0 %v637, 111
      %v659 = vpop.permute.xlu0 %658
      %660 = vrot.lane.b32.xlu0 %v638, 111
      %v661 = vpop.permute.xlu0 %660
      %662 = vrot.lane.b32.xlu0 %v639, 111
      %v663 = vpop.permute.xlu0 %662
      %664 = vrot.lane.b32.xlu0 %v640, 111
      %v665 = vpop.permute.xlu0 %664
      %666 = vrot.lane.b32.xlu0 %v641, 111
      %v667 = vpop.permute.xlu0 %666
      %668 = vrot.lane.b32.xlu0 %v642, 111
      %v669 = vpop.permute.xlu0 %668
      %vm670 = vcmask 908288
      %v671 = vsel %vm670, %v653, %v655
      %v672 = vsel %vm670, %v655, %v657
      %v673 = vsel %vm670, %v659, %v661
      %v674 = vsel %vm670, %v661, %v663
      %v675 = vsel %vm670, %v665, %v667
      %v676 = vsel %vm670, %v667, %v669
      %v683 = vadd.f32 %v616, %v671
      %v684 = vadd.f32 %v617, %v672
      %v685 = vadd.f32 %v618, %v673
      %v686 = vadd.f32 %v619, %v674
      %v687 = vadd.f32 %v620, %v675
      %v688 = vadd.f32 %v621, %v676
      %689 = vset.pattern.permute.xlu0 7
      %690 = vperm.xlu0 %689, %v241
      %v691 = vpop.permute.xlu0 %690
      %693 = vset.pattern.permute.xlu0 7
      %694 = vperm.xlu0 %693, %v242
      %v695 = vpop.permute.xlu0 %694
      %697 = vset.pattern.permute.xlu0 7
      %698 = vperm.xlu0 %697, %v243
      %v699 = vpop.permute.xlu0 %698
      %v701 = vmul.f32 %v691, %v263
      %v702 = vmul.f32 %v691, %v267
      %v703 = vmul.f32 %v691, %v297
      %v704 = vmul.f32 %v695, %v263
      %v705 = vmul.f32 %v695, %v267
      %v706 = vmul.f32 %v695, %v297
      %v707 = vmul.f32 %v699, %v263
      %v708 = vmul.f32 %v699, %v267
      %v709 = vmul.f32 %v699, %v297
      %719 = vrot.lane.b32.xlu0 %v701, 110
      %v720 = vpop.permute.xlu0 %719
      %721 = vrot.lane.b32.xlu0 %v702, 110
      %v722 = vpop.permute.xlu0 %721
      %723 = vrot.lane.b32.xlu0 %v703, 110
      %v724 = vpop.permute.xlu0 %723
      %725 = vrot.lane.b32.xlu0 %v704, 110
      %v726 = vpop.permute.xlu0 %725
      %727 = vrot.lane.b32.xlu0 %v705, 110
      %v728 = vpop.permute.xlu0 %727
      %729 = vrot.lane.b32.xlu0 %v706, 110
      %v730 = vpop.permute.xlu0 %729
      %731 = vrot.lane.b32.xlu0 %v707, 110
      %v732 = vpop.permute.xlu0 %731
      %733 = vrot.lane.b32.xlu0 %v708, 110
      %v734 = vpop.permute.xlu0 %733
      %735 = vrot.lane.b32.xlu0 %v709, 110
      %v736 = vpop.permute.xlu0 %735
      %vm737 = vcmask 900096
      %v738 = vsel %vm737, %v720, %v722
      %v739 = vsel %vm737, %v722, %v724
      %v740 = vsel %vm737, %v726, %v728
      %v741 = vsel %vm737, %v728, %v730
      %v742 = vsel %vm737, %v732, %v734
      %v743 = vsel %vm737, %v734, %v736
      %v750 = vadd.f32 %v683, %v738
      %v751 = vadd.f32 %v684, %v739
      %v752 = vadd.f32 %v685, %v740
      %v753 = vadd.f32 %v686, %v741
      %v754 = vadd.f32 %v687, %v742
      %v755 = vadd.f32 %v688, %v743
      %756 = vset.pattern.permute.xlu0 8
      %757 = vperm.xlu0 %756, %v241
      %v758 = vpop.permute.xlu0 %757
      %760 = vset.pattern.permute.xlu0 8
      %761 = vperm.xlu0 %760, %v242
      %v762 = vpop.permute.xlu0 %761
      %764 = vset.pattern.permute.xlu0 8
      %765 = vperm.xlu0 %764, %v243
      %v766 = vpop.permute.xlu0 %765
      %v768 = vmul.f32 %v758, %v263
      %v769 = vmul.f32 %v758, %v267
      %v770 = vmul.f32 %v758, %v297
      %v771 = vmul.f32 %v762, %v263
      %v772 = vmul.f32 %v762, %v267
      %v773 = vmul.f32 %v762, %v297
      %v774 = vmul.f32 %v766, %v263
      %v775 = vmul.f32 %v766, %v267
      %v776 = vmul.f32 %v766, %v297
      %786 = vrot.lane.b32.xlu0 %v768, 109
      %v787 = vpop.permute.xlu0 %786
      %788 = vrot.lane.b32.xlu0 %v769, 109
      %v789 = vpop.permute.xlu0 %788
      %790 = vrot.lane.b32.xlu0 %v770, 109
      %v791 = vpop.permute.xlu0 %790
      %792 = vrot.lane.b32.xlu0 %v771, 109
      %v793 = vpop.permute.xlu0 %792
      %794 = vrot.lane.b32.xlu0 %v772, 109
      %v795 = vpop.permute.xlu0 %794
      %796 = vrot.lane.b32.xlu0 %v773, 109
      %v797 = vpop.permute.xlu0 %796
      %798 = vrot.lane.b32.xlu0 %v774, 109
      %v799 = vpop.permute.xlu0 %798
      %800 = vrot.lane.b32.xlu0 %v775, 109
      %v801 = vpop.permute.xlu0 %800
      %802 = vrot.lane.b32.xlu0 %v776, 109
      %v803 = vpop.permute.xlu0 %802
      %vm804 = vcmask 891904
      %v805 = vsel %vm804, %v787, %v789
      %v806 = vsel %vm804, %v789, %v791
      %v807 = vsel %vm804, %v793, %v795
      %v808 = vsel %vm804, %v795, %v797
      %v809 = vsel %vm804, %v799, %v801
      %v810 = vsel %vm804, %v801, %v803
      %v817 = vadd.f32 %v750, %v805
      %v818 = vadd.f32 %v751, %v806
      %v819 = vadd.f32 %v752, %v807
      %v820 = vadd.f32 %v753, %v808
      %v821 = vadd.f32 %v754, %v809
      %v822 = vadd.f32 %v755, %v810
      %823 = vset.pattern.permute.xlu0 9
      %824 = vperm.xlu0 %823, %v241
      %v825 = vpop.permute.xlu0 %824
      %827 = vset.pattern.permute.xlu0 9
      %828 = vperm.xlu0 %827, %v242
      %v829 = vpop.permute.xlu0 %828
      %831 = vset.pattern.permute.xlu0 9
      %832 = vperm.xlu0 %831, %v243
      %v833 = vpop.permute.xlu0 %832
      %v835 = vmul.f32 %v825, %v263
      %v836 = vmul.f32 %v825, %v267
      %v837 = vmul.f32 %v825, %v297
      %v838 = vmul.f32 %v829, %v263
      %v839 = vmul.f32 %v829, %v267
      %v840 = vmul.f32 %v829, %v297
      %v841 = vmul.f32 %v833, %v263
      %v842 = vmul.f32 %v833, %v267
      %v843 = vmul.f32 %v833, %v297
      %853 = vrot.lane.b32.xlu0 %v835, 108
      %v854 = vpop.permute.xlu0 %853
      %855 = vrot.lane.b32.xlu0 %v836, 108
      %v856 = vpop.permute.xlu0 %855
      %857 = vrot.lane.b32.xlu0 %v837, 108
      %v858 = vpop.permute.xlu0 %857
      %859 = vrot.lane.b32.xlu0 %v838, 108
      %v860 = vpop.permute.xlu0 %859
      %861 = vrot.lane.b32.xlu0 %v839, 108
      %v862 = vpop.permute.xlu0 %861
      %863 = vrot.lane.b32.xlu0 %v840, 108
      %v864 = vpop.permute.xlu0 %863
      %865 = vrot.lane.b32.xlu0 %v841, 108
      %v866 = vpop.permute.xlu0 %865
      %867 = vrot.lane.b32.xlu0 %v842, 108
      %v868 = vpop.permute.xlu0 %867
      %869 = vrot.lane.b32.xlu0 %v843, 108
      %v870 = vpop.permute.xlu0 %869
      %vm871 = vcmask 883712
      %v872 = vsel %vm871, %v854, %v856
      %v873 = vsel %vm871, %v856, %v858
      %v874 = vsel %vm871, %v860, %v862
      %v875 = vsel %vm871, %v862, %v864
      %v876 = vsel %vm871, %v866, %v868
      %v877 = vsel %vm871, %v868, %v870
      %v884 = vadd.f32 %v817, %v872
      %v885 = vadd.f32 %v818, %v873
      %v886 = vadd.f32 %v819, %v874
      %v887 = vadd.f32 %v820, %v875
      %v888 = vadd.f32 %v821, %v876
      %v889 = vadd.f32 %v822, %v877
      %890 = vset.pattern.permute.xlu0 10
      %891 = vperm.xlu0 %890, %v241
      %v892 = vpop.permute.xlu0 %891
      %894 = vset.pattern.permute.xlu0 10
      %895 = vperm.xlu0 %894, %v242
      %v896 = vpop.permute.xlu0 %895
      %898 = vset.pattern.permute.xlu0 10
      %899 = vperm.xlu0 %898, %v243
      %v900 = vpop.permute.xlu0 %899
      %v902 = vmul.f32 %v892, %v263
      %v903 = vmul.f32 %v892, %v267
      %v904 = vmul.f32 %v892, %v297
      %v905 = vmul.f32 %v896, %v263
      %v906 = vmul.f32 %v896, %v267
      %v907 = vmul.f32 %v896, %v297
      %v908 = vmul.f32 %v900, %v263
      %v909 = vmul.f32 %v900, %v267
      %v910 = vmul.f32 %v900, %v297
      %920 = vrot.lane.b32.xlu0 %v902, 96
      %v921 = vpop.permute.xlu0 %920
      %922 = vrot.lane.b32.xlu0 %v903, 96
      %v923 = vpop.permute.xlu0 %922
      %924 = vrot.lane.b32.xlu0 %v904, 96
      %v925 = vpop.permute.xlu0 %924
      %926 = vrot.lane.b32.xlu0 %v905, 96
      %v927 = vpop.permute.xlu0 %926
      %928 = vrot.lane.b32.xlu0 %v906, 96
      %v929 = vpop.permute.xlu0 %928
      %930 = vrot.lane.b32.xlu0 %v907, 96
      %v931 = vpop.permute.xlu0 %930
      %932 = vrot.lane.b32.xlu0 %v908, 96
      %v933 = vpop.permute.xlu0 %932
      %934 = vrot.lane.b32.xlu0 %v909, 96
      %v935 = vpop.permute.xlu0 %934
      %936 = vrot.lane.b32.xlu0 %v910, 96
      %v937 = vpop.permute.xlu0 %936
      %vm938 = vcmask 785408
      %v939 = vsel %vm938, %v921, %v923
      %v940 = vsel %vm938, %v923, %v925
      %v941 = vsel %vm938, %v927, %v929
      %v942 = vsel %vm938, %v929, %v931
      %v943 = vsel %vm938, %v933, %v935
      %v944 = vsel %vm938, %v935, %v937
      %v951 = vadd.f32 %v884, %v939
      %v952 = vadd.f32 %v885, %v940
      %v953 = vadd.f32 %v886, %v941
      %v954 = vadd.f32 %v887, %v942
      %v955 = vadd.f32 %v888, %v943
      %v956 = vadd.f32 %v889, %v944
      %957 = vset.pattern.permute.xlu0 11
      %958 = vperm.xlu0 %957, %v241
      %v959 = vpop.permute.xlu0 %958
      %961 = vset.pattern.permute.xlu0 11
      %962 = vperm.xlu0 %961, %v242
      %v963 = vpop.permute.xlu0 %962
      %965 = vset.pattern.permute.xlu0 11
      %966 = vperm.xlu0 %965, %v243
      %v967 = vpop.permute.xlu0 %966
      %v969 = vmul.f32 %v959, %v263
      %v970 = vmul.f32 %v959, %v267
      %v971 = vmul.f32 %v959, %v297
      %v972 = vmul.f32 %v963, %v263
      %v973 = vmul.f32 %v963, %v267
      %v974 = vmul.f32 %v963, %v297
      %v975 = vmul.f32 %v967, %v263
      %v976 = vmul.f32 %v967, %v267
      %v977 = vmul.f32 %v967, %v297
      %987 = vrot.lane.b32.xlu0 %v969, 95
      %v988 = vpop.permute.xlu0 %987
      %989 = vrot.lane.b32.xlu0 %v970, 95
      %v990 = vpop.permute.xlu0 %989
      %991 = vrot.lane.b32.xlu0 %v971, 95
      %v992 = vpop.permute.xlu0 %991
      %993 = vrot.lane.b32.xlu0 %v972, 95
      %v994 = vpop.permute.xlu0 %993
      %995 = vrot.lane.b32.xlu0 %v973, 95
      %v996 = vpop.permute.xlu0 %995
      %997 = vrot.lane.b32.xlu0 %v974, 95
      %v998 = vpop.permute.xlu0 %997
      %999 = vrot.lane.b32.xlu0 %v975, 95
      %v1000 = vpop.permute.xlu0 %999
      %1001 = vrot.lane.b32.xlu0 %v976, 95
      %v1002 = vpop.permute.xlu0 %1001
      %1003 = vrot.lane.b32.xlu0 %v977, 95
      %v1004 = vpop.permute.xlu0 %1003
      %vm1005 = vcmask 777216
      %v1006 = vsel %vm1005, %v988, %v990
      %v1007 = vsel %vm1005, %v990, %v992
      %v1008 = vsel %vm1005, %v994, %v996
      %v1009 = vsel %vm1005, %v996, %v998
      %v1010 = vsel %vm1005, %v1000, %v1002
      %v1011 = vsel %vm1005, %v1002, %v1004
      %v1018 = vadd.f32 %v951, %v1006
      %v1019 = vadd.f32 %v952, %v1007
      %v1020 = vadd.f32 %v953, %v1008
      %v1021 = vadd.f32 %v954, %v1009
      %v1022 = vadd.f32 %v955, %v1010
      %v1023 = vadd.f32 %v956, %v1011
      %1024 = vset.pattern.permute.xlu0 12
      %1025 = vperm.xlu0 %1024, %v241
      %v1026 = vpop.permute.xlu0 %1025
      %1028 = vset.pattern.permute.xlu0 12
      %1029 = vperm.xlu0 %1028, %v242
      %v1030 = vpop.permute.xlu0 %1029
      %1032 = vset.pattern.permute.xlu0 12
      %1033 = vperm.xlu0 %1032, %v243
      %v1034 = vpop.permute.xlu0 %1033
      %v1036 = vmul.f32 %v1026, %v263
      %v1037 = vmul.f32 %v1026, %v267
      %v1038 = vmul.f32 %v1026, %v297
      %v1039 = vmul.f32 %v1030, %v263
      %v1040 = vmul.f32 %v1030, %v267
      %v1041 = vmul.f32 %v1030, %v297
      %v1042 = vmul.f32 %v1034, %v263
      %v1043 = vmul.f32 %v1034, %v267
      %v1044 = vmul.f32 %v1034, %v297
      %1054 = vrot.lane.b32.xlu0 %v1036, 94
      %v1055 = vpop.permute.xlu0 %1054
      %1056 = vrot.lane.b32.xlu0 %v1037, 94
      %v1057 = vpop.permute.xlu0 %1056
      %1058 = vrot.lane.b32.xlu0 %v1038, 94
      %v1059 = vpop.permute.xlu0 %1058
      %1060 = vrot.lane.b32.xlu0 %v1039, 94
      %v1061 = vpop.permute.xlu0 %1060
      %1062 = vrot.lane.b32.xlu0 %v1040, 94
      %v1063 = vpop.permute.xlu0 %1062
      %1064 = vrot.lane.b32.xlu0 %v1041, 94
      %v1065 = vpop.permute.xlu0 %1064
      %1066 = vrot.lane.b32.xlu0 %v1042, 94
      %v1067 = vpop.permute.xlu0 %1066
      %1068 = vrot.lane.b32.xlu0 %v1043, 94
      %v1069 = vpop.permute.xlu0 %1068
      %1070 = vrot.lane.b32.xlu0 %v1044, 94
      %v1071 = vpop.permute.xlu0 %1070
      %vm1072 = vcmask 769024
      %v1073 = vsel %vm1072, %v1055, %v1057
      %v1074 = vsel %vm1072, %v1057, %v1059
      %v1075 = vsel %vm1072, %v1061, %v1063
      %v1076 = vsel %vm1072, %v1063, %v1065
      %v1077 = vsel %vm1072, %v1067, %v1069
      %v1078 = vsel %vm1072, %v1069, %v1071
      %v1085 = vadd.f32 %v1018, %v1073
      %v1086 = vadd.f32 %v1019, %v1074
      %v1087 = vadd.f32 %v1020, %v1075
      %v1088 = vadd.f32 %v1021, %v1076
      %v1089 = vadd.f32 %v1022, %v1077
      %v1090 = vadd.f32 %v1023, %v1078
      %1091 = vset.pattern.permute.xlu0 13
      %1092 = vperm.xlu0 %1091, %v241
      %v1093 = vpop.permute.xlu0 %1092
      %1095 = vset.pattern.permute.xlu0 13
      %1096 = vperm.xlu0 %1095, %v242
      %v1097 = vpop.permute.xlu0 %1096
      %1099 = vset.pattern.permute.xlu0 13
      %1100 = vperm.xlu0 %1099, %v243
      %v1101 = vpop.permute.xlu0 %1100
      %v1103 = vmul.f32 %v1093, %v263
      %v1104 = vmul.f32 %v1093, %v267
      %v1105 = vmul.f32 %v1093, %v297
      %v1106 = vmul.f32 %v1097, %v263
      %v1107 = vmul.f32 %v1097, %v267
      %v1108 = vmul.f32 %v1097, %v297
      %v1109 = vmul.f32 %v1101, %v263
      %v1110 = vmul.f32 %v1101, %v267
      %v1111 = vmul.f32 %v1101, %v297
      %1121 = vrot.lane.b32.xlu0 %v1103, 93
      %v1122 = vpop.permute.xlu0 %1121
      %1123 = vrot.lane.b32.xlu0 %v1104, 93
      %v1124 = vpop.permute.xlu0 %1123
      %1125 = vrot.lane.b32.xlu0 %v1105, 93
      %v1126 = vpop.permute.xlu0 %1125
      %1127 = vrot.lane.b32.xlu0 %v1106, 93
      %v1128 = vpop.permute.xlu0 %1127
      %1129 = vrot.lane.b32.xlu0 %v1107, 93
      %v1130 = vpop.permute.xlu0 %1129
      %1131 = vrot.lane.b32.xlu0 %v1108, 93
      %v1132 = vpop.permute.xlu0 %1131
      %1133 = vrot.lane.b32.xlu0 %v1109, 93
      %v1134 = vpop.permute.xlu0 %1133
      %1135 = vrot.lane.b32.xlu0 %v1110, 93
      %v1136 = vpop.permute.xlu0 %1135
      %1137 = vrot.lane.b32.xlu0 %v1111, 93
      %v1138 = vpop.permute.xlu0 %1137
      %vm1139 = vcmask 760832
      %v1140 = vsel %vm1139, %v1122, %v1124
      %v1141 = vsel %vm1139, %v1124, %v1126
      %v1142 = vsel %vm1139, %v1128, %v1130
      %v1143 = vsel %vm1139, %v1130, %v1132
      %v1144 = vsel %vm1139, %v1134, %v1136
      %v1145 = vsel %vm1139, %v1136, %v1138
      %v1152 = vadd.f32 %v1085, %v1140
      %v1153 = vadd.f32 %v1086, %v1141
      %v1154 = vadd.f32 %v1087, %v1142
      %v1155 = vadd.f32 %v1088, %v1143
      %v1156 = vadd.f32 %v1089, %v1144
      %v1157 = vadd.f32 %v1090, %v1145
      %1158 = vset.pattern.permute.xlu0 14
      %1159 = vperm.xlu0 %1158, %v241
      %v1160 = vpop.permute.xlu0 %1159
      %1162 = vset.pattern.permute.xlu0 14
      %1163 = vperm.xlu0 %1162, %v242
      %v1164 = vpop.permute.xlu0 %1163
      %1166 = vset.pattern.permute.xlu0 14
      %1167 = vperm.xlu0 %1166, %v243
      %v1168 = vpop.permute.xlu0 %1167
      %v1170 = vmul.f32 %v1160, %v263
      %v1171 = vmul.f32 %v1160, %v267
      %v1172 = vmul.f32 %v1160, %v297
      %v1173 = vmul.f32 %v1164, %v263
      %v1174 = vmul.f32 %v1164, %v267
      %v1175 = vmul.f32 %v1164, %v297
      %v1176 = vmul.f32 %v1168, %v263
      %v1177 = vmul.f32 %v1168, %v267
      %v1178 = vmul.f32 %v1168, %v297
      %1188 = vrot.lane.b32.xlu0 %v1170, 92
      %v1189 = vpop.permute.xlu0 %1188
      %1190 = vrot.lane.b32.xlu0 %v1171, 92
      %v1191 = vpop.permute.xlu0 %1190
      %1192 = vrot.lane.b32.xlu0 %v1172, 92
      %v1193 = vpop.permute.xlu0 %1192
      %1194 = vrot.lane.b32.xlu0 %v1173, 92
      %v1195 = vpop.permute.xlu0 %1194
      %1196 = vrot.lane.b32.xlu0 %v1174, 92
      %v1197 = vpop.permute.xlu0 %1196
      %1198 = vrot.lane.b32.xlu0 %v1175, 92
      %v1199 = vpop.permute.xlu0 %1198
      %1200 = vrot.lane.b32.xlu0 %v1176, 92
      %v1201 = vpop.permute.xlu0 %1200
      %1202 = vrot.lane.b32.xlu0 %v1177, 92
      %v1203 = vpop.permute.xlu0 %1202
      %1204 = vrot.lane.b32.xlu0 %v1178, 92
      %v1205 = vpop.permute.xlu0 %1204
      %vm1206 = vcmask 752640
      %v1207 = vsel %vm1206, %v1189, %v1191
      %v1208 = vsel %vm1206, %v1191, %v1193
      %v1209 = vsel %vm1206, %v1195, %v1197
      %v1210 = vsel %vm1206, %v1197, %v1199
      %v1211 = vsel %vm1206, %v1201, %v1203
      %v1212 = vsel %vm1206, %v1203, %v1205
      %v1219 = vadd.f32 %v1152, %v1207
      %v1220 = vadd.f32 %v1153, %v1208
      %v1221 = vadd.f32 %v1154, %v1209
      %v1222 = vadd.f32 %v1155, %v1210
      %v1223 = vadd.f32 %v1156, %v1211
      %v1224 = vadd.f32 %v1157, %v1212
      %1225 = vset.pattern.permute.xlu0 15
      %1226 = vperm.xlu0 %1225, %v241
      %v1227 = vpop.permute.xlu0 %1226
      %1229 = vset.pattern.permute.xlu0 15
      %1230 = vperm.xlu0 %1229, %v242
      %v1231 = vpop.permute.xlu0 %1230
      %1233 = vset.pattern.permute.xlu0 15
      %1234 = vperm.xlu0 %1233, %v243
      %v1235 = vpop.permute.xlu0 %1234
      %v1237 = vmul.f32 %v1227, %v263
      %v1238 = vmul.f32 %v1227, %v267
      %v1239 = vmul.f32 %v1227, %v297
      %v1240 = vmul.f32 %v1231, %v263
      %v1241 = vmul.f32 %v1231, %v267
      %v1242 = vmul.f32 %v1231, %v297
      %v1243 = vmul.f32 %v1235, %v263
      %v1244 = vmul.f32 %v1235, %v267
      %v1245 = vmul.f32 %v1235, %v297
      %1255 = vrot.lane.b32.xlu0 %v1237, 80
      %v1256 = vpop.permute.xlu0 %1255
      %1257 = vrot.lane.b32.xlu0 %v1238, 80
      %v1258 = vpop.permute.xlu0 %1257
      %1259 = vrot.lane.b32.xlu0 %v1239, 80
      %v1260 = vpop.permute.xlu0 %1259
      %1261 = vrot.lane.b32.xlu0 %v1240, 80
      %v1262 = vpop.permute.xlu0 %1261
      %1263 = vrot.lane.b32.xlu0 %v1241, 80
      %v1264 = vpop.permute.xlu0 %1263
      %1265 = vrot.lane.b32.xlu0 %v1242, 80
      %v1266 = vpop.permute.xlu0 %1265
      %1267 = vrot.lane.b32.xlu0 %v1243, 80
      %v1268 = vpop.permute.xlu0 %1267
      %1269 = vrot.lane.b32.xlu0 %v1244, 80
      %v1270 = vpop.permute.xlu0 %1269
      %1271 = vrot.lane.b32.xlu0 %v1245, 80
      %v1272 = vpop.permute.xlu0 %1271
      %vm1273 = vcmask 654336
      %v1274 = vsel %vm1273, %v1256, %v1258
      %v1275 = vsel %vm1273, %v1258, %v1260
      %v1276 = vsel %vm1273, %v1262, %v1264
      %v1277 = vsel %vm1273, %v1264, %v1266
      %v1278 = vsel %vm1273, %v1268, %v1270
      %v1279 = vsel %vm1273, %v1270, %v1272
      %v1286 = vadd.f32 %v1219, %v1274
      %v1287 = vadd.f32 %v1220, %v1275
      %v1288 = vadd.f32 %v1221, %v1276
      %v1289 = vadd.f32 %v1222, %v1277
      %v1290 = vadd.f32 %v1223, %v1278
      %v1291 = vadd.f32 %v1224, %v1279
      %1292 = vset.pattern.permute.xlu0 16
      %1293 = vperm.xlu0 %1292, %v241
      %v1294 = vpop.permute.xlu0 %1293
      %1296 = vset.pattern.permute.xlu0 16
      %1297 = vperm.xlu0 %1296, %v242
      %v1298 = vpop.permute.xlu0 %1297
      %1300 = vset.pattern.permute.xlu0 16
      %1301 = vperm.xlu0 %1300, %v243
      %v1302 = vpop.permute.xlu0 %1301
      %v1304 = vmul.f32 %v1294, %v263
      %v1305 = vmul.f32 %v1294, %v267
      %v1306 = vmul.f32 %v1294, %v297
      %v1307 = vmul.f32 %v1298, %v263
      %v1308 = vmul.f32 %v1298, %v267
      %v1309 = vmul.f32 %v1298, %v297
      %v1310 = vmul.f32 %v1302, %v263
      %v1311 = vmul.f32 %v1302, %v267
      %v1312 = vmul.f32 %v1302, %v297
      %1322 = vrot.lane.b32.xlu0 %v1304, 79
      %v1323 = vpop.permute.xlu0 %1322
      %1324 = vrot.lane.b32.xlu0 %v1305, 79
      %v1325 = vpop.permute.xlu0 %1324
      %1326 = vrot.lane.b32.xlu0 %v1306, 79
      %v1327 = vpop.permute.xlu0 %1326
      %1328 = vrot.lane.b32.xlu0 %v1307, 79
      %v1329 = vpop.permute.xlu0 %1328
      %1330 = vrot.lane.b32.xlu0 %v1308, 79
      %v1331 = vpop.permute.xlu0 %1330
      %1332 = vrot.lane.b32.xlu0 %v1309, 79
      %v1333 = vpop.permute.xlu0 %1332
      %1334 = vrot.lane.b32.xlu0 %v1310, 79
      %v1335 = vpop.permute.xlu0 %1334
      %1336 = vrot.lane.b32.xlu0 %v1311, 79
      %v1337 = vpop.permute.xlu0 %1336
      %1338 = vrot.lane.b32.xlu0 %v1312, 79
      %v1339 = vpop.permute.xlu0 %1338
      %vm1340 = vcmask 646144
      %v1341 = vsel %vm1340, %v1323, %v1325
      %v1342 = vsel %vm1340, %v1325, %v1327
      %v1343 = vsel %vm1340, %v1329, %v1331
      %v1344 = vsel %vm1340, %v1331, %v1333
      %v1345 = vsel %vm1340, %v1335, %v1337
      %v1346 = vsel %vm1340, %v1337, %v1339
      %v1353 = vadd.f32 %v1286, %v1341
      %v1354 = vadd.f32 %v1287, %v1342
      %v1355 = vadd.f32 %v1288, %v1343
      %v1356 = vadd.f32 %v1289, %v1344
      %v1357 = vadd.f32 %v1290, %v1345
      %v1358 = vadd.f32 %v1291, %v1346
      %1359 = vset.pattern.permute.xlu0 17
      %1360 = vperm.xlu0 %1359, %v241
      %v1361 = vpop.permute.xlu0 %1360
      %1363 = vset.pattern.permute.xlu0 17
      %1364 = vperm.xlu0 %1363, %v242
      %v1365 = vpop.permute.xlu0 %1364
      %1367 = vset.pattern.permute.xlu0 17
      %1368 = vperm.xlu0 %1367, %v243
      %v1369 = vpop.permute.xlu0 %1368
      %v1371 = vmul.f32 %v1361, %v263
      %v1372 = vmul.f32 %v1361, %v267
      %v1373 = vmul.f32 %v1361, %v297
      %v1374 = vmul.f32 %v1365, %v263
      %v1375 = vmul.f32 %v1365, %v267
      %v1376 = vmul.f32 %v1365, %v297
      %v1377 = vmul.f32 %v1369, %v263
      %v1378 = vmul.f32 %v1369, %v267
      %v1379 = vmul.f32 %v1369, %v297
      %1389 = vrot.lane.b32.xlu0 %v1371, 78
      %v1390 = vpop.permute.xlu0 %1389
      %1391 = vrot.lane.b32.xlu0 %v1372, 78
      %v1392 = vpop.permute.xlu0 %1391
      %1393 = vrot.lane.b32.xlu0 %v1373, 78
      %v1394 = vpop.permute.xlu0 %1393
      %1395 = vrot.lane.b32.xlu0 %v1374, 78
      %v1396 = vpop.permute.xlu0 %1395
      %1397 = vrot.lane.b32.xlu0 %v1375, 78
      %v1398 = vpop.permute.xlu0 %1397
      %1399 = vrot.lane.b32.xlu0 %v1376, 78
      %v1400 = vpop.permute.xlu0 %1399
      %1401 = vrot.lane.b32.xlu0 %v1377, 78
      %v1402 = vpop.permute.xlu0 %1401
      %1403 = vrot.lane.b32.xlu0 %v1378, 78
      %v1404 = vpop.permute.xlu0 %1403
      %1405 = vrot.lane.b32.xlu0 %v1379, 78
      %v1406 = vpop.permute.xlu0 %1405
      %vm1407 = vcmask 637952
      %v1408 = vsel %vm1407, %v1390, %v1392
      %v1409 = vsel %vm1407, %v1392, %v1394
      %v1410 = vsel %vm1407, %v1396, %v1398
      %v1411 = vsel %vm1407, %v1398, %v1400
      %v1412 = vsel %vm1407, %v1402, %v1404
      %v1413 = vsel %vm1407, %v1404, %v1406
      %v1420 = vadd.f32 %v1353, %v1408
      %v1421 = vadd.f32 %v1354, %v1409
      %v1422 = vadd.f32 %v1355, %v1410
      %v1423 = vadd.f32 %v1356, %v1411
      %v1424 = vadd.f32 %v1357, %v1412
      %v1425 = vadd.f32 %v1358, %v1413
      %1426 = vset.pattern.permute.xlu0 18
      %1427 = vperm.xlu0 %1426, %v241
      %v1428 = vpop.permute.xlu0 %1427
      %1430 = vset.pattern.permute.xlu0 18
      %1431 = vperm.xlu0 %1430, %v242
      %v1432 = vpop.permute.xlu0 %1431
      %1434 = vset.pattern.permute.xlu0 18
      %1435 = vperm.xlu0 %1434, %v243
      %v1436 = vpop.permute.xlu0 %1435
      %v1438 = vmul.f32 %v1428, %v263
      %v1439 = vmul.f32 %v1428, %v267
      %v1440 = vmul.f32 %v1428, %v297
      %v1441 = vmul.f32 %v1432, %v263
      %v1442 = vmul.f32 %v1432, %v267
      %v1443 = vmul.f32 %v1432, %v297
      %v1444 = vmul.f32 %v1436, %v263
      %v1445 = vmul.f32 %v1436, %v267
      %v1446 = vmul.f32 %v1436, %v297
      %1456 = vrot.lane.b32.xlu0 %v1438, 77
      %v1457 = vpop.permute.xlu0 %1456
      %1458 = vrot.lane.b32.xlu0 %v1439, 77
      %v1459 = vpop.permute.xlu0 %1458
      %1460 = vrot.lane.b32.xlu0 %v1440, 77
      %v1461 = vpop.permute.xlu0 %1460
      %1462 = vrot.lane.b32.xlu0 %v1441, 77
      %v1463 = vpop.permute.xlu0 %1462
      %1464 = vrot.lane.b32.xlu0 %v1442, 77
      %v1465 = vpop.permute.xlu0 %1464
      %1466 = vrot.lane.b32.xlu0 %v1443, 77
      %v1467 = vpop.permute.xlu0 %1466
      %1468 = vrot.lane.b32.xlu0 %v1444, 77
      %v1469 = vpop.permute.xlu0 %1468
      %1470 = vrot.lane.b32.xlu0 %v1445, 77
      %v1471 = vpop.permute.xlu0 %1470
      %1472 = vrot.lane.b32.xlu0 %v1446, 77
      %v1473 = vpop.permute.xlu0 %1472
      %vm1474 = vcmask 629760
      %v1475 = vsel %vm1474, %v1457, %v1459
      %v1476 = vsel %vm1474, %v1459, %v1461
      %v1477 = vsel %vm1474, %v1463, %v1465
      %v1478 = vsel %vm1474, %v1465, %v1467
      %v1479 = vsel %vm1474, %v1469, %v1471
      %v1480 = vsel %vm1474, %v1471, %v1473
      %v1487 = vadd.f32 %v1420, %v1475
      %v1488 = vadd.f32 %v1421, %v1476
      %v1489 = vadd.f32 %v1422, %v1477
      %v1490 = vadd.f32 %v1423, %v1478
      %v1491 = vadd.f32 %v1424, %v1479
      %v1492 = vadd.f32 %v1425, %v1480
      %1493 = vset.pattern.permute.xlu0 19
      %1494 = vperm.xlu0 %1493, %v241
      %v1495 = vpop.permute.xlu0 %1494
      %1497 = vset.pattern.permute.xlu0 19
      %1498 = vperm.xlu0 %1497, %v242
      %v1499 = vpop.permute.xlu0 %1498
      %1501 = vset.pattern.permute.xlu0 19
      %1502 = vperm.xlu0 %1501, %v243
      %v1503 = vpop.permute.xlu0 %1502
      %v1505 = vmul.f32 %v1495, %v263
      %v1506 = vmul.f32 %v1495, %v267
      %v1507 = vmul.f32 %v1495, %v297
      %v1508 = vmul.f32 %v1499, %v263
      %v1509 = vmul.f32 %v1499, %v267
      %v1510 = vmul.f32 %v1499, %v297
      %v1511 = vmul.f32 %v1503, %v263
      %v1512 = vmul.f32 %v1503, %v267
      %v1513 = vmul.f32 %v1503, %v297
      %1523 = vrot.lane.b32.xlu0 %v1505, 76
      %v1524 = vpop.permute.xlu0 %1523
      %1525 = vrot.lane.b32.xlu0 %v1506, 76
      %v1526 = vpop.permute.xlu0 %1525
      %1527 = vrot.lane.b32.xlu0 %v1507, 76
      %v1528 = vpop.permute.xlu0 %1527
      %1529 = vrot.lane.b32.xlu0 %v1508, 76
      %v1530 = vpop.permute.xlu0 %1529
      %1531 = vrot.lane.b32.xlu0 %v1509, 76
      %v1532 = vpop.permute.xlu0 %1531
      %1533 = vrot.lane.b32.xlu0 %v1510, 76
      %v1534 = vpop.permute.xlu0 %1533
      %1535 = vrot.lane.b32.xlu0 %v1511, 76
      %v1536 = vpop.permute.xlu0 %1535
      %1537 = vrot.lane.b32.xlu0 %v1512, 76
      %v1538 = vpop.permute.xlu0 %1537
      %1539 = vrot.lane.b32.xlu0 %v1513, 76
      %v1540 = vpop.permute.xlu0 %1539
      %vm1541 = vcmask 621568
      %v1542 = vsel %vm1541, %v1524, %v1526
      %v1543 = vsel %vm1541, %v1526, %v1528
      %v1544 = vsel %vm1541, %v1530, %v1532
      %v1545 = vsel %vm1541, %v1532, %v1534
      %v1546 = vsel %vm1541, %v1536, %v1538
      %v1547 = vsel %vm1541, %v1538, %v1540
      %v1554 = vadd.f32 %v1487, %v1542
      %v1555 = vadd.f32 %v1488, %v1543
      %v1556 = vadd.f32 %v1489, %v1544
      %v1557 = vadd.f32 %v1490, %v1545
      %v1558 = vadd.f32 %v1491, %v1546
      %v1559 = vadd.f32 %v1492, %v1547
      %1560 = vset.pattern.permute.xlu0 20
      %1561 = vperm.xlu0 %1560, %v241
      %v1562 = vpop.permute.xlu0 %1561
      %1564 = vset.pattern.permute.xlu0 20
      %1565 = vperm.xlu0 %1564, %v242
      %v1566 = vpop.permute.xlu0 %1565
      %1568 = vset.pattern.permute.xlu0 20
      %1569 = vperm.xlu0 %1568, %v243
      %v1570 = vpop.permute.xlu0 %1569
      %v1572 = vmul.f32 %v1562, %v263
      %v1573 = vmul.f32 %v1562, %v267
      %v1574 = vmul.f32 %v1562, %v297
      %v1575 = vmul.f32 %v1566, %v263
      %v1576 = vmul.f32 %v1566, %v267
      %v1577 = vmul.f32 %v1566, %v297
      %v1578 = vmul.f32 %v1570, %v263
      %v1579 = vmul.f32 %v1570, %v267
      %v1580 = vmul.f32 %v1570, %v297
      %1590 = vrot.lane.b32.xlu0 %v1572, 64
      %v1591 = vpop.permute.xlu0 %1590
      %1592 = vrot.lane.b32.xlu0 %v1573, 64
      %v1593 = vpop.permute.xlu0 %1592
      %1594 = vrot.lane.b32.xlu0 %v1574, 64
      %v1595 = vpop.permute.xlu0 %1594
      %1596 = vrot.lane.b32.xlu0 %v1575, 64
      %v1597 = vpop.permute.xlu0 %1596
      %1598 = vrot.lane.b32.xlu0 %v1576, 64
      %v1599 = vpop.permute.xlu0 %1598
      %1600 = vrot.lane.b32.xlu0 %v1577, 64
      %v1601 = vpop.permute.xlu0 %1600
      %1602 = vrot.lane.b32.xlu0 %v1578, 64
      %v1603 = vpop.permute.xlu0 %1602
      %1604 = vrot.lane.b32.xlu0 %v1579, 64
      %v1605 = vpop.permute.xlu0 %1604
      %1606 = vrot.lane.b32.xlu0 %v1580, 64
      %v1607 = vpop.permute.xlu0 %1606
      %vm1608 = vcmask 523264
      %v1609 = vsel %vm1608, %v1591, %v1593
      %v1610 = vsel %vm1608, %v1593, %v1595
      %v1611 = vsel %vm1608, %v1597, %v1599
      %v1612 = vsel %vm1608, %v1599, %v1601
      %v1613 = vsel %vm1608, %v1603, %v1605
      %v1614 = vsel %vm1608, %v1605, %v1607
      %v1621 = vadd.f32 %v1554, %v1609
      %v1622 = vadd.f32 %v1555, %v1610
      %v1623 = vadd.f32 %v1556, %v1611
      %v1624 = vadd.f32 %v1557, %v1612
      %v1625 = vadd.f32 %v1558, %v1613
      %v1626 = vadd.f32 %v1559, %v1614
      %1627 = vset.pattern.permute.xlu0 21
      %1628 = vperm.xlu0 %1627, %v241
      %v1629 = vpop.permute.xlu0 %1628
      %1631 = vset.pattern.permute.xlu0 21
      %1632 = vperm.xlu0 %1631, %v242
      %v1633 = vpop.permute.xlu0 %1632
      %1635 = vset.pattern.permute.xlu0 21
      %1636 = vperm.xlu0 %1635, %v243
      %v1637 = vpop.permute.xlu0 %1636
      %v1639 = vmul.f32 %v1629, %v263
      %v1640 = vmul.f32 %v1629, %v267
      %v1641 = vmul.f32 %v1629, %v297
      %v1642 = vmul.f32 %v1633, %v263
      %v1643 = vmul.f32 %v1633, %v267
      %v1644 = vmul.f32 %v1633, %v297
      %v1645 = vmul.f32 %v1637, %v263
      %v1646 = vmul.f32 %v1637, %v267
      %v1647 = vmul.f32 %v1637, %v297
      %1657 = vrot.lane.b32.xlu0 %v1639, 63
      %v1658 = vpop.permute.xlu0 %1657
      %1659 = vrot.lane.b32.xlu0 %v1640, 63
      %v1660 = vpop.permute.xlu0 %1659
      %1661 = vrot.lane.b32.xlu0 %v1641, 63
      %v1662 = vpop.permute.xlu0 %1661
      %1663 = vrot.lane.b32.xlu0 %v1642, 63
      %v1664 = vpop.permute.xlu0 %1663
      %1665 = vrot.lane.b32.xlu0 %v1643, 63
      %v1666 = vpop.permute.xlu0 %1665
      %1667 = vrot.lane.b32.xlu0 %v1644, 63
      %v1668 = vpop.permute.xlu0 %1667
      %1669 = vrot.lane.b32.xlu0 %v1645, 63
      %v1670 = vpop.permute.xlu0 %1669
      %1671 = vrot.lane.b32.xlu0 %v1646, 63
      %v1672 = vpop.permute.xlu0 %1671
      %1673 = vrot.lane.b32.xlu0 %v1647, 63
      %v1674 = vpop.permute.xlu0 %1673
      %vm1675 = vcmask 515072
      %v1676 = vsel %vm1675, %v1658, %v1660
      %v1677 = vsel %vm1675, %v1660, %v1662
      %v1678 = vsel %vm1675, %v1664, %v1666
      %v1679 = vsel %vm1675, %v1666, %v1668
      %v1680 = vsel %vm1675, %v1670, %v1672
      %v1681 = vsel %vm1675, %v1672, %v1674
      %v1688 = vadd.f32 %v1621, %v1676
      %v1689 = vadd.f32 %v1622, %v1677
      %v1690 = vadd.f32 %v1623, %v1678
      %v1691 = vadd.f32 %v1624, %v1679
      %v1692 = vadd.f32 %v1625, %v1680
      %v1693 = vadd.f32 %v1626, %v1681
      %1694 = vset.pattern.permute.xlu0 22
      %1695 = vperm.xlu0 %1694, %v241
      %v1696 = vpop.permute.xlu0 %1695
      %1698 = vset.pattern.permute.xlu0 22
      %1699 = vperm.xlu0 %1698, %v242
      %v1700 = vpop.permute.xlu0 %1699
      %1702 = vset.pattern.permute.xlu0 22
      %1703 = vperm.xlu0 %1702, %v243
      %v1704 = vpop.permute.xlu0 %1703
      %v1706 = vmul.f32 %v1696, %v263
      %v1707 = vmul.f32 %v1696, %v267
      %v1708 = vmul.f32 %v1696, %v297
      %v1709 = vmul.f32 %v1700, %v263
      %v1710 = vmul.f32 %v1700, %v267
      %v1711 = vmul.f32 %v1700, %v297
      %v1712 = vmul.f32 %v1704, %v263
      %v1713 = vmul.f32 %v1704, %v267
      %v1714 = vmul.f32 %v1704, %v297
      %1724 = vrot.lane.b32.xlu0 %v1706, 62
      %v1725 = vpop.permute.xlu0 %1724
      %1726 = vrot.lane.b32.xlu0 %v1707, 62
      %v1727 = vpop.permute.xlu0 %1726
      %1728 = vrot.lane.b32.xlu0 %v1708, 62
      %v1729 = vpop.permute.xlu0 %1728
      %1730 = vrot.lane.b32.xlu0 %v1709, 62
      %v1731 = vpop.permute.xlu0 %1730
      %1732 = vrot.lane.b32.xlu0 %v1710, 62
      %v1733 = vpop.permute.xlu0 %1732
      %1734 = vrot.lane.b32.xlu0 %v1711, 62
      %v1735 = vpop.permute.xlu0 %1734
      %1736 = vrot.lane.b32.xlu0 %v1712, 62
      %v1737 = vpop.permute.xlu0 %1736
      %1738 = vrot.lane.b32.xlu0 %v1713, 62
      %v1739 = vpop.permute.xlu0 %1738
      %1740 = vrot.lane.b32.xlu0 %v1714, 62
      %v1741 = vpop.permute.xlu0 %1740
      %vm1742 = vcmask 506880
      %v1743 = vsel %vm1742, %v1725, %v1727
      %v1744 = vsel %vm1742, %v1727, %v1729
      %v1745 = vsel %vm1742, %v1731, %v1733
      %v1746 = vsel %vm1742, %v1733, %v1735
      %v1747 = vsel %vm1742, %v1737, %v1739
      %v1748 = vsel %vm1742, %v1739, %v1741
      %v1755 = vadd.f32 %v1688, %v1743
      %v1756 = vadd.f32 %v1689, %v1744
      %v1757 = vadd.f32 %v1690, %v1745
      %v1758 = vadd.f32 %v1691, %v1746
      %v1759 = vadd.f32 %v1692, %v1747
      %v1760 = vadd.f32 %v1693, %v1748
      %1761 = vset.pattern.permute.xlu0 23
      %1762 = vperm.xlu0 %1761, %v241
      %v1763 = vpop.permute.xlu0 %1762
      %1765 = vset.pattern.permute.xlu0 23
      %1766 = vperm.xlu0 %1765, %v242
      %v1767 = vpop.permute.xlu0 %1766
      %1769 = vset.pattern.permute.xlu0 23
      %1770 = vperm.xlu0 %1769, %v243
      %v1771 = vpop.permute.xlu0 %1770
      %v1773 = vmul.f32 %v1763, %v263
      %v1774 = vmul.f32 %v1763, %v267
      %v1775 = vmul.f32 %v1763, %v297
      %v1776 = vmul.f32 %v1767, %v263
      %v1777 = vmul.f32 %v1767, %v267
      %v1778 = vmul.f32 %v1767, %v297
      %v1779 = vmul.f32 %v1771, %v263
      %v1780 = vmul.f32 %v1771, %v267
      %v1781 = vmul.f32 %v1771, %v297
      %1791 = vrot.lane.b32.xlu0 %v1773, 61
      %v1792 = vpop.permute.xlu0 %1791
      %1793 = vrot.lane.b32.xlu0 %v1774, 61
      %v1794 = vpop.permute.xlu0 %1793
      %1795 = vrot.lane.b32.xlu0 %v1775, 61
      %v1796 = vpop.permute.xlu0 %1795
      %1797 = vrot.lane.b32.xlu0 %v1776, 61
      %v1798 = vpop.permute.xlu0 %1797
      %1799 = vrot.lane.b32.xlu0 %v1777, 61
      %v1800 = vpop.permute.xlu0 %1799
      %1801 = vrot.lane.b32.xlu0 %v1778, 61
      %v1802 = vpop.permute.xlu0 %1801
      %1803 = vrot.lane.b32.xlu0 %v1779, 61
      %v1804 = vpop.permute.xlu0 %1803
      %1805 = vrot.lane.b32.xlu0 %v1780, 61
      %v1806 = vpop.permute.xlu0 %1805
      %1807 = vrot.lane.b32.xlu0 %v1781, 61
      %v1808 = vpop.permute.xlu0 %1807
      %vm1809 = vcmask 498688
      %v1810 = vsel %vm1809, %v1792, %v1794
      %v1811 = vsel %vm1809, %v1794, %v1796
      %v1812 = vsel %vm1809, %v1798, %v1800
      %v1813 = vsel %vm1809, %v1800, %v1802
      %v1814 = vsel %vm1809, %v1804, %v1806
      %v1815 = vsel %vm1809, %v1806, %v1808
      %v1822 = vadd.f32 %v1755, %v1810
      %v1823 = vadd.f32 %v1756, %v1811
      %v1824 = vadd.f32 %v1757, %v1812
      %v1825 = vadd.f32 %v1758, %v1813
      %v1826 = vadd.f32 %v1759, %v1814
      %v1827 = vadd.f32 %v1760, %v1815
      %1828 = vset.pattern.permute.xlu0 24
      %1829 = vperm.xlu0 %1828, %v241
      %v1830 = vpop.permute.xlu0 %1829
      %1832 = vset.pattern.permute.xlu0 24
      %1833 = vperm.xlu0 %1832, %v242
      %v1834 = vpop.permute.xlu0 %1833
      %1836 = vset.pattern.permute.xlu0 24
      %1837 = vperm.xlu0 %1836, %v243
      %v1838 = vpop.permute.xlu0 %1837
      %v1840 = vmul.f32 %v1830, %v263
      %v1841 = vmul.f32 %v1830, %v267
      %v1842 = vmul.f32 %v1830, %v297
      %v1843 = vmul.f32 %v1834, %v263
      %v1844 = vmul.f32 %v1834, %v267
      %v1845 = vmul.f32 %v1834, %v297
      %v1846 = vmul.f32 %v1838, %v263
      %v1847 = vmul.f32 %v1838, %v267
      %v1848 = vmul.f32 %v1838, %v297
      %1858 = vrot.lane.b32.xlu0 %v1840, 60
      %v1859 = vpop.permute.xlu0 %1858
      %1860 = vrot.lane.b32.xlu0 %v1841, 60
      %v1861 = vpop.permute.xlu0 %1860
      %1862 = vrot.lane.b32.xlu0 %v1842, 60
      %v1863 = vpop.permute.xlu0 %1862
      %1864 = vrot.lane.b32.xlu0 %v1843, 60
      %v1865 = vpop.permute.xlu0 %1864
      %1866 = vrot.lane.b32.xlu0 %v1844, 60
      %v1867 = vpop.permute.xlu0 %1866
      %1868 = vrot.lane.b32.xlu0 %v1845, 60
      %v1869 = vpop.permute.xlu0 %1868
      %1870 = vrot.lane.b32.xlu0 %v1846, 60
      %v1871 = vpop.permute.xlu0 %1870
      %1872 = vrot.lane.b32.xlu0 %v1847, 60
      %v1873 = vpop.permute.xlu0 %1872
      %1874 = vrot.lane.b32.xlu0 %v1848, 60
      %v1875 = vpop.permute.xlu0 %1874
      %vm1876 = vcmask 490496
      %v1877 = vsel %vm1876, %v1859, %v1861
      %v1878 = vsel %vm1876, %v1861, %v1863
      %v1879 = vsel %vm1876, %v1865, %v1867
      %v1880 = vsel %vm1876, %v1867, %v1869
      %v1881 = vsel %vm1876, %v1871, %v1873
      %v1882 = vsel %vm1876, %v1873, %v1875
      %v1889 = vadd.f32 %v1822, %v1877
      %v1890 = vadd.f32 %v1823, %v1878
      %v1891 = vadd.f32 %v1824, %v1879
      %v1892 = vadd.f32 %v1825, %v1880
      %v1893 = vadd.f32 %v1826, %v1881
      %v1894 = vadd.f32 %v1827, %v1882
      %1895 = vst [vmem:[#allocation2] sm:$0xff] %v1889
      %1896 = vst [vmem:[#allocation2 + $0x8] sm:$0xff] %v1890
      %1897 = vst [vmem:[#allocation2 + $0x18] sm:$0xff] %v1891
      %1898 = vst [vmem:[#allocation2 + $0x20] sm:$0xff] %v1892
      %1899 = vst [vmem:[#allocation2 + $0x30] sm:$0xf] %v1893
      %1900 = vst [vmem:[#allocation2 + $0x38] sm:$0xf] %v1894
      %1901 = vst [vmem:[#allocation2 + $0x10] sm:$0xff] 0.0
      %1902 = vst [vmem:[#allocation2 + $0x28] sm:$0xff] 0.0
      %1903 = vst [vmem:[#allocation2 + $0x40] sm:$0xf] 0.0
      %v1904 = vld [vmem:[%s4] sm:$0xff]
      %v1905 = vld [vmem:[%s4 + $0x8] sm:$0xff]
      %v1906 = vld [vmem:[%s4 + $0x10] sm:$0xf]
      %1908 = vset.pattern.permute.xlu0 0
      %1909 = vperm.xlu0 %1908, %v1904
      %v1910 = vpop.permute.xlu0 %1909
      %1913 = vset.pattern.permute.xlu0 0
      %1914 = vperm.xlu0 %1913, %v1905
      %v1915 = vpop.permute.xlu0 %1914
      %1918 = vset.pattern.permute.xlu0 0
      %1919 = vperm.xlu0 %1918, %v1906
      %v1920 = vpop.permute.xlu0 %1919
      %v1922 = vld [vmem:[#allocation2] sm:$0xff]
      %v1923 = vld [vmem:[#allocation2 + $0x8] sm:$0xff]
      %v1924 = vld [vmem:[#allocation2 + $0x18] sm:$0xff]
      %v1925 = vld [vmem:[#allocation2 + $0x20] sm:$0xff]
      %v1926 = vld [vmem:[#allocation2 + $0x30] sm:$0xf]
      %v1927 = vld [vmem:[#allocation2 + $0x38] sm:$0xf]
      %v1928 = vld [vmem:[%s3] sm:$0xff]
      %v1929 = vld [vmem:[%s3 + $0x8] sm:$0xff]
      %v1930 = vld [vmem:[%s3 + $0x10] sm:$0xf]
      %vm1931 = vcmask 162816
      %v1933 = vsel %vm1931, %v1928, 0
      %v1936 = vsel %vm1931, %v1929, 0
      %v1939 = vsel %vm1931, %v1930, 0
      %vm1941 = vcmask 1043456
      %v1943 = vsel %vm1941, %v1926, 0
      %v1946 = vsel %vm1941, %v1927, 0
      %1948 = vmatprep.subr.mxu0 0.0
      %1949 = vmatpush1.msra.mxu0 0.0
      %1950 = vmatprep.subr.mxu0 0.0
      %1951 = vmatpush1.msra.mxu0 0.0
      %1952 = vmatprep.subr.mxu0 0.0
      %1953 = vmatpush1.msra.mxu0 0.0
      %1954 = vmatprep.subr.mxu0 0.0
      %1955 = vmatpush1.msra.mxu0 0.0
      %1956 = vmatprep.subr.mxu0 0.0
      %1957 = vmatpush1.msra.mxu0 0.0
      %1958 = vmatprep.subr.mxu0 0.0
      %1959 = vmatpush1.msra.mxu0 0.0
      %1960 = vmatprep.subr.mxu0 0.0
      %1961 = vmatpush1.msra.mxu0 0.0
      %1962 = vmatprep.subr.mxu0 0.0
      %1963 = vmatpush1.msra.mxu0 0.0
      %1964 = vmatprep.subr.mxu0 0.0
      %1965 = vmatpush1.msra.mxu0 0.0
      %1966 = vmatprep.subr.mxu0 0.0
      %1967 = vmatpush1.msra.mxu0 0.0
      %1968 = vmatprep.subr.mxu0 0.0
      %1969 = vmatpush1.msra.mxu0 0.0
      %1970 = vmatprep.subr.mxu0 0.0
      %1971 = vmatpush1.msra.mxu0 0.0
      %1972 = vmatprep.subr.mxu0 0.0
      %1973 = vmatpush1.msra.mxu0 0.0
      %1974 = vmatprep.subr.mxu0 %v1946
      %1975 = vmatpush1.msra.mxu0 %v1943
      %1976 = vmatprep.subr.mxu0 %v1925
      %1977 = vmatpush1.msra.mxu0 %v1924
      %1978 = vmatprep.subr.mxu0 %v1923
      %1979 = vmatpush1.msra.mxu0 %v1922
      %1980 = vmatprep.subr.mxu0 0.0
      %1981 = vmatpush2.msra.mxu0 0.0
      %1982 = vmatprep.subr.mxu0 0.0
      %1983 = vmatpush2.msra.mxu0 0.0
      %1984 = vmatprep.subr.mxu0 0.0
      %1985 = vmatpush2.msra.mxu0 0.0
      %1986 = vmatprep.subr.mxu0 0.0
      %1987 = vmatpush2.msra.mxu0 0.0
      %1988 = vmatprep.subr.mxu0 0.0
      %1989 = vmatpush2.msra.mxu0 0.0
      %1990 = vmatprep.subr.mxu0 0.0
      %1991 = vmatpush2.msra.mxu0 0.0
      %1992 = vmatprep.subr.mxu0 0.0
      %1993 = vmatpush2.msra.mxu0 0.0
      %1994 = vmatprep.subr.mxu0 0.0
      %1995 = vmatpush2.msra.mxu0 0.0
      %1996 = vmatprep.subr.mxu0 0.0
      %1997 = vmatpush2.msra.mxu0 0.0
      %1998 = vmatprep.subr.mxu0 0.0
      %1999 = vmatpush2.msra.mxu0 0.0
      %2000 = vmatprep.subr.mxu0 0.0
      %2001 = vmatpush2.msra.mxu0 0.0
      %2002 = vmatprep.subr.mxu0 0.0
      %2003 = vmatpush2.msra.mxu0 0.0
      %2004 = vmatprep.subr.mxu0 0.0
      %2005 = vmatpush2.msra.mxu0 0.0
      %2006 = vmatprep.subr.mxu0 0.0
      %2007 = vmatpush2.msra.mxu0 0.0
      %2008 = vmatprep.subr.mxu0 0.0
      %2009 = vmatpush2.msra.mxu0 0.0
      %2010 = vmatprep.subr.mxu0 0.0
      %2011 = vmatpush2.msra.mxu0 0.0
      %2012 = vmatprep.mubr.f32.mxu0 0.0
      %2013 = vmatmul.mubr.f32.gmra.mxu0 %v1933
      %v2014 = vpop.f32.mrf.mxu0
      %v2015 = vadd.f32 0.0, %v2014
      %v2016 = vpop.f32.mrf.mxu0
      %v2017 = vadd.f32 0.0, %v2016
      %2018 = vmatprep.mubr.f32.mxu0 0.0
      %2019 = vmatmul.mubr.f32.gmra.mxu0 %v1936
      %v2020 = vpop.f32.mrf.mxu0
      %v2021 = vadd.f32 0.0, %v2020
      %v2022 = vpop.f32.mrf.mxu0
      %v2023 = vadd.f32 0.0, %v2022
      %2024 = vmatprep.mubr.f32.mxu0 0.0
      %2025 = vmatmul.mubr.f32.gmra.mxu0 %v1939
      %v2026 = vpop.f32.mrf.mxu0
      %v2027 = vadd.f32 0.0, %v2026
      %v2028 = vpop.f32.mrf.mxu0
      %v2029 = vadd.f32 0.0, %v2028
      %2030 = vdwg.mxu0
      %v2031 = vadd.f32 %v1910, %v2015
      %v2032 = vadd.f32 %v1910, %v2017
      %v2033 = vadd.f32 %v1915, %v2021
      %v2034 = vadd.f32 %v1915, %v2023
      %v2035 = vadd.f32 %v1920, %v2027
      %v2036 = vadd.f32 %v1920, %v2029
      %v2037 = vld [vmem:[#allocation2] sm:$0xff]
      %v2038 = vld [vmem:[#allocation2 + $0x8] sm:$0xff]
      %v2039 = vld [vmem:[#allocation2 + $0x10] sm:$0xff]
      %v2040 = vld [vmem:[#allocation2 + $0x18] sm:$0xff]
      %v2041 = vld [vmem:[#allocation2 + $0x20] sm:$0xff]
      %v2042 = vld [vmem:[#allocation2 + $0x28] sm:$0xff]
      %v2043 = vld [vmem:[#allocation2 + $0x30] sm:$0xf]
      %v2044 = vld [vmem:[#allocation2 + $0x38] sm:$0xf]
      %v2045 = vld [vmem:[#allocation2 + $0x40] sm:$0xf]
      %s2046 = scalar_lea.vmem %s3, 24
      %v2047 = vld [vmem:[%s2046] sm:$0xff]
      %v2048 = vld [vmem:[%s2046 + $0x8] sm:$0xff]
      %v2049 = vld [vmem:[%s2046 + $0x10] sm:$0xf]
      %2059 = vrot.lane.b32.xlu0 %v2037, 127
      %v2060 = vpop.permute.xlu0 %2059
      %2061 = vrot.lane.b32.xlu0 %v2038, 127
      %v2062 = vpop.permute.xlu0 %2061
      %2063 = vrot.lane.b32.xlu0 %v2039, 127
      %v2064 = vpop.permute.xlu0 %2063
      %2065 = vrot.lane.b32.xlu0 %v2040, 127
      %v2066 = vpop.permute.xlu0 %2065
      %2067 = vrot.lane.b32.xlu0 %v2041, 127
      %v2068 = vpop.permute.xlu0 %2067
      %2069 = vrot.lane.b32.xlu0 %v2042, 127
      %v2070 = vpop.permute.xlu0 %2069
      %2071 = vrot.lane.b32.xlu0 %v2043, 127
      %v2072 = vpop.permute.xlu0 %2071
      %2073 = vrot.lane.b32.xlu0 %v2044, 127
      %v2074 = vpop.permute.xlu0 %2073
      %2075 = vrot.lane.b32.xlu0 %v2045, 127
      %v2076 = vpop.permute.xlu0 %2075
      %v2077 = vsel %vm335, %v2060, %v2062
      %v2078 = vsel %vm335, %v2062, %v2064
      %v2079 = vsel %vm335, %v2066, %v2068
      %v2080 = vsel %vm335, %v2068, %v2070
      %v2081 = vsel %vm335, %v2072, %v2074
      %v2082 = vsel %vm335, %v2074, %v2076
      %v2088 = vsel %vm1931, %v2047, 0
      %v2091 = vsel %vm1931, %v2048, 0
      %v2094 = vsel %vm1931, %v2049, 0
      %v2096 = vsel %vm1941, %v2081, 0
      %v2098 = vsel %vm1941, %v2082, 0
      %2100 = vmatprep.subr.mxu0 0.0
      %2101 = vmatpush1.msra.mxu0 0.0
      %2102 = vmatprep.subr.mxu0 0.0
      %2103 = vmatpush1.msra.mxu0 0.0
      %2104 = vmatprep.subr.mxu0 0.0
      %2105 = vmatpush1.msra.mxu0 0.0
      %2106 = vmatprep.subr.mxu0 0.0
      %2107 = vmatpush1.msra.mxu0 0.0
      %2108 = vmatprep.subr.mxu0 0.0
      %2109 = vmatpush1.msra.mxu0 0.0
      %2110 = vmatprep.subr.mxu0 0.0
      %2111 = vmatpush1.msra.mxu0 0.0
      %2112 = vmatprep.subr.mxu0 0.0
      %2113 = vmatpush1.msra.mxu0 0.0
      %2114 = vmatprep.subr.mxu0 0.0
      %2115 = vmatpush1.msra.mxu0 0.0
      %2116 = vmatprep.subr.mxu0 0.0
      %2117 = vmatpush1.msra.mxu0 0.0
      %2118 = vmatprep.subr.mxu0 0.0
      %2119 = vmatpush1.msra.mxu0 0.0
      %2120 = vmatprep.subr.mxu0 0.0
      %2121 = vmatpush1.msra.mxu0 0.0
      %2122 = vmatprep.subr.mxu0 0.0
      %2123 = vmatpush1.msra.mxu0 0.0
      %2124 = vmatprep.subr.mxu0 0.0
      %2125 = vmatpush1.msra.mxu0 0.0
      %2126 = vmatprep.subr.mxu0 %v2098
      %2127 = vmatpush1.msra.mxu0 %v2096
      %2128 = vmatprep.subr.mxu0 %v2080
      %2129 = vmatpush1.msra.mxu0 %v2079
      %2130 = vmatprep.subr.mxu0 %v2078
      %2131 = vmatpush1.msra.mxu0 %v2077
      %2132 = vmatprep.subr.mxu0 0.0
      %2133 = vmatpush2.msra.mxu0 0.0
      %2134 = vmatprep.subr.mxu0 0.0
      %2135 = vmatpush2.msra.mxu0 0.0
      %2136 = vmatprep.subr.mxu0 0.0
      %2137 = vmatpush2.msra.mxu0 0.0
      %2138 = vmatprep.subr.mxu0 0.0
      %2139 = vmatpush2.msra.mxu0 0.0
      %2140 = vmatprep.subr.mxu0 0.0
      %2141 = vmatpush2.msra.mxu0 0.0
      %2142 = vmatprep.subr.mxu0 0.0
      %2143 = vmatpush2.msra.mxu0 0.0
      %2144 = vmatprep.subr.mxu0 0.0
      %2145 = vmatpush2.msra.mxu0 0.0
      %2146 = vmatprep.subr.mxu0 0.0
      %2147 = vmatpush2.msra.mxu0 0.0
      %2148 = vmatprep.subr.mxu0 0.0
      %2149 = vmatpush2.msra.mxu0 0.0
      %2150 = vmatprep.subr.mxu0 0.0
      %2151 = vmatpush2.msra.mxu0 0.0
      %2152 = vmatprep.subr.mxu0 0.0
      %2153 = vmatpush2.msra.mxu0 0.0
      %2154 = vmatprep.subr.mxu0 0.0
      %2155 = vmatpush2.msra.mxu0 0.0
      %2156 = vmatprep.subr.mxu0 0.0
      %2157 = vmatpush2.msra.mxu0 0.0
      %2158 = vmatprep.subr.mxu0 0.0
      %2159 = vmatpush2.msra.mxu0 0.0
      %2160 = vmatprep.subr.mxu0 0.0
      %2161 = vmatpush2.msra.mxu0 0.0
      %2162 = vmatprep.subr.mxu0 0.0
      %2163 = vmatpush2.msra.mxu0 0.0
      %2164 = vmatprep.mubr.f32.mxu0 0.0
      %2165 = vmatmul.mubr.f32.gmra.mxu0 %v2088
      %v2166 = vpop.f32.mrf.mxu0
      %v2167 = vadd.f32 0.0, %v2166
      %v2168 = vpop.f32.mrf.mxu0
      %v2169 = vadd.f32 0.0, %v2168
      %2170 = vmatprep.mubr.f32.mxu0 0.0
      %2171 = vmatmul.mubr.f32.gmra.mxu0 %v2091
      %v2172 = vpop.f32.mrf.mxu0
      %v2173 = vadd.f32 0.0, %v2172
      %v2174 = vpop.f32.mrf.mxu0
      %v2175 = vadd.f32 0.0, %v2174
      %2176 = vmatprep.mubr.f32.mxu0 0.0
      %2177 = vmatmul.mubr.f32.gmra.mxu0 %v2094
      %v2178 = vpop.f32.mrf.mxu0
      %v2179 = vadd.f32 0.0, %v2178
      %v2180 = vpop.f32.mrf.mxu0
      %v2181 = vadd.f32 0.0, %v2180
      %2182 = vdwg.mxu0
      %v2183 = vadd.f32 %v2031, %v2167
      %v2184 = vadd.f32 %v2032, %v2169
      %v2185 = vadd.f32 %v2033, %v2173
      %v2186 = vadd.f32 %v2034, %v2175
      %v2187 = vadd.f32 %v2035, %v2179
      %v2188 = vadd.f32 %v2036, %v2181
      %s2189 = scalar_lea.vmem %s3, 48
      %v2190 = vld [vmem:[%s2189] sm:$0xff]
      %v2191 = vld [vmem:[%s2189 + $0x8] sm:$0xff]
      %v2192 = vld [vmem:[%s2189 + $0x10] sm:$0xf]
      %2193 = vrot.lane.b32.xlu0 %v2037, 126
      %v2194 = vpop.permute.xlu0 %2193
      %2195 = vrot.lane.b32.xlu0 %v2038, 126
      %v2196 = vpop.permute.xlu0 %2195
      %2197 = vrot.lane.b32.xlu0 %v2039, 126
      %v2198 = vpop.permute.xlu0 %2197
      %2199 = vrot.lane.b32.xlu0 %v2040, 126
      %v2200 = vpop.permute.xlu0 %2199
      %2201 = vrot.lane.b32.xlu0 %v2041, 126
      %v2202 = vpop.permute.xlu0 %2201
      %2203 = vrot.lane.b32.xlu0 %v2042, 126
      %v2204 = vpop.permute.xlu0 %2203
      %2205 = vrot.lane.b32.xlu0 %v2043, 126
      %v2206 = vpop.permute.xlu0 %2205
      %2207 = vrot.lane.b32.xlu0 %v2044, 126
      %v2208 = vpop.permute.xlu0 %2207
      %2209 = vrot.lane.b32.xlu0 %v2045, 126
      %v2210 = vpop.permute.xlu0 %2209
      %v2211 = vsel %vm402, %v2194, %v2196
      %v2212 = vsel %vm402, %v2196, %v2198
      %v2213 = vsel %vm402, %v2200, %v2202
      %v2214 = vsel %vm402, %v2202, %v2204
      %v2215 = vsel %vm402, %v2206, %v2208
      %v2216 = vsel %vm402, %v2208, %v2210
      %v2222 = vsel %vm1931, %v2190, 0
      %v2225 = vsel %vm1931, %v2191, 0
      %v2228 = vsel %vm1931, %v2192, 0
      %v2230 = vsel %vm1941, %v2215, 0
      %v2232 = vsel %vm1941, %v2216, 0
      %2234 = vmatprep.subr.mxu0 0.0
      %2235 = vmatpush1.msra.mxu0 0.0
      %2236 = vmatprep.subr.mxu0 0.0
      %2237 = vmatpush1.msra.mxu0 0.0
      %2238 = vmatprep.subr.mxu0 0.0
      %2239 = vmatpush1.msra.mxu0 0.0
      %2240 = vmatprep.subr.mxu0 0.0
      %2241 = vmatpush1.msra.mxu0 0.0
      %2242 = vmatprep.subr.mxu0 0.0
      %2243 = vmatpush1.msra.mxu0 0.0
      %2244 = vmatprep.subr.mxu0 0.0
      %2245 = vmatpush1.msra.mxu0 0.0
      %2246 = vmatprep.subr.mxu0 0.0
      %2247 = vmatpush1.msra.mxu0 0.0
      %2248 = vmatprep.subr.mxu0 0.0
      %2249 = vmatpush1.msra.mxu0 0.0
      %2250 = vmatprep.subr.mxu0 0.0
      %2251 = vmatpush1.msra.mxu0 0.0
      %2252 = vmatprep.subr.mxu0 0.0
      %2253 = vmatpush1.msra.mxu0 0.0
      %2254 = vmatprep.subr.mxu0 0.0
      %2255 = vmatpush1.msra.mxu0 0.0
      %2256 = vmatprep.subr.mxu0 0.0
      %2257 = vmatpush1.msra.mxu0 0.0
      %2258 = vmatprep.subr.mxu0 0.0
      %2259 = vmatpush1.msra.mxu0 0.0
      %2260 = vmatprep.subr.mxu0 %v2232
      %2261 = vmatpush1.msra.mxu0 %v2230
      %2262 = vmatprep.subr.mxu0 %v2214
      %2263 = vmatpush1.msra.mxu0 %v2213
      %2264 = vmatprep.subr.mxu0 %v2212
      %2265 = vmatpush1.msra.mxu0 %v2211
      %2266 = vmatprep.subr.mxu0 0.0
      %2267 = vmatpush2.msra.mxu0 0.0
      %2268 = vmatprep.subr.mxu0 0.0
      %2269 = vmatpush2.msra.mxu0 0.0
      %2270 = vmatprep.subr.mxu0 0.0
      %2271 = vmatpush2.msra.mxu0 0.0
      %2272 = vmatprep.subr.mxu0 0.0
      %2273 = vmatpush2.msra.mxu0 0.0
      %2274 = vmatprep.subr.mxu0 0.0
      %2275 = vmatpush2.msra.mxu0 0.0
      %2276 = vmatprep.subr.mxu0 0.0
      %2277 = vmatpush2.msra.mxu0 0.0
      %2278 = vmatprep.subr.mxu0 0.0
      %2279 = vmatpush2.msra.mxu0 0.0
      %2280 = vmatprep.subr.mxu0 0.0
      %2281 = vmatpush2.msra.mxu0 0.0
      %2282 = vmatprep.subr.mxu0 0.0
      %2283 = vmatpush2.msra.mxu0 0.0
      %2284 = vmatprep.subr.mxu0 0.0
      %2285 = vmatpush2.msra.mxu0 0.0
      %2286 = vmatprep.subr.mxu0 0.0
      %2287 = vmatpush2.msra.mxu0 0.0
      %2288 = vmatprep.subr.mxu0 0.0
      %2289 = vmatpush2.msra.mxu0 0.0
      %2290 = vmatprep.subr.mxu0 0.0
      %2291 = vmatpush2.msra.mxu0 0.0
      %2292 = vmatprep.subr.mxu0 0.0
      %2293 = vmatpush2.msra.mxu0 0.0
      %2294 = vmatprep.subr.mxu0 0.0
      %2295 = vmatpush2.msra.mxu0 0.0
      %2296 = vmatprep.subr.mxu0 0.0
      %2297 = vmatpush2.msra.mxu0 0.0
      %2298 = vmatprep.mubr.f32.mxu0 0.0
      %2299 = vmatmul.mubr.f32.gmra.mxu0 %v2222
      %v2300 = vpop.f32.mrf.mxu0
      %v2301 = vadd.f32 0.0, %v2300
      %v2302 = vpop.f32.mrf.mxu0
      %v2303 = vadd.f32 0.0, %v2302
      %2304 = vmatprep.mubr.f32.mxu0 0.0
      %2305 = vmatmul.mubr.f32.gmra.mxu0 %v2225
      %v2306 = vpop.f32.mrf.mxu0
      %v2307 = vadd.f32 0.0, %v2306
      %v2308 = vpop.f32.mrf.mxu0
      %v2309 = vadd.f32 0.0, %v2308
      %2310 = vmatprep.mubr.f32.mxu0 0.0
      %2311 = vmatmul.mubr.f32.gmra.mxu0 %v2228
      %v2312 = vpop.f32.mrf.mxu0
      %v2313 = vadd.f32 0.0, %v2312
      %v2314 = vpop.f32.mrf.mxu0
      %v2315 = vadd.f32 0.0, %v2314
      %2316 = vdwg.mxu0
      %v2317 = vadd.f32 %v2183, %v2301
      %v2318 = vadd.f32 %v2184, %v2303
      %v2319 = vadd.f32 %v2185, %v2307
      %v2320 = vadd.f32 %v2186, %v2309
      %v2321 = vadd.f32 %v2187, %v2313
      %v2322 = vadd.f32 %v2188, %v2315
      %s2323 = scalar_lea.vmem %s3, 72
      %v2324 = vld [vmem:[%s2323] sm:$0xff]
      %v2325 = vld [vmem:[%s2323 + $0x8] sm:$0xff]
      %v2326 = vld [vmem:[%s2323 + $0x10] sm:$0xf]
      %2327 = vrot.lane.b32.xlu0 %v2037, 125
      %v2328 = vpop.permute.xlu0 %2327
      %2329 = vrot.lane.b32.xlu0 %v2038, 125
      %v2330 = vpop.permute.xlu0 %2329
      %2331 = vrot.lane.b32.xlu0 %v2039, 125
      %v2332 = vpop.permute.xlu0 %2331
      %2333 = vrot.lane.b32.xlu0 %v2040, 125
      %v2334 = vpop.permute.xlu0 %2333
      %2335 = vrot.lane.b32.xlu0 %v2041, 125
      %v2336 = vpop.permute.xlu0 %2335
      %2337 = vrot.lane.b32.xlu0 %v2042, 125
      %v2338 = vpop.permute.xlu0 %2337
      %2339 = vrot.lane.b32.xlu0 %v2043, 125
      %v2340 = vpop.permute.xlu0 %2339
      %2341 = vrot.lane.b32.xlu0 %v2044, 125
      %v2342 = vpop.permute.xlu0 %2341
      %2343 = vrot.lane.b32.xlu0 %v2045, 125
      %v2344 = vpop.permute.xlu0 %2343
      %v2345 = vsel %vm469, %v2328, %v2330
      %v2346 = vsel %vm469, %v2330, %v2332
      %v2347 = vsel %vm469, %v2334, %v2336
      %v2348 = vsel %vm469, %v2336, %v2338
      %v2349 = vsel %vm469, %v2340, %v2342
      %v2350 = vsel %vm469, %v2342, %v2344
      %v2356 = vsel %vm1931, %v2324, 0
      %v2359 = vsel %vm1931, %v2325, 0
      %v2362 = vsel %vm1931, %v2326, 0
      %v2364 = vsel %vm1941, %v2349, 0
      %v2366 = vsel %vm1941, %v2350, 0
      %2368 = vmatprep.subr.mxu0 0.0
      %2369 = vmatpush1.msra.mxu0 0.0
      %2370 = vmatprep.subr.mxu0 0.0
      %2371 = vmatpush1.msra.mxu0 0.0
      %2372 = vmatprep.subr.mxu0 0.0
      %2373 = vmatpush1.msra.mxu0 0.0
      %2374 = vmatprep.subr.mxu0 0.0
      %2375 = vmatpush1.msra.mxu0 0.0
      %2376 = vmatprep.subr.mxu0 0.0
      %2377 = vmatpush1.msra.mxu0 0.0
      %2378 = vmatprep.subr.mxu0 0.0
      %2379 = vmatpush1.msra.mxu0 0.0
      %2380 = vmatprep.subr.mxu0 0.0
      %2381 = vmatpush1.msra.mxu0 0.0
      %2382 = vmatprep.subr.mxu0 0.0
      %2383 = vmatpush1.msra.mxu0 0.0
      %2384 = vmatprep.subr.mxu0 0.0
      %2385 = vmatpush1.msra.mxu0 0.0
      %2386 = vmatprep.subr.mxu0 0.0
      %2387 = vmatpush1.msra.mxu0 0.0
      %2388 = vmatprep.subr.mxu0 0.0
      %2389 = vmatpush1.msra.mxu0 0.0
      %2390 = vmatprep.subr.mxu0 0.0
      %2391 = vmatpush1.msra.mxu0 0.0
      %2392 = vmatprep.subr.mxu0 0.0
      %2393 = vmatpush1.msra.mxu0 0.0
      %2394 = vmatprep.subr.mxu0 %v2366
      %2395 = vmatpush1.msra.mxu0 %v2364
      %2396 = vmatprep.subr.mxu0 %v2348
      %2397 = vmatpush1.msra.mxu0 %v2347
      %2398 = vmatprep.subr.mxu0 %v2346
      %2399 = vmatpush1.msra.mxu0 %v2345
      %2400 = vmatprep.subr.mxu0 0.0
      %2401 = vmatpush2.msra.mxu0 0.0
      %2402 = vmatprep.subr.mxu0 0.0
      %2403 = vmatpush2.msra.mxu0 0.0
      %2404 = vmatprep.subr.mxu0 0.0
      %2405 = vmatpush2.msra.mxu0 0.0
      %2406 = vmatprep.subr.mxu0 0.0
      %2407 = vmatpush2.msra.mxu0 0.0
      %2408 = vmatprep.subr.mxu0 0.0
      %2409 = vmatpush2.msra.mxu0 0.0
      %2410 = vmatprep.subr.mxu0 0.0
      %2411 = vmatpush2.msra.mxu0 0.0
      %2412 = vmatprep.subr.mxu0 0.0
      %2413 = vmatpush2.msra.mxu0 0.0
      %2414 = vmatprep.subr.mxu0 0.0
      %2415 = vmatpush2.msra.mxu0 0.0
      %2416 = vmatprep.subr.mxu0 0.0
      %2417 = vmatpush2.msra.mxu0 0.0
      %2418 = vmatprep.subr.mxu0 0.0
      %2419 = vmatpush2.msra.mxu0 0.0
      %2420 = vmatprep.subr.mxu0 0.0
      %2421 = vmatpush2.msra.mxu0 0.0
      %2422 = vmatprep.subr.mxu0 0.0
      %2423 = vmatpush2.msra.mxu0 0.0
      %2424 = vmatprep.subr.mxu0 0.0
      %2425 = vmatpush2.msra.mxu0 0.0
      %2426 = vmatprep.subr.mxu0 0.0
      %2427 = vmatpush2.msra.mxu0 0.0
      %2428 = vmatprep.subr.mxu0 0.0
      %2429 = vmatpush2.msra.mxu0 0.0
      %2430 = vmatprep.subr.mxu0 0.0
      %2431 = vmatpush2.msra.mxu0 0.0
      %2432 = vmatprep.mubr.f32.mxu0 0.0
      %2433 = vmatmul.mubr.f32.gmra.mxu0 %v2356
      %v2434 = vpop.f32.mrf.mxu0
      %v2435 = vadd.f32 0.0, %v2434
      %v2436 = vpop.f32.mrf.mxu0
      %v2437 = vadd.f32 0.0, %v2436
      %2438 = vmatprep.mubr.f32.mxu0 0.0
      %2439 = vmatmul.mubr.f32.gmra.mxu0 %v2359
      %v2440 = vpop.f32.mrf.mxu0
      %v2441 = vadd.f32 0.0, %v2440
      %v2442 = vpop.f32.mrf.mxu0
      %v2443 = vadd.f32 0.0, %v2442
      %2444 = vmatprep.mubr.f32.mxu0 0.0
      %2445 = vmatmul.mubr.f32.gmra.mxu0 %v2362
      %v2446 = vpop.f32.mrf.mxu0
      %v2447 = vadd.f32 0.0, %v2446
      %v2448 = vpop.f32.mrf.mxu0
      %v2449 = vadd.f32 0.0, %v2448
      %2450 = vdwg.mxu0
      %v2451 = vadd.f32 %v2317, %v2435
      %v2452 = vadd.f32 %v2318, %v2437
      %v2453 = vadd.f32 %v2319, %v2441
      %v2454 = vadd.f32 %v2320, %v2443
      %v2455 = vadd.f32 %v2321, %v2447
      %v2456 = vadd.f32 %v2322, %v2449
      %s2457 = scalar_lea.vmem %s3, 96
      %v2458 = vld [vmem:[%s2457] sm:$0xff]
      %v2459 = vld [vmem:[%s2457 + $0x8] sm:$0xff]
      %v2460 = vld [vmem:[%s2457 + $0x10] sm:$0xf]
      %2461 = vrot.lane.b32.xlu0 %v2037, 124
      %v2462 = vpop.permute.xlu0 %2461
      %2463 = vrot.lane.b32.xlu0 %v2038, 124
      %v2464 = vpop.permute.xlu0 %2463
      %2465 = vrot.lane.b32.xlu0 %v2039, 124
      %v2466 = vpop.permute.xlu0 %2465
      %2467 = vrot.lane.b32.xlu0 %v2040, 124
      %v2468 = vpop.permute.xlu0 %2467
      %2469 = vrot.lane.b32.xlu0 %v2041, 124
      %v2470 = vpop.permute.xlu0 %2469
      %2471 = vrot.lane.b32.xlu0 %v2042, 124
      %v2472 = vpop.permute.xlu0 %2471
      %2473 = vrot.lane.b32.xlu0 %v2043, 124
      %v2474 = vpop.permute.xlu0 %2473
      %2475 = vrot.lane.b32.xlu0 %v2044, 124
      %v2476 = vpop.permute.xlu0 %2475
      %2477 = vrot.lane.b32.xlu0 %v2045, 124
      %v2478 = vpop.permute.xlu0 %2477
      %v2479 = vsel %vm536, %v2462, %v2464
      %v2480 = vsel %vm536, %v2464, %v2466
      %v2481 = vsel %vm536, %v2468, %v2470
      %v2482 = vsel %vm536, %v2470, %v2472
      %v2483 = vsel %vm536, %v2474, %v2476
      %v2484 = vsel %vm536, %v2476, %v2478
      %v2490 = vsel %vm1931, %v2458, 0
      %v2493 = vsel %vm1931, %v2459, 0
      %v2496 = vsel %vm1931, %v2460, 0
      %v2498 = vsel %vm1941, %v2483, 0
      %v2500 = vsel %vm1941, %v2484, 0
      %2502 = vmatprep.subr.mxu0 0.0
      %2503 = vmatpush1.msra.mxu0 0.0
      %2504 = vmatprep.subr.mxu0 0.0
      %2505 = vmatpush1.msra.mxu0 0.0
      %2506 = vmatprep.subr.mxu0 0.0
      %2507 = vmatpush1.msra.mxu0 0.0
      %2508 = vmatprep.subr.mxu0 0.0
      %2509 = vmatpush1.msra.mxu0 0.0
      %2510 = vmatprep.subr.mxu0 0.0
      %2511 = vmatpush1.msra.mxu0 0.0
      %2512 = vmatprep.subr.mxu0 0.0
      %2513 = vmatpush1.msra.mxu0 0.0
      %2514 = vmatprep.subr.mxu0 0.0
      %2515 = vmatpush1.msra.mxu0 0.0
      %2516 = vmatprep.subr.mxu0 0.0
      %2517 = vmatpush1.msra.mxu0 0.0
      %2518 = vmatprep.subr.mxu0 0.0
      %2519 = vmatpush1.msra.mxu0 0.0
      %2520 = vmatprep.subr.mxu0 0.0
      %2521 = vmatpush1.msra.mxu0 0.0
      %2522 = vmatprep.subr.mxu0 0.0
      %2523 = vmatpush1.msra.mxu0 0.0
      %2524 = vmatprep.subr.mxu0 0.0
      %2525 = vmatpush1.msra.mxu0 0.0
      %2526 = vmatprep.subr.mxu0 0.0
      %2527 = vmatpush1.msra.mxu0 0.0
      %2528 = vmatprep.subr.mxu0 %v2500
      %2529 = vmatpush1.msra.mxu0 %v2498
      %2530 = vmatprep.subr.mxu0 %v2482
      %2531 = vmatpush1.msra.mxu0 %v2481
      %2532 = vmatprep.subr.mxu0 %v2480
      %2533 = vmatpush1.msra.mxu0 %v2479
      %2534 = vmatprep.subr.mxu0 0.0
      %2535 = vmatpush2.msra.mxu0 0.0
      %2536 = vmatprep.subr.mxu0 0.0
      %2537 = vmatpush2.msra.mxu0 0.0
      %2538 = vmatprep.subr.mxu0 0.0
      %2539 = vmatpush2.msra.mxu0 0.0
      %2540 = vmatprep.subr.mxu0 0.0
      %2541 = vmatpush2.msra.mxu0 0.0
      %2542 = vmatprep.subr.mxu0 0.0
      %2543 = vmatpush2.msra.mxu0 0.0
      %2544 = vmatprep.subr.mxu0 0.0
      %2545 = vmatpush2.msra.mxu0 0.0
      %2546 = vmatprep.subr.mxu0 0.0
      %2547 = vmatpush2.msra.mxu0 0.0
      %2548 = vmatprep.subr.mxu0 0.0
      %2549 = vmatpush2.msra.mxu0 0.0
      %2550 = vmatprep.subr.mxu0 0.0
      %2551 = vmatpush2.msra.mxu0 0.0
      %2552 = vmatprep.subr.mxu0 0.0
      %2553 = vmatpush2.msra.mxu0 0.0
      %2554 = vmatprep.subr.mxu0 0.0
      %2555 = vmatpush2.msra.mxu0 0.0
      %2556 = vmatprep.subr.mxu0 0.0
      %2557 = vmatpush2.msra.mxu0 0.0
      %2558 = vmatprep.subr.mxu0 0.0
      %2559 = vmatpush2.msra.mxu0 0.0
      %2560 = vmatprep.subr.mxu0 0.0
      %2561 = vmatpush2.msra.mxu0 0.0
      %2562 = vmatprep.subr.mxu0 0.0
      %2563 = vmatpush2.msra.mxu0 0.0
      %2564 = vmatprep.subr.mxu0 0.0
      %2565 = vmatpush2.msra.mxu0 0.0
      %2566 = vmatprep.mubr.f32.mxu0 0.0
      %2567 = vmatmul.mubr.f32.gmra.mxu0 %v2490
      %v2568 = vpop.f32.mrf.mxu0
      %v2569 = vadd.f32 0.0, %v2568
      %v2570 = vpop.f32.mrf.mxu0
      %v2571 = vadd.f32 0.0, %v2570
      %2572 = vmatprep.mubr.f32.mxu0 0.0
      %2573 = vmatmul.mubr.f32.gmra.mxu0 %v2493
      %v2574 = vpop.f32.mrf.mxu0
      %v2575 = vadd.f32 0.0, %v2574
      %v2576 = vpop.f32.mrf.mxu0
      %v2577 = vadd.f32 0.0, %v2576
      %2578 = vmatprep.mubr.f32.mxu0 0.0
      %2579 = vmatmul.mubr.f32.gmra.mxu0 %v2496
      %v2580 = vpop.f32.mrf.mxu0
      %v2581 = vadd.f32 0.0, %v2580
      %v2582 = vpop.f32.mrf.mxu0
      %v2583 = vadd.f32 0.0, %v2582
      %2584 = vdwg.mxu0
      %v2585 = vadd.f32 %v2451, %v2569
      %v2586 = vadd.f32 %v2452, %v2571
      %v2587 = vadd.f32 %v2453, %v2575
      %v2588 = vadd.f32 %v2454, %v2577
      %v2589 = vadd.f32 %v2455, %v2581
      %v2590 = vadd.f32 %v2456, %v2583
      %s2591 = scalar_lea.vmem %s3, 120
      %v2592 = vld [vmem:[%s2591] sm:$0xff]
      %v2593 = vld [vmem:[%s2591 + $0x8] sm:$0xff]
      %v2594 = vld [vmem:[%s2591 + $0x10] sm:$0xf]
      %2595 = vrot.lane.b32.xlu0 %v2037, 112
      %v2596 = vpop.permute.xlu0 %2595
      %2597 = vrot.lane.b32.xlu0 %v2038, 112
      %v2598 = vpop.permute.xlu0 %2597
      %2599 = vrot.lane.b32.xlu0 %v2039, 112
      %v2600 = vpop.permute.xlu0 %2599
      %2601 = vrot.lane.b32.xlu0 %v2040, 112
      %v2602 = vpop.permute.xlu0 %2601
      %2603 = vrot.lane.b32.xlu0 %v2041, 112
      %v2604 = vpop.permute.xlu0 %2603
      %2605 = vrot.lane.b32.xlu0 %v2042, 112
      %v2606 = vpop.permute.xlu0 %2605
      %2607 = vrot.lane.b32.xlu0 %v2043, 112
      %v2608 = vpop.permute.xlu0 %2607
      %2609 = vrot.lane.b32.xlu0 %v2044, 112
      %v2610 = vpop.permute.xlu0 %2609
      %2611 = vrot.lane.b32.xlu0 %v2045, 112
      %v2612 = vpop.permute.xlu0 %2611
      %v2613 = vsel %vm603, %v2596, %v2598
      %v2614 = vsel %vm603, %v2598, %v2600
      %v2615 = vsel %vm603, %v2602, %v2604
      %v2616 = vsel %vm603, %v2604, %v2606
      %v2617 = vsel %vm603, %v2608, %v2610
      %v2618 = vsel %vm603, %v2610, %v2612
      %v2624 = vsel %vm1931, %v2592, 0
      %v2627 = vsel %vm1931, %v2593, 0
      %v2630 = vsel %vm1931, %v2594, 0
      %v2632 = vsel %vm1941, %v2617, 0
      %v2634 = vsel %vm1941, %v2618, 0
      %2636 = vmatprep.subr.mxu0 0.0
      %2637 = vmatpush1.msra.mxu0 0.0
      %2638 = vmatprep.subr.mxu0 0.0
      %2639 = vmatpush1.msra.mxu0 0.0
      %2640 = vmatprep.subr.mxu0 0.0
      %2641 = vmatpush1.msra.mxu0 0.0
      %2642 = vmatprep.subr.mxu0 0.0
      %2643 = vmatpush1.msra.mxu0 0.0
      %2644 = vmatprep.subr.mxu0 0.0
      %2645 = vmatpush1.msra.mxu0 0.0
      %2646 = vmatprep.subr.mxu0 0.0
      %2647 = vmatpush1.msra.mxu0 0.0
      %2648 = vmatprep.subr.mxu0 0.0
      %2649 = vmatpush1.msra.mxu0 0.0
      %2650 = vmatprep.subr.mxu0 0.0
      %2651 = vmatpush1.msra.mxu0 0.0
      %2652 = vmatprep.subr.mxu0 0.0
      %2653 = vmatpush1.msra.mxu0 0.0
      %2654 = vmatprep.subr.mxu0 0.0
      %2655 = vmatpush1.msra.mxu0 0.0
      %2656 = vmatprep.subr.mxu0 0.0
      %2657 = vmatpush1.msra.mxu0 0.0
      %2658 = vmatprep.subr.mxu0 0.0
      %2659 = vmatpush1.msra.mxu0 0.0
      %2660 = vmatprep.subr.mxu0 0.0
      %2661 = vmatpush1.msra.mxu0 0.0
      %2662 = vmatprep.subr.mxu0 %v2634
      %2663 = vmatpush1.msra.mxu0 %v2632
      %2664 = vmatprep.subr.mxu0 %v2616
      %2665 = vmatpush1.msra.mxu0 %v2615
      %2666 = vmatprep.subr.mxu0 %v2614
      %2667 = vmatpush1.msra.mxu0 %v2613
      %2668 = vmatprep.subr.mxu0 0.0
      %2669 = vmatpush2.msra.mxu0 0.0
      %2670 = vmatprep.subr.mxu0 0.0
      %2671 = vmatpush2.msra.mxu0 0.0
      %2672 = vmatprep.subr.mxu0 0.0
      %2673 = vmatpush2.msra.mxu0 0.0
      %2674 = vmatprep.subr.mxu0 0.0
      %2675 = vmatpush2.msra.mxu0 0.0
      %2676 = vmatprep.subr.mxu0 0.0
      %2677 = vmatpush2.msra.mxu0 0.0
      %2678 = vmatprep.subr.mxu0 0.0
      %2679 = vmatpush2.msra.mxu0 0.0
      %2680 = vmatprep.subr.mxu0 0.0
      %2681 = vmatpush2.msra.mxu0 0.0
      %2682 = vmatprep.subr.mxu0 0.0
      %2683 = vmatpush2.msra.mxu0 0.0
      %2684 = vmatprep.subr.mxu0 0.0
      %2685 = vmatpush2.msra.mxu0 0.0
      %2686 = vmatprep.subr.mxu0 0.0
      %2687 = vmatpush2.msra.mxu0 0.0
      %2688 = vmatprep.subr.mxu0 0.0
      %2689 = vmatpush2.msra.mxu0 0.0
      %2690 = vmatprep.subr.mxu0 0.0
      %2691 = vmatpush2.msra.mxu0 0.0
      %2692 = vmatprep.subr.mxu0 0.0
      %2693 = vmatpush2.msra.mxu0 0.0
      %2694 = vmatprep.subr.mxu0 0.0
      %2695 = vmatpush2.msra.mxu0 0.0
      %2696 = vmatprep.subr.mxu0 0.0
      %2697 = vmatpush2.msra.mxu0 0.0
      %2698 = vmatprep.subr.mxu0 0.0
      %2699 = vmatpush2.msra.mxu0 0.0
      %2700 = vmatprep.mubr.f32.mxu0 0.0
      %2701 = vmatmul.mubr.f32.gmra.mxu0 %v2624
      %v2702 = vpop.f32.mrf.mxu0
      %v2703 = vadd.f32 0.0, %v2702
      %v2704 = vpop.f32.mrf.mxu0
      %v2705 = vadd.f32 0.0, %v2704
      %2706 = vmatprep.mubr.f32.mxu0 0.0
      %2707 = vmatmul.mubr.f32.gmra.mxu0 %v2627
      %v2708 = vpop.f32.mrf.mxu0
      %v2709 = vadd.f32 0.0, %v2708
      %v2710 = vpop.f32.mrf.mxu0
      %v2711 = vadd.f32 0.0, %v2710
      %2712 = vmatprep.mubr.f32.mxu0 0.0
      %2713 = vmatmul.mubr.f32.gmra.mxu0 %v2630
      %v2714 = vpop.f32.mrf.mxu0
      %v2715 = vadd.f32 0.0, %v2714
      %v2716 = vpop.f32.mrf.mxu0
      %v2717 = vadd.f32 0.0, %v2716
      %2718 = vdwg.mxu0
      %v2719 = vadd.f32 %v2585, %v2703
      %v2720 = vadd.f32 %v2586, %v2705
      %v2721 = vadd.f32 %v2587, %v2709
      %v2722 = vadd.f32 %v2588, %v2711
      %v2723 = vadd.f32 %v2589, %v2715
      %v2724 = vadd.f32 %v2590, %v2717
      %s2725 = scalar_lea.vmem %s3, 144
      %v2726 = vld [vmem:[%s2725] sm:$0xff]
      %v2727 = vld [vmem:[%s2725 + $0x8] sm:$0xff]
      %v2728 = vld [vmem:[%s2725 + $0x10] sm:$0xf]
      %2729 = vrot.lane.b32.xlu0 %v2037, 111
      %v2730 = vpop.permute.xlu0 %2729
      %2731 = vrot.lane.b32.xlu0 %v2038, 111
      %v2732 = vpop.permute.xlu0 %2731
      %2733 = vrot.lane.b32.xlu0 %v2039, 111
      %v2734 = vpop.permute.xlu0 %2733
      %2735 = vrot.lane.b32.xlu0 %v2040, 111
      %v2736 = vpop.permute.xlu0 %2735
      %2737 = vrot.lane.b32.xlu0 %v2041, 111
      %v2738 = vpop.permute.xlu0 %2737
      %2739 = vrot.lane.b32.xlu0 %v2042, 111
      %v2740 = vpop.permute.xlu0 %2739
      %2741 = vrot.lane.b32.xlu0 %v2043, 111
      %v2742 = vpop.permute.xlu0 %2741
      %2743 = vrot.lane.b32.xlu0 %v2044, 111
      %v2744 = vpop.permute.xlu0 %2743
      %2745 = vrot.lane.b32.xlu0 %v2045, 111
      %v2746 = vpop.permute.xlu0 %2745
      %v2747 = vsel %vm670, %v2730, %v2732
      %v2748 = vsel %vm670, %v2732, %v2734
      %v2749 = vsel %vm670, %v2736, %v2738
      %v2750 = vsel %vm670, %v2738, %v2740
      %v2751 = vsel %vm670, %v2742, %v2744
      %v2752 = vsel %vm670, %v2744, %v2746
      %v2758 = vsel %vm1931, %v2726, 0
      %v2761 = vsel %vm1931, %v2727, 0
      %v2764 = vsel %vm1931, %v2728, 0
      %v2766 = vsel %vm1941, %v2751, 0
      %v2768 = vsel %vm1941, %v2752, 0
      %2770 = vmatprep.subr.mxu0 0.0
      %2771 = vmatpush1.msra.mxu0 0.0
      %2772 = vmatprep.subr.mxu0 0.0
      %2773 = vmatpush1.msra.mxu0 0.0
      %2774 = vmatprep.subr.mxu0 0.0
      %2775 = vmatpush1.msra.mxu0 0.0
      %2776 = vmatprep.subr.mxu0 0.0
      %2777 = vmatpush1.msra.mxu0 0.0
      %2778 = vmatprep.subr.mxu0 0.0
      %2779 = vmatpush1.msra.mxu0 0.0
      %2780 = vmatprep.subr.mxu0 0.0
      %2781 = vmatpush1.msra.mxu0 0.0
      %2782 = vmatprep.subr.mxu0 0.0
      %2783 = vmatpush1.msra.mxu0 0.0
      %2784 = vmatprep.subr.mxu0 0.0
      %2785 = vmatpush1.msra.mxu0 0.0
      %2786 = vmatprep.subr.mxu0 0.0
      %2787 = vmatpush1.msra.mxu0 0.0
      %2788 = vmatprep.subr.mxu0 0.0
      %2789 = vmatpush1.msra.mxu0 0.0
      %2790 = vmatprep.subr.mxu0 0.0
      %2791 = vmatpush1.msra.mxu0 0.0
      %2792 = vmatprep.subr.mxu0 0.0
      %2793 = vmatpush1.msra.mxu0 0.0
      %2794 = vmatprep.subr.mxu0 0.0
      %2795 = vmatpush1.msra.mxu0 0.0
      %2796 = vmatprep.subr.mxu0 %v2768
      %2797 = vmatpush1.msra.mxu0 %v2766
      %2798 = vmatprep.subr.mxu0 %v2750
      %2799 = vmatpush1.msra.mxu0 %v2749
      %2800 = vmatprep.subr.mxu0 %v2748
      %2801 = vmatpush1.msra.mxu0 %v2747
      %2802 = vmatprep.subr.mxu0 0.0
      %2803 = vmatpush2.msra.mxu0 0.0
      %2804 = vmatprep.subr.mxu0 0.0
      %2805 = vmatpush2.msra.mxu0 0.0
      %2806 = vmatprep.subr.mxu0 0.0
      %2807 = vmatpush2.msra.mxu0 0.0
      %2808 = vmatprep.subr.mxu0 0.0
      %2809 = vmatpush2.msra.mxu0 0.0
      %2810 = vmatprep.subr.mxu0 0.0
      %2811 = vmatpush2.msra.mxu0 0.0
      %2812 = vmatprep.subr.mxu0 0.0
      %2813 = vmatpush2.msra.mxu0 0.0
      %2814 = vmatprep.subr.mxu0 0.0
      %2815 = vmatpush2.msra.mxu0 0.0
      %2816 = vmatprep.subr.mxu0 0.0
      %2817 = vmatpush2.msra.mxu0 0.0
      %2818 = vmatprep.subr.mxu0 0.0
      %2819 = vmatpush2.msra.mxu0 0.0
      %2820 = vmatprep.subr.mxu0 0.0
      %2821 = vmatpush2.msra.mxu0 0.0
      %2822 = vmatprep.subr.mxu0 0.0
      %2823 = vmatpush2.msra.mxu0 0.0
      %2824 = vmatprep.subr.mxu0 0.0
      %2825 = vmatpush2.msra.mxu0 0.0
      %2826 = vmatprep.subr.mxu0 0.0
      %2827 = vmatpush2.msra.mxu0 0.0
      %2828 = vmatprep.subr.mxu0 0.0
      %2829 = vmatpush2.msra.mxu0 0.0
      %2830 = vmatprep.subr.mxu0 0.0
      %2831 = vmatpush2.msra.mxu0 0.0
      %2832 = vmatprep.subr.mxu0 0.0
      %2833 = vmatpush2.msra.mxu0 0.0
      %2834 = vmatprep.mubr.f32.mxu0 0.0
      %2835 = vmatmul.mubr.f32.gmra.mxu0 %v2758
      %v2836 = vpop.f32.mrf.mxu0
      %v2837 = vadd.f32 0.0, %v2836
      %v2838 = vpop.f32.mrf.mxu0
      %v2839 = vadd.f32 0.0, %v2838
      %2840 = vmatprep.mubr.f32.mxu0 0.0
      %2841 = vmatmul.mubr.f32.gmra.mxu0 %v2761
      %v2842 = vpop.f32.mrf.mxu0
      %v2843 = vadd.f32 0.0, %v2842
      %v2844 = vpop.f32.mrf.mxu0
      %v2845 = vadd.f32 0.0, %v2844
      %2846 = vmatprep.mubr.f32.mxu0 0.0
      %2847 = vmatmul.mubr.f32.gmra.mxu0 %v2764
      %v2848 = vpop.f32.mrf.mxu0
      %v2849 = vadd.f32 0.0, %v2848
      %v2850 = vpop.f32.mrf.mxu0
      %v2851 = vadd.f32 0.0, %v2850
      %2852 = vdwg.mxu0
      %v2853 = vadd.f32 %v2719, %v2837
      %v2854 = vadd.f32 %v2720, %v2839
      %v2855 = vadd.f32 %v2721, %v2843
      %v2856 = vadd.f32 %v2722, %v2845
      %v2857 = vadd.f32 %v2723, %v2849
      %v2858 = vadd.f32 %v2724, %v2851
      %s2859 = scalar_lea.vmem %s3, 168
      %v2860 = vld [vmem:[%s2859] sm:$0xff]
      %v2861 = vld [vmem:[%s2859 + $0x8] sm:$0xff]
      %v2862 = vld [vmem:[%s2859 + $0x10] sm:$0xf]
      %2863 = vrot.lane.b32.xlu0 %v2037, 110
      %v2864 = vpop.permute.xlu0 %2863
      %2865 = vrot.lane.b32.xlu0 %v2038, 110
      %v2866 = vpop.permute.xlu0 %2865
      %2867 = vrot.lane.b32.xlu0 %v2039, 110
      %v2868 = vpop.permute.xlu0 %2867
      %2869 = vrot.lane.b32.xlu0 %v2040, 110
      %v2870 = vpop.permute.xlu0 %2869
      %2871 = vrot.lane.b32.xlu0 %v2041, 110
      %v2872 = vpop.permute.xlu0 %2871
      %2873 = vrot.lane.b32.xlu0 %v2042, 110
      %v2874 = vpop.permute.xlu0 %2873
      %2875 = vrot.lane.b32.xlu0 %v2043, 110
      %v2876 = vpop.permute.xlu0 %2875
      %2877 = vrot.lane.b32.xlu0 %v2044, 110
      %v2878 = vpop.permute.xlu0 %2877
      %2879 = vrot.lane.b32.xlu0 %v2045, 110
      %v2880 = vpop.permute.xlu0 %2879
      %v2881 = vsel %vm737, %v2864, %v2866
      %v2882 = vsel %vm737, %v2866, %v2868
      %v2883 = vsel %vm737, %v2870, %v2872
      %v2884 = vsel %vm737, %v2872, %v2874
      %v2885 = vsel %vm737, %v2876, %v2878
      %v2886 = vsel %vm737, %v2878, %v2880
      %v2892 = vsel %vm1931, %v2860, 0
      %v2895 = vsel %vm1931, %v2861, 0
      %v2898 = vsel %vm1931, %v2862, 0
      %v2900 = vsel %vm1941, %v2885, 0
      %v2902 = vsel %vm1941, %v2886, 0
      %2904 = vmatprep.subr.mxu0 0.0
      %2905 = vmatpush1.msra.mxu0 0.0
      %2906 = vmatprep.subr.mxu0 0.0
      %2907 = vmatpush1.msra.mxu0 0.0
      %2908 = vmatprep.subr.mxu0 0.0
      %2909 = vmatpush1.msra.mxu0 0.0
      %2910 = vmatprep.subr.mxu0 0.0
      %2911 = vmatpush1.msra.mxu0 0.0
      %2912 = vmatprep.subr.mxu0 0.0
      %2913 = vmatpush1.msra.mxu0 0.0
      %2914 = vmatprep.subr.mxu0 0.0
      %2915 = vmatpush1.msra.mxu0 0.0
      %2916 = vmatprep.subr.mxu0 0.0
      %2917 = vmatpush1.msra.mxu0 0.0
      %2918 = vmatprep.subr.mxu0 0.0
      %2919 = vmatpush1.msra.mxu0 0.0
      %2920 = vmatprep.subr.mxu0 0.0
      %2921 = vmatpush1.msra.mxu0 0.0
      %2922 = vmatprep.subr.mxu0 0.0
      %2923 = vmatpush1.msra.mxu0 0.0
      %2924 = vmatprep.subr.mxu0 0.0
      %2925 = vmatpush1.msra.mxu0 0.0
      %2926 = vmatprep.subr.mxu0 0.0
      %2927 = vmatpush1.msra.mxu0 0.0
      %2928 = vmatprep.subr.mxu0 0.0
      %2929 = vmatpush1.msra.mxu0 0.0
      %2930 = vmatprep.subr.mxu0 %v2902
      %2931 = vmatpush1.msra.mxu0 %v2900
      %2932 = vmatprep.subr.mxu0 %v2884
      %2933 = vmatpush1.msra.mxu0 %v2883
      %2934 = vmatprep.subr.mxu0 %v2882
      %2935 = vmatpush1.msra.mxu0 %v2881
      %2936 = vmatprep.subr.mxu0 0.0
      %2937 = vmatpush2.msra.mxu0 0.0
      %2938 = vmatprep.subr.mxu0 0.0
      %2939 = vmatpush2.msra.mxu0 0.0
      %2940 = vmatprep.subr.mxu0 0.0
      %2941 = vmatpush2.msra.mxu0 0.0
      %2942 = vmatprep.subr.mxu0 0.0
      %2943 = vmatpush2.msra.mxu0 0.0
      %2944 = vmatprep.subr.mxu0 0.0
      %2945 = vmatpush2.msra.mxu0 0.0
      %2946 = vmatprep.subr.mxu0 0.0
      %2947 = vmatpush2.msra.mxu0 0.0
      %2948 = vmatprep.subr.mxu0 0.0
      %2949 = vmatpush2.msra.mxu0 0.0
      %2950 = vmatprep.subr.mxu0 0.0
      %2951 = vmatpush2.msra.mxu0 0.0
      %2952 = vmatprep.subr.mxu0 0.0
      %2953 = vmatpush2.msra.mxu0 0.0
      %2954 = vmatprep.subr.mxu0 0.0
      %2955 = vmatpush2.msra.mxu0 0.0
      %2956 = vmatprep.subr.mxu0 0.0
      %2957 = vmatpush2.msra.mxu0 0.0
      %2958 = vmatprep.subr.mxu0 0.0
      %2959 = vmatpush2.msra.mxu0 0.0
      %2960 = vmatprep.subr.mxu0 0.0
      %2961 = vmatpush2.msra.mxu0 0.0
      %2962 = vmatprep.subr.mxu0 0.0
      %2963 = vmatpush2.msra.mxu0 0.0
      %2964 = vmatprep.subr.mxu0 0.0
      %2965 = vmatpush2.msra.mxu0 0.0
      %2966 = vmatprep.subr.mxu0 0.0
      %2967 = vmatpush2.msra.mxu0 0.0
      %2968 = vmatprep.mubr.f32.mxu0 0.0
      %2969 = vmatmul.mubr.f32.gmra.mxu0 %v2892
      %v2970 = vpop.f32.mrf.mxu0
      %v2971 = vadd.f32 0.0, %v2970
      %v2972 = vpop.f32.mrf.mxu0
      %v2973 = vadd.f32 0.0, %v2972
      %2974 = vmatprep.mubr.f32.mxu0 0.0
      %2975 = vmatmul.mubr.f32.gmra.mxu0 %v2895
      %v2976 = vpop.f32.mrf.mxu0
      %v2977 = vadd.f32 0.0, %v2976
      %v2978 = vpop.f32.mrf.mxu0
      %v2979 = vadd.f32 0.0, %v2978
      %2980 = vmatprep.mubr.f32.mxu0 0.0
      %2981 = vmatmul.mubr.f32.gmra.mxu0 %v2898
      %v2982 = vpop.f32.mrf.mxu0
      %v2983 = vadd.f32 0.0, %v2982
      %v2984 = vpop.f32.mrf.mxu0
      %v2985 = vadd.f32 0.0, %v2984
      %2986 = vdwg.mxu0
      %v2987 = vadd.f32 %v2853, %v2971
      %v2988 = vadd.f32 %v2854, %v2973
      %v2989 = vadd.f32 %v2855, %v2977
      %v2990 = vadd.f32 %v2856, %v2979
      %v2991 = vadd.f32 %v2857, %v2983
      %v2992 = vadd.f32 %v2858, %v2985
      %s2993 = scalar_lea.vmem %s3, 192
      %v2994 = vld [vmem:[%s2993] sm:$0xff]
      %v2995 = vld [vmem:[%s2993 + $0x8] sm:$0xff]
      %v2996 = vld [vmem:[%s2993 + $0x10] sm:$0xf]
      %2997 = vrot.lane.b32.xlu0 %v2037, 109
      %v2998 = vpop.permute.xlu0 %2997
      %2999 = vrot.lane.b32.xlu0 %v2038, 109
      %v3000 = vpop.permute.xlu0 %2999
      %3001 = vrot.lane.b32.xlu0 %v2039, 109
      %v3002 = vpop.permute.xlu0 %3001
      %3003 = vrot.lane.b32.xlu0 %v2040, 109
      %v3004 = vpop.permute.xlu0 %3003
      %3005 = vrot.lane.b32.xlu0 %v2041, 109
      %v3006 = vpop.permute.xlu0 %3005
      %3007 = vrot.lane.b32.xlu0 %v2042, 109
      %v3008 = vpop.permute.xlu0 %3007
      %3009 = vrot.lane.b32.xlu0 %v2043, 109
      %v3010 = vpop.permute.xlu0 %3009
      %3011 = vrot.lane.b32.xlu0 %v2044, 109
      %v3012 = vpop.permute.xlu0 %3011
      %3013 = vrot.lane.b32.xlu0 %v2045, 109
      %v3014 = vpop.permute.xlu0 %3013
      %v3015 = vsel %vm804, %v2998, %v3000
      %v3016 = vsel %vm804, %v3000, %v3002
      %v3017 = vsel %vm804, %v3004, %v3006
      %v3018 = vsel %vm804, %v3006, %v3008
      %v3019 = vsel %vm804, %v3010, %v3012
      %v3020 = vsel %vm804, %v3012, %v3014
      %v3026 = vsel %vm1931, %v2994, 0
      %v3029 = vsel %vm1931, %v2995, 0
      %v3032 = vsel %vm1931, %v2996, 0
      %v3034 = vsel %vm1941, %v3019, 0
      %v3036 = vsel %vm1941, %v3020, 0
      %3038 = vmatprep.subr.mxu0 0.0
      %3039 = vmatpush1.msra.mxu0 0.0
      %3040 = vmatprep.subr.mxu0 0.0
      %3041 = vmatpush1.msra.mxu0 0.0
      %3042 = vmatprep.subr.mxu0 0.0
      %3043 = vmatpush1.msra.mxu0 0.0
      %3044 = vmatprep.subr.mxu0 0.0
      %3045 = vmatpush1.msra.mxu0 0.0
      %3046 = vmatprep.subr.mxu0 0.0
      %3047 = vmatpush1.msra.mxu0 0.0
      %3048 = vmatprep.subr.mxu0 0.0
      %3049 = vmatpush1.msra.mxu0 0.0
      %3050 = vmatprep.subr.mxu0 0.0
      %3051 = vmatpush1.msra.mxu0 0.0
      %3052 = vmatprep.subr.mxu0 0.0
      %3053 = vmatpush1.msra.mxu0 0.0
      %3054 = vmatprep.subr.mxu0 0.0
      %3055 = vmatpush1.msra.mxu0 0.0
      %3056 = vmatprep.subr.mxu0 0.0
      %3057 = vmatpush1.msra.mxu0 0.0
      %3058 = vmatprep.subr.mxu0 0.0
      %3059 = vmatpush1.msra.mxu0 0.0
      %3060 = vmatprep.subr.mxu0 0.0
      %3061 = vmatpush1.msra.mxu0 0.0
      %3062 = vmatprep.subr.mxu0 0.0
      %3063 = vmatpush1.msra.mxu0 0.0
      %3064 = vmatprep.subr.mxu0 %v3036
      %3065 = vmatpush1.msra.mxu0 %v3034
      %3066 = vmatprep.subr.mxu0 %v3018
      %3067 = vmatpush1.msra.mxu0 %v3017
      %3068 = vmatprep.subr.mxu0 %v3016
      %3069 = vmatpush1.msra.mxu0 %v3015
      %3070 = vmatprep.subr.mxu0 0.0
      %3071 = vmatpush2.msra.mxu0 0.0
      %3072 = vmatprep.subr.mxu0 0.0
      %3073 = vmatpush2.msra.mxu0 0.0
      %3074 = vmatprep.subr.mxu0 0.0
      %3075 = vmatpush2.msra.mxu0 0.0
      %3076 = vmatprep.subr.mxu0 0.0
      %3077 = vmatpush2.msra.mxu0 0.0
      %3078 = vmatprep.subr.mxu0 0.0
      %3079 = vmatpush2.msra.mxu0 0.0
      %3080 = vmatprep.subr.mxu0 0.0
      %3081 = vmatpush2.msra.mxu0 0.0
      %3082 = vmatprep.subr.mxu0 0.0
      %3083 = vmatpush2.msra.mxu0 0.0
      %3084 = vmatprep.subr.mxu0 0.0
      %3085 = vmatpush2.msra.mxu0 0.0
      %3086 = vmatprep.subr.mxu0 0.0
      %3087 = vmatpush2.msra.mxu0 0.0
      %3088 = vmatprep.subr.mxu0 0.0
      %3089 = vmatpush2.msra.mxu0 0.0
      %3090 = vmatprep.subr.mxu0 0.0
      %3091 = vmatpush2.msra.mxu0 0.0
      %3092 = vmatprep.subr.mxu0 0.0
      %3093 = vmatpush2.msra.mxu0 0.0
      %3094 = vmatprep.subr.mxu0 0.0
      %3095 = vmatpush2.msra.mxu0 0.0
      %3096 = vmatprep.subr.mxu0 0.0
      %3097 = vmatpush2.msra.mxu0 0.0
      %3098 = vmatprep.subr.mxu0 0.0
      %3099 = vmatpush2.msra.mxu0 0.0
      %3100 = vmatprep.subr.mxu0 0.0
      %3101 = vmatpush2.msra.mxu0 0.0
      %3102 = vmatprep.mubr.f32.mxu0 0.0
      %3103 = vmatmul.mubr.f32.gmra.mxu0 %v3026
      %v3104 = vpop.f32.mrf.mxu0
      %v3105 = vadd.f32 0.0, %v3104
      %v3106 = vpop.f32.mrf.mxu0
      %v3107 = vadd.f32 0.0, %v3106
      %3108 = vmatprep.mubr.f32.mxu0 0.0
      %3109 = vmatmul.mubr.f32.gmra.mxu0 %v3029
      %v3110 = vpop.f32.mrf.mxu0
      %v3111 = vadd.f32 0.0, %v3110
      %v3112 = vpop.f32.mrf.mxu0
      %v3113 = vadd.f32 0.0, %v3112
      %3114 = vmatprep.mubr.f32.mxu0 0.0
      %3115 = vmatmul.mubr.f32.gmra.mxu0 %v3032
      %v3116 = vpop.f32.mrf.mxu0
      %v3117 = vadd.f32 0.0, %v3116
      %v3118 = vpop.f32.mrf.mxu0
      %v3119 = vadd.f32 0.0, %v3118
      %3120 = vdwg.mxu0
      %v3121 = vadd.f32 %v2987, %v3105
      %v3122 = vadd.f32 %v2988, %v3107
      %v3123 = vadd.f32 %v2989, %v3111
      %v3124 = vadd.f32 %v2990, %v3113
      %v3125 = vadd.f32 %v2991, %v3117
      %v3126 = vadd.f32 %v2992, %v3119
      %s3127 = scalar_lea.vmem %s3, 216
      %v3128 = vld [vmem:[%s3127] sm:$0xff]
      %v3129 = vld [vmem:[%s3127 + $0x8] sm:$0xff]
      %v3130 = vld [vmem:[%s3127 + $0x10] sm:$0xf]
      %3131 = vrot.lane.b32.xlu0 %v2037, 108
      %v3132 = vpop.permute.xlu0 %3131
      %3133 = vrot.lane.b32.xlu0 %v2038, 108
      %v3134 = vpop.permute.xlu0 %3133
      %3135 = vrot.lane.b32.xlu0 %v2039, 108
      %v3136 = vpop.permute.xlu0 %3135
      %3137 = vrot.lane.b32.xlu0 %v2040, 108
      %v3138 = vpop.permute.xlu0 %3137
      %3139 = vrot.lane.b32.xlu0 %v2041, 108
      %v3140 = vpop.permute.xlu0 %3139
      %3141 = vrot.lane.b32.xlu0 %v2042, 108
      %v3142 = vpop.permute.xlu0 %3141
      %3143 = vrot.lane.b32.xlu0 %v2043, 108
      %v3144 = vpop.permute.xlu0 %3143
      %3145 = vrot.lane.b32.xlu0 %v2044, 108
      %v3146 = vpop.permute.xlu0 %3145
      %3147 = vrot.lane.b32.xlu0 %v2045, 108
      %v3148 = vpop.permute.xlu0 %3147
      %v3149 = vsel %vm871, %v3132, %v3134
      %v3150 = vsel %vm871, %v3134, %v3136
      %v3151 = vsel %vm871, %v3138, %v3140
      %v3152 = vsel %vm871, %v3140, %v3142
      %v3153 = vsel %vm871, %v3144, %v3146
      %v3154 = vsel %vm871, %v3146, %v3148
      %v3160 = vsel %vm1931, %v3128, 0
      %v3163 = vsel %vm1931, %v3129, 0
      %v3166 = vsel %vm1931, %v3130, 0
      %v3168 = vsel %vm1941, %v3153, 0
      %v3170 = vsel %vm1941, %v3154, 0
      %3172 = vmatprep.subr.mxu0 0.0
      %3173 = vmatpush1.msra.mxu0 0.0
      %3174 = vmatprep.subr.mxu0 0.0
      %3175 = vmatpush1.msra.mxu0 0.0
      %3176 = vmatprep.subr.mxu0 0.0
      %3177 = vmatpush1.msra.mxu0 0.0
      %3178 = vmatprep.subr.mxu0 0.0
      %3179 = vmatpush1.msra.mxu0 0.0
      %3180 = vmatprep.subr.mxu0 0.0
      %3181 = vmatpush1.msra.mxu0 0.0
      %3182 = vmatprep.subr.mxu0 0.0
      %3183 = vmatpush1.msra.mxu0 0.0
      %3184 = vmatprep.subr.mxu0 0.0
      %3185 = vmatpush1.msra.mxu0 0.0
      %3186 = vmatprep.subr.mxu0 0.0
      %3187 = vmatpush1.msra.mxu0 0.0
      %3188 = vmatprep.subr.mxu0 0.0
      %3189 = vmatpush1.msra.mxu0 0.0
      %3190 = vmatprep.subr.mxu0 0.0
      %3191 = vmatpush1.msra.mxu0 0.0
      %3192 = vmatprep.subr.mxu0 0.0
      %3193 = vmatpush1.msra.mxu0 0.0
      %3194 = vmatprep.subr.mxu0 0.0
      %3195 = vmatpush1.msra.mxu0 0.0
      %3196 = vmatprep.subr.mxu0 0.0
      %3197 = vmatpush1.msra.mxu0 0.0
      %3198 = vmatprep.subr.mxu0 %v3170
      %3199 = vmatpush1.msra.mxu0 %v3168
      %3200 = vmatprep.subr.mxu0 %v3152
      %3201 = vmatpush1.msra.mxu0 %v3151
      %3202 = vmatprep.subr.mxu0 %v3150
      %3203 = vmatpush1.msra.mxu0 %v3149
      %3204 = vmatprep.subr.mxu0 0.0
      %3205 = vmatpush2.msra.mxu0 0.0
      %3206 = vmatprep.subr.mxu0 0.0
      %3207 = vmatpush2.msra.mxu0 0.0
      %3208 = vmatprep.subr.mxu0 0.0
      %3209 = vmatpush2.msra.mxu0 0.0
      %3210 = vmatprep.subr.mxu0 0.0
      %3211 = vmatpush2.msra.mxu0 0.0
      %3212 = vmatprep.subr.mxu0 0.0
      %3213 = vmatpush2.msra.mxu0 0.0
      %3214 = vmatprep.subr.mxu0 0.0
      %3215 = vmatpush2.msra.mxu0 0.0
      %3216 = vmatprep.subr.mxu0 0.0
      %3217 = vmatpush2.msra.mxu0 0.0
      %3218 = vmatprep.subr.mxu0 0.0
      %3219 = vmatpush2.msra.mxu0 0.0
      %3220 = vmatprep.subr.mxu0 0.0
      %3221 = vmatpush2.msra.mxu0 0.0
      %3222 = vmatprep.subr.mxu0 0.0
      %3223 = vmatpush2.msra.mxu0 0.0
      %3224 = vmatprep.subr.mxu0 0.0
      %3225 = vmatpush2.msra.mxu0 0.0
      %3226 = vmatprep.subr.mxu0 0.0
      %3227 = vmatpush2.msra.mxu0 0.0
      %3228 = vmatprep.subr.mxu0 0.0
      %3229 = vmatpush2.msra.mxu0 0.0
      %3230 = vmatprep.subr.mxu0 0.0
      %3231 = vmatpush2.msra.mxu0 0.0
      %3232 = vmatprep.subr.mxu0 0.0
      %3233 = vmatpush2.msra.mxu0 0.0
      %3234 = vmatprep.subr.mxu0 0.0
      %3235 = vmatpush2.msra.mxu0 0.0
      %3236 = vmatprep.mubr.f32.mxu0 0.0
      %3237 = vmatmul.mubr.f32.gmra.mxu0 %v3160
      %v3238 = vpop.f32.mrf.mxu0
      %v3239 = vadd.f32 0.0, %v3238
      %v3240 = vpop.f32.mrf.mxu0
      %v3241 = vadd.f32 0.0, %v3240
      %3242 = vmatprep.mubr.f32.mxu0 0.0
      %3243 = vmatmul.mubr.f32.gmra.mxu0 %v3163
      %v3244 = vpop.f32.mrf.mxu0
      %v3245 = vadd.f32 0.0, %v3244
      %v3246 = vpop.f32.mrf.mxu0
      %v3247 = vadd.f32 0.0, %v3246
      %3248 = vmatprep.mubr.f32.mxu0 0.0
      %3249 = vmatmul.mubr.f32.gmra.mxu0 %v3166
      %v3250 = vpop.f32.mrf.mxu0
      %v3251 = vadd.f32 0.0, %v3250
      %v3252 = vpop.f32.mrf.mxu0
      %v3253 = vadd.f32 0.0, %v3252
      %3254 = vdwg.mxu0
      %v3255 = vadd.f32 %v3121, %v3239
      %v3256 = vadd.f32 %v3122, %v3241
      %v3257 = vadd.f32 %v3123, %v3245
      %v3258 = vadd.f32 %v3124, %v3247
      %v3259 = vadd.f32 %v3125, %v3251
      %v3260 = vadd.f32 %v3126, %v3253
      %s3261 = scalar_lea.vmem %s3, 240
      %v3262 = vld [vmem:[%s3261] sm:$0xff]
      %v3263 = vld [vmem:[%s3261 + $0x8] sm:$0xff]
      %v3264 = vld [vmem:[%s3261 + $0x10] sm:$0xf]
      %3265 = vrot.lane.b32.xlu0 %v2037, 96
      %v3266 = vpop.permute.xlu0 %3265
      %3267 = vrot.lane.b32.xlu0 %v2038, 96
      %v3268 = vpop.permute.xlu0 %3267
      %3269 = vrot.lane.b32.xlu0 %v2039, 96
      %v3270 = vpop.permute.xlu0 %3269
      %3271 = vrot.lane.b32.xlu0 %v2040, 96
      %v3272 = vpop.permute.xlu0 %3271
      %3273 = vrot.lane.b32.xlu0 %v2041, 96
      %v3274 = vpop.permute.xlu0 %3273
      %3275 = vrot.lane.b32.xlu0 %v2042, 96
      %v3276 = vpop.permute.xlu0 %3275
      %3277 = vrot.lane.b32.xlu0 %v2043, 96
      %v3278 = vpop.permute.xlu0 %3277
      %3279 = vrot.lane.b32.xlu0 %v2044, 96
      %v3280 = vpop.permute.xlu0 %3279
      %3281 = vrot.lane.b32.xlu0 %v2045, 96
      %v3282 = vpop.permute.xlu0 %3281
      %v3283 = vsel %vm938, %v3266, %v3268
      %v3284 = vsel %vm938, %v3268, %v3270
      %v3285 = vsel %vm938, %v3272, %v3274
      %v3286 = vsel %vm938, %v3274, %v3276
      %v3287 = vsel %vm938, %v3278, %v3280
      %v3288 = vsel %vm938, %v3280, %v3282
      %v3294 = vsel %vm1931, %v3262, 0
      %v3297 = vsel %vm1931, %v3263, 0
      %v3300 = vsel %vm1931, %v3264, 0
      %v3302 = vsel %vm1941, %v3287, 0
      %v3304 = vsel %vm1941, %v3288, 0
      %3306 = vmatprep.subr.mxu0 0.0
      %3307 = vmatpush1.msra.mxu0 0.0
      %3308 = vmatprep.subr.mxu0 0.0
      %3309 = vmatpush1.msra.mxu0 0.0
      %3310 = vmatprep.subr.mxu0 0.0
      %3311 = vmatpush1.msra.mxu0 0.0
      %3312 = vmatprep.subr.mxu0 0.0
      %3313 = vmatpush1.msra.mxu0 0.0
      %3314 = vmatprep.subr.mxu0 0.0
      %3315 = vmatpush1.msra.mxu0 0.0
      %3316 = vmatprep.subr.mxu0 0.0
      %3317 = vmatpush1.msra.mxu0 0.0
      %3318 = vmatprep.subr.mxu0 0.0
      %3319 = vmatpush1.msra.mxu0 0.0
      %3320 = vmatprep.subr.mxu0 0.0
      %3321 = vmatpush1.msra.mxu0 0.0
      %3322 = vmatprep.subr.mxu0 0.0
      %3323 = vmatpush1.msra.mxu0 0.0
      %3324 = vmatprep.subr.mxu0 0.0
      %3325 = vmatpush1.msra.mxu0 0.0
      %3326 = vmatprep.subr.mxu0 0.0
      %3327 = vmatpush1.msra.mxu0 0.0
      %3328 = vmatprep.subr.mxu0 0.0
      %3329 = vmatpush1.msra.mxu0 0.0
      %3330 = vmatprep.subr.mxu0 0.0
      %3331 = vmatpush1.msra.mxu0 0.0
      %3332 = vmatprep.subr.mxu0 %v3304
      %3333 = vmatpush1.msra.mxu0 %v3302
      %3334 = vmatprep.subr.mxu0 %v3286
      %3335 = vmatpush1.msra.mxu0 %v3285
      %3336 = vmatprep.subr.mxu0 %v3284
      %3337 = vmatpush1.msra.mxu0 %v3283
      %3338 = vmatprep.subr.mxu0 0.0
      %3339 = vmatpush2.msra.mxu0 0.0
      %3340 = vmatprep.subr.mxu0 0.0
      %3341 = vmatpush2.msra.mxu0 0.0
      %3342 = vmatprep.subr.mxu0 0.0
      %3343 = vmatpush2.msra.mxu0 0.0
      %3344 = vmatprep.subr.mxu0 0.0
      %3345 = vmatpush2.msra.mxu0 0.0
      %3346 = vmatprep.subr.mxu0 0.0
      %3347 = vmatpush2.msra.mxu0 0.0
      %3348 = vmatprep.subr.mxu0 0.0
      %3349 = vmatpush2.msra.mxu0 0.0
      %3350 = vmatprep.subr.mxu0 0.0
      %3351 = vmatpush2.msra.mxu0 0.0
      %3352 = vmatprep.subr.mxu0 0.0
      %3353 = vmatpush2.msra.mxu0 0.0
      %3354 = vmatprep.subr.mxu0 0.0
      %3355 = vmatpush2.msra.mxu0 0.0
      %3356 = vmatprep.subr.mxu0 0.0
      %3357 = vmatpush2.msra.mxu0 0.0
      %3358 = vmatprep.subr.mxu0 0.0
      %3359 = vmatpush2.msra.mxu0 0.0
      %3360 = vmatprep.subr.mxu0 0.0
      %3361 = vmatpush2.msra.mxu0 0.0
      %3362 = vmatprep.subr.mxu0 0.0
      %3363 = vmatpush2.msra.mxu0 0.0
      %3364 = vmatprep.subr.mxu0 0.0
      %3365 = vmatpush2.msra.mxu0 0.0
      %3366 = vmatprep.subr.mxu0 0.0
      %3367 = vmatpush2.msra.mxu0 0.0
      %3368 = vmatprep.subr.mxu0 0.0
      %3369 = vmatpush2.msra.mxu0 0.0
      %3370 = vmatprep.mubr.f32.mxu0 0.0
      %3371 = vmatmul.mubr.f32.gmra.mxu0 %v3294
      %v3372 = vpop.f32.mrf.mxu0
      %v3373 = vadd.f32 0.0, %v3372
      %v3374 = vpop.f32.mrf.mxu0
      %v3375 = vadd.f32 0.0, %v3374
      %3376 = vmatprep.mubr.f32.mxu0 0.0
      %3377 = vmatmul.mubr.f32.gmra.mxu0 %v3297
      %v3378 = vpop.f32.mrf.mxu0
      %v3379 = vadd.f32 0.0, %v3378
      %v3380 = vpop.f32.mrf.mxu0
      %v3381 = vadd.f32 0.0, %v3380
      %3382 = vmatprep.mubr.f32.mxu0 0.0
      %3383 = vmatmul.mubr.f32.gmra.mxu0 %v3300
      %v3384 = vpop.f32.mrf.mxu0
      %v3385 = vadd.f32 0.0, %v3384
      %v3386 = vpop.f32.mrf.mxu0
      %v3387 = vadd.f32 0.0, %v3386
      %3388 = vdwg.mxu0
      %v3389 = vadd.f32 %v3255, %v3373
      %v3390 = vadd.f32 %v3256, %v3375
      %v3391 = vadd.f32 %v3257, %v3379
      %v3392 = vadd.f32 %v3258, %v3381
      %v3393 = vadd.f32 %v3259, %v3385
      %v3394 = vadd.f32 %v3260, %v3387
      %s3395 = scalar_lea.vmem %s3, 264
      %v3396 = vld [vmem:[%s3395] sm:$0xff]
      %v3397 = vld [vmem:[%s3395 + $0x8] sm:$0xff]
      %v3398 = vld [vmem:[%s3395 + $0x10] sm:$0xf]
      %3399 = vrot.lane.b32.xlu0 %v2037, 95
      %v3400 = vpop.permute.xlu0 %3399
      %3401 = vrot.lane.b32.xlu0 %v2038, 95
      %v3402 = vpop.permute.xlu0 %3401
      %3403 = vrot.lane.b32.xlu0 %v2039, 95
      %v3404 = vpop.permute.xlu0 %3403
      %3405 = vrot.lane.b32.xlu0 %v2040, 95
      %v3406 = vpop.permute.xlu0 %3405
      %3407 = vrot.lane.b32.xlu0 %v2041, 95
      %v3408 = vpop.permute.xlu0 %3407
      %3409 = vrot.lane.b32.xlu0 %v2042, 95
      %v3410 = vpop.permute.xlu0 %3409
      %3411 = vrot.lane.b32.xlu0 %v2043, 95
      %v3412 = vpop.permute.xlu0 %3411
      %3413 = vrot.lane.b32.xlu0 %v2044, 95
      %v3414 = vpop.permute.xlu0 %3413
      %3415 = vrot.lane.b32.xlu0 %v2045, 95
      %v3416 = vpop.permute.xlu0 %3415
      %v3417 = vsel %vm1005, %v3400, %v3402
      %v3418 = vsel %vm1005, %v3402, %v3404
      %v3419 = vsel %vm1005, %v3406, %v3408
      %v3420 = vsel %vm1005, %v3408, %v3410
      %v3421 = vsel %vm1005, %v3412, %v3414
      %v3422 = vsel %vm1005, %v3414, %v3416
      %v3428 = vsel %vm1931, %v3396, 0
      %v3431 = vsel %vm1931, %v3397, 0
      %v3434 = vsel %vm1931, %v3398, 0
      %v3436 = vsel %vm1941, %v3421, 0
      %v3438 = vsel %vm1941, %v3422, 0
      %3440 = vmatprep.subr.mxu0 0.0
      %3441 = vmatpush1.msra.mxu0 0.0
      %3442 = vmatprep.subr.mxu0 0.0
      %3443 = vmatpush1.msra.mxu0 0.0
      %3444 = vmatprep.subr.mxu0 0.0
      %3445 = vmatpush1.msra.mxu0 0.0
      %3446 = vmatprep.subr.mxu0 0.0
      %3447 = vmatpush1.msra.mxu0 0.0
      %3448 = vmatprep.subr.mxu0 0.0
      %3449 = vmatpush1.msra.mxu0 0.0
      %3450 = vmatprep.subr.mxu0 0.0
      %3451 = vmatpush1.msra.mxu0 0.0
      %3452 = vmatprep.subr.mxu0 0.0
      %3453 = vmatpush1.msra.mxu0 0.0
      %3454 = vmatprep.subr.mxu0 0.0
      %3455 = vmatpush1.msra.mxu0 0.0
      %3456 = vmatprep.subr.mxu0 0.0
      %3457 = vmatpush1.msra.mxu0 0.0
      %3458 = vmatprep.subr.mxu0 0.0
      %3459 = vmatpush1.msra.mxu0 0.0
      %3460 = vmatprep.subr.mxu0 0.0
      %3461 = vmatpush1.msra.mxu0 0.0
      %3462 = vmatprep.subr.mxu0 0.0
      %3463 = vmatpush1.msra.mxu0 0.0
      %3464 = vmatprep.subr.mxu0 0.0
      %3465 = vmatpush1.msra.mxu0 0.0
      %3466 = vmatprep.subr.mxu0 %v3438
      %3467 = vmatpush1.msra.mxu0 %v3436
      %3468 = vmatprep.subr.mxu0 %v3420
      %3469 = vmatpush1.msra.mxu0 %v3419
      %3470 = vmatprep.subr.mxu0 %v3418
      %3471 = vmatpush1.msra.mxu0 %v3417
      %3472 = vmatprep.subr.mxu0 0.0
      %3473 = vmatpush2.msra.mxu0 0.0
      %3474 = vmatprep.subr.mxu0 0.0
      %3475 = vmatpush2.msra.mxu0 0.0
      %3476 = vmatprep.subr.mxu0 0.0
      %3477 = vmatpush2.msra.mxu0 0.0
      %3478 = vmatprep.subr.mxu0 0.0
      %3479 = vmatpush2.msra.mxu0 0.0
      %3480 = vmatprep.subr.mxu0 0.0
      %3481 = vmatpush2.msra.mxu0 0.0
      %3482 = vmatprep.subr.mxu0 0.0
      %3483 = vmatpush2.msra.mxu0 0.0
      %3484 = vmatprep.subr.mxu0 0.0
      %3485 = vmatpush2.msra.mxu0 0.0
      %3486 = vmatprep.subr.mxu0 0.0
      %3487 = vmatpush2.msra.mxu0 0.0
      %3488 = vmatprep.subr.mxu0 0.0
      %3489 = vmatpush2.msra.mxu0 0.0
      %3490 = vmatprep.subr.mxu0 0.0
      %3491 = vmatpush2.msra.mxu0 0.0
      %3492 = vmatprep.subr.mxu0 0.0
      %3493 = vmatpush2.msra.mxu0 0.0
      %3494 = vmatprep.subr.mxu0 0.0
      %3495 = vmatpush2.msra.mxu0 0.0
      %3496 = vmatprep.subr.mxu0 0.0
      %3497 = vmatpush2.msra.mxu0 0.0
      %3498 = vmatprep.subr.mxu0 0.0
      %3499 = vmatpush2.msra.mxu0 0.0
      %3500 = vmatprep.subr.mxu0 0.0
      %3501 = vmatpush2.msra.mxu0 0.0
      %3502 = vmatprep.subr.mxu0 0.0
      %3503 = vmatpush2.msra.mxu0 0.0
      %3504 = vmatprep.mubr.f32.mxu0 0.0
      %3505 = vmatmul.mubr.f32.gmra.mxu0 %v3428
      %v3506 = vpop.f32.mrf.mxu0
      %v3507 = vadd.f32 0.0, %v3506
      %v3508 = vpop.f32.mrf.mxu0
      %v3509 = vadd.f32 0.0, %v3508
      %3510 = vmatprep.mubr.f32.mxu0 0.0
      %3511 = vmatmul.mubr.f32.gmra.mxu0 %v3431
      %v3512 = vpop.f32.mrf.mxu0
      %v3513 = vadd.f32 0.0, %v3512
      %v3514 = vpop.f32.mrf.mxu0
      %v3515 = vadd.f32 0.0, %v3514
      %3516 = vmatprep.mubr.f32.mxu0 0.0
      %3517 = vmatmul.mubr.f32.gmra.mxu0 %v3434
      %v3518 = vpop.f32.mrf.mxu0
      %v3519 = vadd.f32 0.0, %v3518
      %v3520 = vpop.f32.mrf.mxu0
      %v3521 = vadd.f32 0.0, %v3520
      %3522 = vdwg.mxu0
      %v3523 = vadd.f32 %v3389, %v3507
      %v3524 = vadd.f32 %v3390, %v3509
      %v3525 = vadd.f32 %v3391, %v3513
      %v3526 = vadd.f32 %v3392, %v3515
      %v3527 = vadd.f32 %v3393, %v3519
      %v3528 = vadd.f32 %v3394, %v3521
      %s3529 = scalar_lea.vmem %s3, 288
      %v3530 = vld [vmem:[%s3529] sm:$0xff]
      %v3531 = vld [vmem:[%s3529 + $0x8] sm:$0xff]
      %v3532 = vld [vmem:[%s3529 + $0x10] sm:$0xf]
      %3533 = vrot.lane.b32.xlu0 %v2037, 94
      %v3534 = vpop.permute.xlu0 %3533
      %3535 = vrot.lane.b32.xlu0 %v2038, 94
      %v3536 = vpop.permute.xlu0 %3535
      %3537 = vrot.lane.b32.xlu0 %v2039, 94
      %v3538 = vpop.permute.xlu0 %3537
      %3539 = vrot.lane.b32.xlu0 %v2040, 94
      %v3540 = vpop.permute.xlu0 %3539
      %3541 = vrot.lane.b32.xlu0 %v2041, 94
      %v3542 = vpop.permute.xlu0 %3541
      %3543 = vrot.lane.b32.xlu0 %v2042, 94
      %v3544 = vpop.permute.xlu0 %3543
      %3545 = vrot.lane.b32.xlu0 %v2043, 94
      %v3546 = vpop.permute.xlu0 %3545
      %3547 = vrot.lane.b32.xlu0 %v2044, 94
      %v3548 = vpop.permute.xlu0 %3547
      %3549 = vrot.lane.b32.xlu0 %v2045, 94
      %v3550 = vpop.permute.xlu0 %3549
      %v3551 = vsel %vm1072, %v3534, %v3536
      %v3552 = vsel %vm1072, %v3536, %v3538
      %v3553 = vsel %vm1072, %v3540, %v3542
      %v3554 = vsel %vm1072, %v3542, %v3544
      %v3555 = vsel %vm1072, %v3546, %v3548
      %v3556 = vsel %vm1072, %v3548, %v3550
      %v3562 = vsel %vm1931, %v3530, 0
      %v3565 = vsel %vm1931, %v3531, 0
      %v3568 = vsel %vm1931, %v3532, 0
      %v3570 = vsel %vm1941, %v3555, 0
      %v3572 = vsel %vm1941, %v3556, 0
      %3574 = vmatprep.subr.mxu0 0.0
      %3575 = vmatpush1.msra.mxu0 0.0
      %3576 = vmatprep.subr.mxu0 0.0
      %3577 = vmatpush1.msra.mxu0 0.0
      %3578 = vmatprep.subr.mxu0 0.0
      %3579 = vmatpush1.msra.mxu0 0.0
      %3580 = vmatprep.subr.mxu0 0.0
      %3581 = vmatpush1.msra.mxu0 0.0
      %3582 = vmatprep.subr.mxu0 0.0
      %3583 = vmatpush1.msra.mxu0 0.0
      %3584 = vmatprep.subr.mxu0 0.0
      %3585 = vmatpush1.msra.mxu0 0.0
      %3586 = vmatprep.subr.mxu0 0.0
      %3587 = vmatpush1.msra.mxu0 0.0
      %3588 = vmatprep.subr.mxu0 0.0
      %3589 = vmatpush1.msra.mxu0 0.0
      %3590 = vmatprep.subr.mxu0 0.0
      %3591 = vmatpush1.msra.mxu0 0.0
      %3592 = vmatprep.subr.mxu0 0.0
      %3593 = vmatpush1.msra.mxu0 0.0
      %3594 = vmatprep.subr.mxu0 0.0
      %3595 = vmatpush1.msra.mxu0 0.0
      %3596 = vmatprep.subr.mxu0 0.0
      %3597 = vmatpush1.msra.mxu0 0.0
      %3598 = vmatprep.subr.mxu0 0.0
      %3599 = vmatpush1.msra.mxu0 0.0
      %3600 = vmatprep.subr.mxu0 %v3572
      %3601 = vmatpush1.msra.mxu0 %v3570
      %3602 = vmatprep.subr.mxu0 %v3554
      %3603 = vmatpush1.msra.mxu0 %v3553
      %3604 = vmatprep.subr.mxu0 %v3552
      %3605 = vmatpush1.msra.mxu0 %v3551
      %3606 = vmatprep.subr.mxu0 0.0
      %3607 = vmatpush2.msra.mxu0 0.0
      %3608 = vmatprep.subr.mxu0 0.0
      %3609 = vmatpush2.msra.mxu0 0.0
      %3610 = vmatprep.subr.mxu0 0.0
      %3611 = vmatpush2.msra.mxu0 0.0
      %3612 = vmatprep.subr.mxu0 0.0
      %3613 = vmatpush2.msra.mxu0 0.0
      %3614 = vmatprep.subr.mxu0 0.0
      %3615 = vmatpush2.msra.mxu0 0.0
      %3616 = vmatprep.subr.mxu0 0.0
      %3617 = vmatpush2.msra.mxu0 0.0
      %3618 = vmatprep.subr.mxu0 0.0
      %3619 = vmatpush2.msra.mxu0 0.0
      %3620 = vmatprep.subr.mxu0 0.0
      %3621 = vmatpush2.msra.mxu0 0.0
      %3622 = vmatprep.subr.mxu0 0.0
      %3623 = vmatpush2.msra.mxu0 0.0
      %3624 = vmatprep.subr.mxu0 0.0
      %3625 = vmatpush2.msra.mxu0 0.0
      %3626 = vmatprep.subr.mxu0 0.0
      %3627 = vmatpush2.msra.mxu0 0.0
      %3628 = vmatprep.subr.mxu0 0.0
      %3629 = vmatpush2.msra.mxu0 0.0
      %3630 = vmatprep.subr.mxu0 0.0
      %3631 = vmatpush2.msra.mxu0 0.0
      %3632 = vmatprep.subr.mxu0 0.0
      %3633 = vmatpush2.msra.mxu0 0.0
      %3634 = vmatprep.subr.mxu0 0.0
      %3635 = vmatpush2.msra.mxu0 0.0
      %3636 = vmatprep.subr.mxu0 0.0
      %3637 = vmatpush2.msra.mxu0 0.0
      %3638 = vmatprep.mubr.f32.mxu0 0.0
      %3639 = vmatmul.mubr.f32.gmra.mxu0 %v3562
      %v3640 = vpop.f32.mrf.mxu0
      %v3641 = vadd.f32 0.0, %v3640
      %v3642 = vpop.f32.mrf.mxu0
      %v3643 = vadd.f32 0.0, %v3642
      %3644 = vmatprep.mubr.f32.mxu0 0.0
      %3645 = vmatmul.mubr.f32.gmra.mxu0 %v3565
      %v3646 = vpop.f32.mrf.mxu0
      %v3647 = vadd.f32 0.0, %v3646
      %v3648 = vpop.f32.mrf.mxu0
      %v3649 = vadd.f32 0.0, %v3648
      %3650 = vmatprep.mubr.f32.mxu0 0.0
      %3651 = vmatmul.mubr.f32.gmra.mxu0 %v3568
      %v3652 = vpop.f32.mrf.mxu0
      %v3653 = vadd.f32 0.0, %v3652
      %v3654 = vpop.f32.mrf.mxu0
      %v3655 = vadd.f32 0.0, %v3654
      %3656 = vdwg.mxu0
      %v3657 = vadd.f32 %v3523, %v3641
      %v3658 = vadd.f32 %v3524, %v3643
      %v3659 = vadd.f32 %v3525, %v3647
      %v3660 = vadd.f32 %v3526, %v3649
      %v3661 = vadd.f32 %v3527, %v3653
      %v3662 = vadd.f32 %v3528, %v3655
      %s3663 = scalar_lea.vmem %s3, 312
      %v3664 = vld [vmem:[%s3663] sm:$0xff]
      %v3665 = vld [vmem:[%s3663 + $0x8] sm:$0xff]
      %v3666 = vld [vmem:[%s3663 + $0x10] sm:$0xf]
      %3667 = vrot.lane.b32.xlu0 %v2037, 93
      %v3668 = vpop.permute.xlu0 %3667
      %3669 = vrot.lane.b32.xlu0 %v2038, 93
      %v3670 = vpop.permute.xlu0 %3669
      %3671 = vrot.lane.b32.xlu0 %v2039, 93
      %v3672 = vpop.permute.xlu0 %3671
      %3673 = vrot.lane.b32.xlu0 %v2040, 93
      %v3674 = vpop.permute.xlu0 %3673
      %3675 = vrot.lane.b32.xlu0 %v2041, 93
      %v3676 = vpop.permute.xlu0 %3675
      %3677 = vrot.lane.b32.xlu0 %v2042, 93
      %v3678 = vpop.permute.xlu0 %3677
      %3679 = vrot.lane.b32.xlu0 %v2043, 93
      %v3680 = vpop.permute.xlu0 %3679
      %3681 = vrot.lane.b32.xlu0 %v2044, 93
      %v3682 = vpop.permute.xlu0 %3681
      %3683 = vrot.lane.b32.xlu0 %v2045, 93
      %v3684 = vpop.permute.xlu0 %3683
      %v3685 = vsel %vm1139, %v3668, %v3670
      %v3686 = vsel %vm1139, %v3670, %v3672
      %v3687 = vsel %vm1139, %v3674, %v3676
      %v3688 = vsel %vm1139, %v3676, %v3678
      %v3689 = vsel %vm1139, %v3680, %v3682
      %v3690 = vsel %vm1139, %v3682, %v3684
      %v3696 = vsel %vm1931, %v3664, 0
      %v3699 = vsel %vm1931, %v3665, 0
      %v3702 = vsel %vm1931, %v3666, 0
      %v3704 = vsel %vm1941, %v3689, 0
      %v3706 = vsel %vm1941, %v3690, 0
      %3708 = vmatprep.subr.mxu0 0.0
      %3709 = vmatpush1.msra.mxu0 0.0
      %3710 = vmatprep.subr.mxu0 0.0
      %3711 = vmatpush1.msra.mxu0 0.0
      %3712 = vmatprep.subr.mxu0 0.0
      %3713 = vmatpush1.msra.mxu0 0.0
      %3714 = vmatprep.subr.mxu0 0.0
      %3715 = vmatpush1.msra.mxu0 0.0
      %3716 = vmatprep.subr.mxu0 0.0
      %3717 = vmatpush1.msra.mxu0 0.0
      %3718 = vmatprep.subr.mxu0 0.0
      %3719 = vmatpush1.msra.mxu0 0.0
      %3720 = vmatprep.subr.mxu0 0.0
      %3721 = vmatpush1.msra.mxu0 0.0
      %3722 = vmatprep.subr.mxu0 0.0
      %3723 = vmatpush1.msra.mxu0 0.0
      %3724 = vmatprep.subr.mxu0 0.0
      %3725 = vmatpush1.msra.mxu0 0.0
      %3726 = vmatprep.subr.mxu0 0.0
      %3727 = vmatpush1.msra.mxu0 0.0
      %3728 = vmatprep.subr.mxu0 0.0
      %3729 = vmatpush1.msra.mxu0 0.0
      %3730 = vmatprep.subr.mxu0 0.0
      %3731 = vmatpush1.msra.mxu0 0.0
      %3732 = vmatprep.subr.mxu0 0.0
      %3733 = vmatpush1.msra.mxu0 0.0
      %3734 = vmatprep.subr.mxu0 %v3706
      %3735 = vmatpush1.msra.mxu0 %v3704
      %3736 = vmatprep.subr.mxu0 %v3688
      %3737 = vmatpush1.msra.mxu0 %v3687
      %3738 = vmatprep.subr.mxu0 %v3686
      %3739 = vmatpush1.msra.mxu0 %v3685
      %3740 = vmatprep.subr.mxu0 0.0
      %3741 = vmatpush2.msra.mxu0 0.0
      %3742 = vmatprep.subr.mxu0 0.0
      %3743 = vmatpush2.msra.mxu0 0.0
      %3744 = vmatprep.subr.mxu0 0.0
      %3745 = vmatpush2.msra.mxu0 0.0
      %3746 = vmatprep.subr.mxu0 0.0
      %3747 = vmatpush2.msra.mxu0 0.0
      %3748 = vmatprep.subr.mxu0 0.0
      %3749 = vmatpush2.msra.mxu0 0.0
      %3750 = vmatprep.subr.mxu0 0.0
      %3751 = vmatpush2.msra.mxu0 0.0
      %3752 = vmatprep.subr.mxu0 0.0
      %3753 = vmatpush2.msra.mxu0 0.0
      %3754 = vmatprep.subr.mxu0 0.0
      %3755 = vmatpush2.msra.mxu0 0.0
      %3756 = vmatprep.subr.mxu0 0.0
      %3757 = vmatpush2.msra.mxu0 0.0
      %3758 = vmatprep.subr.mxu0 0.0
      %3759 = vmatpush2.msra.mxu0 0.0
      %3760 = vmatprep.subr.mxu0 0.0
      %3761 = vmatpush2.msra.mxu0 0.0
      %3762 = vmatprep.subr.mxu0 0.0
      %3763 = vmatpush2.msra.mxu0 0.0
      %3764 = vmatprep.subr.mxu0 0.0
      %3765 = vmatpush2.msra.mxu0 0.0
      %3766 = vmatprep.subr.mxu0 0.0
      %3767 = vmatpush2.msra.mxu0 0.0
      %3768 = vmatprep.subr.mxu0 0.0
      %3769 = vmatpush2.msra.mxu0 0.0
      %3770 = vmatprep.subr.mxu0 0.0
      %3771 = vmatpush2.msra.mxu0 0.0
      %3772 = vmatprep.mubr.f32.mxu0 0.0
      %3773 = vmatmul.mubr.f32.gmra.mxu0 %v3696
      %v3774 = vpop.f32.mrf.mxu0
      %v3775 = vadd.f32 0.0, %v3774
      %v3776 = vpop.f32.mrf.mxu0
      %v3777 = vadd.f32 0.0, %v3776
      %3778 = vmatprep.mubr.f32.mxu0 0.0
      %3779 = vmatmul.mubr.f32.gmra.mxu0 %v3699
      %v3780 = vpop.f32.mrf.mxu0
      %v3781 = vadd.f32 0.0, %v3780
      %v3782 = vpop.f32.mrf.mxu0
      %v3783 = vadd.f32 0.0, %v3782
      %3784 = vmatprep.mubr.f32.mxu0 0.0
      %3785 = vmatmul.mubr.f32.gmra.mxu0 %v3702
      %v3786 = vpop.f32.mrf.mxu0
      %v3787 = vadd.f32 0.0, %v3786
      %v3788 = vpop.f32.mrf.mxu0
      %v3789 = vadd.f32 0.0, %v3788
      %3790 = vdwg.mxu0
      %v3791 = vadd.f32 %v3657, %v3775
      %v3792 = vadd.f32 %v3658, %v3777
      %v3793 = vadd.f32 %v3659, %v3781
      %v3794 = vadd.f32 %v3660, %v3783
      %v3795 = vadd.f32 %v3661, %v3787
      %v3796 = vadd.f32 %v3662, %v3789
      %s3797 = scalar_lea.vmem %s3, 336
      %v3798 = vld [vmem:[%s3797] sm:$0xff]
      %v3799 = vld [vmem:[%s3797 + $0x8] sm:$0xff]
      %v3800 = vld [vmem:[%s3797 + $0x10] sm:$0xf]
      %3801 = vrot.lane.b32.xlu0 %v2037, 92
      %v3802 = vpop.permute.xlu0 %3801
      %3803 = vrot.lane.b32.xlu0 %v2038, 92
      %v3804 = vpop.permute.xlu0 %3803
      %3805 = vrot.lane.b32.xlu0 %v2039, 92
      %v3806 = vpop.permute.xlu0 %3805
      %3807 = vrot.lane.b32.xlu0 %v2040, 92
      %v3808 = vpop.permute.xlu0 %3807
      %3809 = vrot.lane.b32.xlu0 %v2041, 92
      %v3810 = vpop.permute.xlu0 %3809
      %3811 = vrot.lane.b32.xlu0 %v2042, 92
      %v3812 = vpop.permute.xlu0 %3811
      %3813 = vrot.lane.b32.xlu0 %v2043, 92
      %v3814 = vpop.permute.xlu0 %3813
      %3815 = vrot.lane.b32.xlu0 %v2044, 92
      %v3816 = vpop.permute.xlu0 %3815
      %3817 = vrot.lane.b32.xlu0 %v2045, 92
      %v3818 = vpop.permute.xlu0 %3817
      %v3819 = vsel %vm1206, %v3802, %v3804
      %v3820 = vsel %vm1206, %v3804, %v3806
      %v3821 = vsel %vm1206, %v3808, %v3810
      %v3822 = vsel %vm1206, %v3810, %v3812
      %v3823 = vsel %vm1206, %v3814, %v3816
      %v3824 = vsel %vm1206, %v3816, %v3818
      %v3830 = vsel %vm1931, %v3798, 0
      %v3833 = vsel %vm1931, %v3799, 0
      %v3836 = vsel %vm1931, %v3800, 0
      %v3838 = vsel %vm1941, %v3823, 0
      %v3840 = vsel %vm1941, %v3824, 0
      %3842 = vmatprep.subr.mxu0 0.0
      %3843 = vmatpush1.msra.mxu0 0.0
      %3844 = vmatprep.subr.mxu0 0.0
      %3845 = vmatpush1.msra.mxu0 0.0
      %3846 = vmatprep.subr.mxu0 0.0
      %3847 = vmatpush1.msra.mxu0 0.0
      %3848 = vmatprep.subr.mxu0 0.0
      %3849 = vmatpush1.msra.mxu0 0.0
      %3850 = vmatprep.subr.mxu0 0.0
      %3851 = vmatpush1.msra.mxu0 0.0
      %3852 = vmatprep.subr.mxu0 0.0
      %3853 = vmatpush1.msra.mxu0 0.0
      %3854 = vmatprep.subr.mxu0 0.0
      %3855 = vmatpush1.msra.mxu0 0.0
      %3856 = vmatprep.subr.mxu0 0.0
      %3857 = vmatpush1.msra.mxu0 0.0
      %3858 = vmatprep.subr.mxu0 0.0
      %3859 = vmatpush1.msra.mxu0 0.0
      %3860 = vmatprep.subr.mxu0 0.0
      %3861 = vmatpush1.msra.mxu0 0.0
      %3862 = vmatprep.subr.mxu0 0.0
      %3863 = vmatpush1.msra.mxu0 0.0
      %3864 = vmatprep.subr.mxu0 0.0
      %3865 = vmatpush1.msra.mxu0 0.0
      %3866 = vmatprep.subr.mxu0 0.0
      %3867 = vmatpush1.msra.mxu0 0.0
      %3868 = vmatprep.subr.mxu0 %v3840
      %3869 = vmatpush1.msra.mxu0 %v3838
      %3870 = vmatprep.subr.mxu0 %v3822
      %3871 = vmatpush1.msra.mxu0 %v3821
      %3872 = vmatprep.subr.mxu0 %v3820
      %3873 = vmatpush1.msra.mxu0 %v3819
      %3874 = vmatprep.subr.mxu0 0.0
      %3875 = vmatpush2.msra.mxu0 0.0
      %3876 = vmatprep.subr.mxu0 0.0
      %3877 = vmatpush2.msra.mxu0 0.0
      %3878 = vmatprep.subr.mxu0 0.0
      %3879 = vmatpush2.msra.mxu0 0.0
      %3880 = vmatprep.subr.mxu0 0.0
      %3881 = vmatpush2.msra.mxu0 0.0
      %3882 = vmatprep.subr.mxu0 0.0
      %3883 = vmatpush2.msra.mxu0 0.0
      %3884 = vmatprep.subr.mxu0 0.0
      %3885 = vmatpush2.msra.mxu0 0.0
      %3886 = vmatprep.subr.mxu0 0.0
      %3887 = vmatpush2.msra.mxu0 0.0
      %3888 = vmatprep.subr.mxu0 0.0
      %3889 = vmatpush2.msra.mxu0 0.0
      %3890 = vmatprep.subr.mxu0 0.0
      %3891 = vmatpush2.msra.mxu0 0.0
      %3892 = vmatprep.subr.mxu0 0.0
      %3893 = vmatpush2.msra.mxu0 0.0
      %3894 = vmatprep.subr.mxu0 0.0
      %3895 = vmatpush2.msra.mxu0 0.0
      %3896 = vmatprep.subr.mxu0 0.0
      %3897 = vmatpush2.msra.mxu0 0.0
      %3898 = vmatprep.subr.mxu0 0.0
      %3899 = vmatpush2.msra.mxu0 0.0
      %3900 = vmatprep.subr.mxu0 0.0
      %3901 = vmatpush2.msra.mxu0 0.0
      %3902 = vmatprep.subr.mxu0 0.0
      %3903 = vmatpush2.msra.mxu0 0.0
      %3904 = vmatprep.subr.mxu0 0.0
      %3905 = vmatpush2.msra.mxu0 0.0
      %3906 = vmatprep.mubr.f32.mxu0 0.0
      %3907 = vmatmul.mubr.f32.gmra.mxu0 %v3830
      %v3908 = vpop.f32.mrf.mxu0
      %v3909 = vadd.f32 0.0, %v3908
      %v3910 = vpop.f32.mrf.mxu0
      %v3911 = vadd.f32 0.0, %v3910
      %3912 = vmatprep.mubr.f32.mxu0 0.0
      %3913 = vmatmul.mubr.f32.gmra.mxu0 %v3833
      %v3914 = vpop.f32.mrf.mxu0
      %v3915 = vadd.f32 0.0, %v3914
      %v3916 = vpop.f32.mrf.mxu0
      %v3917 = vadd.f32 0.0, %v3916
      %3918 = vmatprep.mubr.f32.mxu0 0.0
      %3919 = vmatmul.mubr.f32.gmra.mxu0 %v3836
      %v3920 = vpop.f32.mrf.mxu0
      %v3921 = vadd.f32 0.0, %v3920
      %v3922 = vpop.f32.mrf.mxu0
      %v3923 = vadd.f32 0.0, %v3922
      %3924 = vdwg.mxu0
      %v3925 = vadd.f32 %v3791, %v3909
      %v3926 = vadd.f32 %v3792, %v3911
      %v3927 = vadd.f32 %v3793, %v3915
      %v3928 = vadd.f32 %v3794, %v3917
      %v3929 = vadd.f32 %v3795, %v3921
      %v3930 = vadd.f32 %v3796, %v3923
      %s3931 = scalar_lea.vmem %s3, 360
      %v3932 = vld [vmem:[%s3931] sm:$0xff]
      %v3933 = vld [vmem:[%s3931 + $0x8] sm:$0xff]
      %v3934 = vld [vmem:[%s3931 + $0x10] sm:$0xf]
      %3935 = vrot.lane.b32.xlu0 %v2037, 80
      %v3936 = vpop.permute.xlu0 %3935
      %3937 = vrot.lane.b32.xlu0 %v2038, 80
      %v3938 = vpop.permute.xlu0 %3937
      %3939 = vrot.lane.b32.xlu0 %v2039, 80
      %v3940 = vpop.permute.xlu0 %3939
      %3941 = vrot.lane.b32.xlu0 %v2040, 80
      %v3942 = vpop.permute.xlu0 %3941
      %3943 = vrot.lane.b32.xlu0 %v2041, 80
      %v3944 = vpop.permute.xlu0 %3943
      %3945 = vrot.lane.b32.xlu0 %v2042, 80
      %v3946 = vpop.permute.xlu0 %3945
      %3947 = vrot.lane.b32.xlu0 %v2043, 80
      %v3948 = vpop.permute.xlu0 %3947
      %3949 = vrot.lane.b32.xlu0 %v2044, 80
      %v3950 = vpop.permute.xlu0 %3949
      %3951 = vrot.lane.b32.xlu0 %v2045, 80
      %v3952 = vpop.permute.xlu0 %3951
      %v3953 = vsel %vm1273, %v3936, %v3938
      %v3954 = vsel %vm1273, %v3938, %v3940
      %v3955 = vsel %vm1273, %v3942, %v3944
      %v3956 = vsel %vm1273, %v3944, %v3946
      %v3957 = vsel %vm1273, %v3948, %v3950
      %v3958 = vsel %vm1273, %v3950, %v3952
      %v3964 = vsel %vm1931, %v3932, 0
      %v3967 = vsel %vm1931, %v3933, 0
      %v3970 = vsel %vm1931, %v3934, 0
      %v3972 = vsel %vm1941, %v3957, 0
      %v3974 = vsel %vm1941, %v3958, 0
      %3976 = vmatprep.subr.mxu0 0.0
      %3977 = vmatpush1.msra.mxu0 0.0
      %3978 = vmatprep.subr.mxu0 0.0
      %3979 = vmatpush1.msra.mxu0 0.0
      %3980 = vmatprep.subr.mxu0 0.0
      %3981 = vmatpush1.msra.mxu0 0.0
      %3982 = vmatprep.subr.mxu0 0.0
      %3983 = vmatpush1.msra.mxu0 0.0
      %3984 = vmatprep.subr.mxu0 0.0
      %3985 = vmatpush1.msra.mxu0 0.0
      %3986 = vmatprep.subr.mxu0 0.0
      %3987 = vmatpush1.msra.mxu0 0.0
      %3988 = vmatprep.subr.mxu0 0.0
      %3989 = vmatpush1.msra.mxu0 0.0
      %3990 = vmatprep.subr.mxu0 0.0
      %3991 = vmatpush1.msra.mxu0 0.0
      %3992 = vmatprep.subr.mxu0 0.0
      %3993 = vmatpush1.msra.mxu0 0.0
      %3994 = vmatprep.subr.mxu0 0.0
      %3995 = vmatpush1.msra.mxu0 0.0
      %3996 = vmatprep.subr.mxu0 0.0
      %3997 = vmatpush1.msra.mxu0 0.0
      %3998 = vmatprep.subr.mxu0 0.0
      %3999 = vmatpush1.msra.mxu0 0.0
      %4000 = vmatprep.subr.mxu0 0.0
      %4001 = vmatpush1.msra.mxu0 0.0
      %4002 = vmatprep.subr.mxu0 %v3974
      %4003 = vmatpush1.msra.mxu0 %v3972
      %4004 = vmatprep.subr.mxu0 %v3956
      %4005 = vmatpush1.msra.mxu0 %v3955
      %4006 = vmatprep.subr.mxu0 %v3954
      %4007 = vmatpush1.msra.mxu0 %v3953
      %4008 = vmatprep.subr.mxu0 0.0
      %4009 = vmatpush2.msra.mxu0 0.0
      %4010 = vmatprep.subr.mxu0 0.0
      %4011 = vmatpush2.msra.mxu0 0.0
      %4012 = vmatprep.subr.mxu0 0.0
      %4013 = vmatpush2.msra.mxu0 0.0
      %4014 = vmatprep.subr.mxu0 0.0
      %4015 = vmatpush2.msra.mxu0 0.0
      %4016 = vmatprep.subr.mxu0 0.0
      %4017 = vmatpush2.msra.mxu0 0.0
      %4018 = vmatprep.subr.mxu0 0.0
      %4019 = vmatpush2.msra.mxu0 0.0
      %4020 = vmatprep.subr.mxu0 0.0
      %4021 = vmatpush2.msra.mxu0 0.0
      %4022 = vmatprep.subr.mxu0 0.0
      %4023 = vmatpush2.msra.mxu0 0.0
      %4024 = vmatprep.subr.mxu0 0.0
      %4025 = vmatpush2.msra.mxu0 0.0
      %4026 = vmatprep.subr.mxu0 0.0
      %4027 = vmatpush2.msra.mxu0 0.0
      %4028 = vmatprep.subr.mxu0 0.0
      %4029 = vmatpush2.msra.mxu0 0.0
      %4030 = vmatprep.subr.mxu0 0.0
      %4031 = vmatpush2.msra.mxu0 0.0
      %4032 = vmatprep.subr.mxu0 0.0
      %4033 = vmatpush2.msra.mxu0 0.0
      %4034 = vmatprep.subr.mxu0 0.0
      %4035 = vmatpush2.msra.mxu0 0.0
      %4036 = vmatprep.subr.mxu0 0.0
      %4037 = vmatpush2.msra.mxu0 0.0
      %4038 = vmatprep.subr.mxu0 0.0
      %4039 = vmatpush2.msra.mxu0 0.0
      %4040 = vmatprep.mubr.f32.mxu0 0.0
      %4041 = vmatmul.mubr.f32.gmra.mxu0 %v3964
      %v4042 = vpop.f32.mrf.mxu0
      %v4043 = vadd.f32 0.0, %v4042
      %v4044 = vpop.f32.mrf.mxu0
      %v4045 = vadd.f32 0.0, %v4044
      %4046 = vmatprep.mubr.f32.mxu0 0.0
      %4047 = vmatmul.mubr.f32.gmra.mxu0 %v3967
      %v4048 = vpop.f32.mrf.mxu0
      %v4049 = vadd.f32 0.0, %v4048
      %v4050 = vpop.f32.mrf.mxu0
      %v4051 = vadd.f32 0.0, %v4050
      %4052 = vmatprep.mubr.f32.mxu0 0.0
      %4053 = vmatmul.mubr.f32.gmra.mxu0 %v3970
      %v4054 = vpop.f32.mrf.mxu0
      %v4055 = vadd.f32 0.0, %v4054
      %v4056 = vpop.f32.mrf.mxu0
      %v4057 = vadd.f32 0.0, %v4056
      %4058 = vdwg.mxu0
      %v4059 = vadd.f32 %v3925, %v4043
      %v4060 = vadd.f32 %v3926, %v4045
      %v4061 = vadd.f32 %v3927, %v4049
      %v4062 = vadd.f32 %v3928, %v4051
      %v4063 = vadd.f32 %v3929, %v4055
      %v4064 = vadd.f32 %v3930, %v4057
      %s4065 = scalar_lea.vmem %s3, 384
      %v4066 = vld [vmem:[%s4065] sm:$0xff]
      %v4067 = vld [vmem:[%s4065 + $0x8] sm:$0xff]
      %v4068 = vld [vmem:[%s4065 + $0x10] sm:$0xf]
      %4069 = vrot.lane.b32.xlu0 %v2037, 79
      %v4070 = vpop.permute.xlu0 %4069
      %4071 = vrot.lane.b32.xlu0 %v2038, 79
      %v4072 = vpop.permute.xlu0 %4071
      %4073 = vrot.lane.b32.xlu0 %v2039, 79
      %v4074 = vpop.permute.xlu0 %4073
      %4075 = vrot.lane.b32.xlu0 %v2040, 79
      %v4076 = vpop.permute.xlu0 %4075
      %4077 = vrot.lane.b32.xlu0 %v2041, 79
      %v4078 = vpop.permute.xlu0 %4077
      %4079 = vrot.lane.b32.xlu0 %v2042, 79
      %v4080 = vpop.permute.xlu0 %4079
      %4081 = vrot.lane.b32.xlu0 %v2043, 79
      %v4082 = vpop.permute.xlu0 %4081
      %4083 = vrot.lane.b32.xlu0 %v2044, 79
      %v4084 = vpop.permute.xlu0 %4083
      %4085 = vrot.lane.b32.xlu0 %v2045, 79
      %v4086 = vpop.permute.xlu0 %4085
      %v4087 = vsel %vm1340, %v4070, %v4072
      %v4088 = vsel %vm1340, %v4072, %v4074
      %v4089 = vsel %vm1340, %v4076, %v4078
      %v4090 = vsel %vm1340, %v4078, %v4080
      %v4091 = vsel %vm1340, %v4082, %v4084
      %v4092 = vsel %vm1340, %v4084, %v4086
      %v4098 = vsel %vm1931, %v4066, 0
      %v4101 = vsel %vm1931, %v4067, 0
      %v4104 = vsel %vm1931, %v4068, 0
      %v4106 = vsel %vm1941, %v4091, 0
      %v4108 = vsel %vm1941, %v4092, 0
      %4110 = vmatprep.subr.mxu0 0.0
      %4111 = vmatpush1.msra.mxu0 0.0
      %4112 = vmatprep.subr.mxu0 0.0
      %4113 = vmatpush1.msra.mxu0 0.0
      %4114 = vmatprep.subr.mxu0 0.0
      %4115 = vmatpush1.msra.mxu0 0.0
      %4116 = vmatprep.subr.mxu0 0.0
      %4117 = vmatpush1.msra.mxu0 0.0
      %4118 = vmatprep.subr.mxu0 0.0
      %4119 = vmatpush1.msra.mxu0 0.0
      %4120 = vmatprep.subr.mxu0 0.0
      %4121 = vmatpush1.msra.mxu0 0.0
      %4122 = vmatprep.subr.mxu0 0.0
      %4123 = vmatpush1.msra.mxu0 0.0
      %4124 = vmatprep.subr.mxu0 0.0
      %4125 = vmatpush1.msra.mxu0 0.0
      %4126 = vmatprep.subr.mxu0 0.0
      %4127 = vmatpush1.msra.mxu0 0.0
      %4128 = vmatprep.subr.mxu0 0.0
      %4129 = vmatpush1.msra.mxu0 0.0
      %4130 = vmatprep.subr.mxu0 0.0
      %4131 = vmatpush1.msra.mxu0 0.0
      %4132 = vmatprep.subr.mxu0 0.0
      %4133 = vmatpush1.msra.mxu0 0.0
      %4134 = vmatprep.subr.mxu0 0.0
      %4135 = vmatpush1.msra.mxu0 0.0
      %4136 = vmatprep.subr.mxu0 %v4108
      %4137 = vmatpush1.msra.mxu0 %v4106
      %4138 = vmatprep.subr.mxu0 %v4090
      %4139 = vmatpush1.msra.mxu0 %v4089
      %4140 = vmatprep.subr.mxu0 %v4088
      %4141 = vmatpush1.msra.mxu0 %v4087
      %4142 = vmatprep.subr.mxu0 0.0
      %4143 = vmatpush2.msra.mxu0 0.0
      %4144 = vmatprep.subr.mxu0 0.0
      %4145 = vmatpush2.msra.mxu0 0.0
      %4146 = vmatprep.subr.mxu0 0.0
      %4147 = vmatpush2.msra.mxu0 0.0
      %4148 = vmatprep.subr.mxu0 0.0
      %4149 = vmatpush2.msra.mxu0 0.0
      %4150 = vmatprep.subr.mxu0 0.0
      %4151 = vmatpush2.msra.mxu0 0.0
      %4152 = vmatprep.subr.mxu0 0.0
      %4153 = vmatpush2.msra.mxu0 0.0
      %4154 = vmatprep.subr.mxu0 0.0
      %4155 = vmatpush2.msra.mxu0 0.0
      %4156 = vmatprep.subr.mxu0 0.0
      %4157 = vmatpush2.msra.mxu0 0.0
      %4158 = vmatprep.subr.mxu0 0.0
      %4159 = vmatpush2.msra.mxu0 0.0
      %4160 = vmatprep.subr.mxu0 0.0
      %4161 = vmatpush2.msra.mxu0 0.0
      %4162 = vmatprep.subr.mxu0 0.0
      %4163 = vmatpush2.msra.mxu0 0.0
      %4164 = vmatprep.subr.mxu0 0.0
      %4165 = vmatpush2.msra.mxu0 0.0
      %4166 = vmatprep.subr.mxu0 0.0
      %4167 = vmatpush2.msra.mxu0 0.0
      %4168 = vmatprep.subr.mxu0 0.0
      %4169 = vmatpush2.msra.mxu0 0.0
      %4170 = vmatprep.subr.mxu0 0.0
      %4171 = vmatpush2.msra.mxu0 0.0
      %4172 = vmatprep.subr.mxu0 0.0
      %4173 = vmatpush2.msra.mxu0 0.0
      %4174 = vmatprep.mubr.f32.mxu0 0.0
      %4175 = vmatmul.mubr.f32.gmra.mxu0 %v4098
      %v4176 = vpop.f32.mrf.mxu0
      %v4177 = vadd.f32 0.0, %v4176
      %v4178 = vpop.f32.mrf.mxu0
      %v4179 = vadd.f32 0.0, %v4178
      %4180 = vmatprep.mubr.f32.mxu0 0.0
      %4181 = vmatmul.mubr.f32.gmra.mxu0 %v4101
      %v4182 = vpop.f32.mrf.mxu0
      %v4183 = vadd.f32 0.0, %v4182
      %v4184 = vpop.f32.mrf.mxu0
      %v4185 = vadd.f32 0.0, %v4184
      %4186 = vmatprep.mubr.f32.mxu0 0.0
      %4187 = vmatmul.mubr.f32.gmra.mxu0 %v4104
      %v4188 = vpop.f32.mrf.mxu0
      %v4189 = vadd.f32 0.0, %v4188
      %v4190 = vpop.f32.mrf.mxu0
      %v4191 = vadd.f32 0.0, %v4190
      %4192 = vdwg.mxu0
      %v4193 = vadd.f32 %v4059, %v4177
      %v4194 = vadd.f32 %v4060, %v4179
      %v4195 = vadd.f32 %v4061, %v4183
      %v4196 = vadd.f32 %v4062, %v4185
      %v4197 = vadd.f32 %v4063, %v4189
      %v4198 = vadd.f32 %v4064, %v4191
      %s4199 = scalar_lea.vmem %s3, 408
      %v4200 = vld [vmem:[%s4199] sm:$0xff]
      %v4201 = vld [vmem:[%s4199 + $0x8] sm:$0xff]
      %v4202 = vld [vmem:[%s4199 + $0x10] sm:$0xf]
      %4203 = vrot.lane.b32.xlu0 %v2037, 78
      %v4204 = vpop.permute.xlu0 %4203
      %4205 = vrot.lane.b32.xlu0 %v2038, 78
      %v4206 = vpop.permute.xlu0 %4205
      %4207 = vrot.lane.b32.xlu0 %v2039, 78
      %v4208 = vpop.permute.xlu0 %4207
      %4209 = vrot.lane.b32.xlu0 %v2040, 78
      %v4210 = vpop.permute.xlu0 %4209
      %4211 = vrot.lane.b32.xlu0 %v2041, 78
      %v4212 = vpop.permute.xlu0 %4211
      %4213 = vrot.lane.b32.xlu0 %v2042, 78
      %v4214 = vpop.permute.xlu0 %4213
      %4215 = vrot.lane.b32.xlu0 %v2043, 78
      %v4216 = vpop.permute.xlu0 %4215
      %4217 = vrot.lane.b32.xlu0 %v2044, 78
      %v4218 = vpop.permute.xlu0 %4217
      %4219 = vrot.lane.b32.xlu0 %v2045, 78
      %v4220 = vpop.permute.xlu0 %4219
      %v4221 = vsel %vm1407, %v4204, %v4206
      %v4222 = vsel %vm1407, %v4206, %v4208
      %v4223 = vsel %vm1407, %v4210, %v4212
      %v4224 = vsel %vm1407, %v4212, %v4214
      %v4225 = vsel %vm1407, %v4216, %v4218
      %v4226 = vsel %vm1407, %v4218, %v4220
      %v4232 = vsel %vm1931, %v4200, 0
      %v4235 = vsel %vm1931, %v4201, 0
      %v4238 = vsel %vm1931, %v4202, 0
      %v4240 = vsel %vm1941, %v4225, 0
      %v4242 = vsel %vm1941, %v4226, 0
      %4244 = vmatprep.subr.mxu0 0.0
      %4245 = vmatpush1.msra.mxu0 0.0
      %4246 = vmatprep.subr.mxu0 0.0
      %4247 = vmatpush1.msra.mxu0 0.0
      %4248 = vmatprep.subr.mxu0 0.0
      %4249 = vmatpush1.msra.mxu0 0.0
      %4250 = vmatprep.subr.mxu0 0.0
      %4251 = vmatpush1.msra.mxu0 0.0
      %4252 = vmatprep.subr.mxu0 0.0
      %4253 = vmatpush1.msra.mxu0 0.0
      %4254 = vmatprep.subr.mxu0 0.0
      %4255 = vmatpush1.msra.mxu0 0.0
      %4256 = vmatprep.subr.mxu0 0.0
      %4257 = vmatpush1.msra.mxu0 0.0
      %4258 = vmatprep.subr.mxu0 0.0
      %4259 = vmatpush1.msra.mxu0 0.0
      %4260 = vmatprep.subr.mxu0 0.0
      %4261 = vmatpush1.msra.mxu0 0.0
      %4262 = vmatprep.subr.mxu0 0.0
      %4263 = vmatpush1.msra.mxu0 0.0
      %4264 = vmatprep.subr.mxu0 0.0
      %4265 = vmatpush1.msra.mxu0 0.0
      %4266 = vmatprep.subr.mxu0 0.0
      %4267 = vmatpush1.msra.mxu0 0.0
      %4268 = vmatprep.subr.mxu0 0.0
      %4269 = vmatpush1.msra.mxu0 0.0
      %4270 = vmatprep.subr.mxu0 %v4242
      %4271 = vmatpush1.msra.mxu0 %v4240
      %4272 = vmatprep.subr.mxu0 %v4224
      %4273 = vmatpush1.msra.mxu0 %v4223
      %4274 = vmatprep.subr.mxu0 %v4222
      %4275 = vmatpush1.msra.mxu0 %v4221
      %4276 = vmatprep.subr.mxu0 0.0
      %4277 = vmatpush2.msra.mxu0 0.0
      %4278 = vmatprep.subr.mxu0 0.0
      %4279 = vmatpush2.msra.mxu0 0.0
      %4280 = vmatprep.subr.mxu0 0.0
      %4281 = vmatpush2.msra.mxu0 0.0
      %4282 = vmatprep.subr.mxu0 0.0
      %4283 = vmatpush2.msra.mxu0 0.0
      %4284 = vmatprep.subr.mxu0 0.0
      %4285 = vmatpush2.msra.mxu0 0.0
      %4286 = vmatprep.subr.mxu0 0.0
      %4287 = vmatpush2.msra.mxu0 0.0
      %4288 = vmatprep.subr.mxu0 0.0
      %4289 = vmatpush2.msra.mxu0 0.0
      %4290 = vmatprep.subr.mxu0 0.0
      %4291 = vmatpush2.msra.mxu0 0.0
      %4292 = vmatprep.subr.mxu0 0.0
      %4293 = vmatpush2.msra.mxu0 0.0
      %4294 = vmatprep.subr.mxu0 0.0
      %4295 = vmatpush2.msra.mxu0 0.0
      %4296 = vmatprep.subr.mxu0 0.0
      %4297 = vmatpush2.msra.mxu0 0.0
      %4298 = vmatprep.subr.mxu0 0.0
      %4299 = vmatpush2.msra.mxu0 0.0
      %4300 = vmatprep.subr.mxu0 0.0
      %4301 = vmatpush2.msra.mxu0 0.0
      %4302 = vmatprep.subr.mxu0 0.0
      %4303 = vmatpush2.msra.mxu0 0.0
      %4304 = vmatprep.subr.mxu0 0.0
      %4305 = vmatpush2.msra.mxu0 0.0
      %4306 = vmatprep.subr.mxu0 0.0
      %4307 = vmatpush2.msra.mxu0 0.0
      %4308 = vmatprep.mubr.f32.mxu0 0.0
      %4309 = vmatmul.mubr.f32.gmra.mxu0 %v4232
      %v4310 = vpop.f32.mrf.mxu0
      %v4311 = vadd.f32 0.0, %v4310
      %v4312 = vpop.f32.mrf.mxu0
      %v4313 = vadd.f32 0.0, %v4312
      %4314 = vmatprep.mubr.f32.mxu0 0.0
      %4315 = vmatmul.mubr.f32.gmra.mxu0 %v4235
      %v4316 = vpop.f32.mrf.mxu0
      %v4317 = vadd.f32 0.0, %v4316
      %v4318 = vpop.f32.mrf.mxu0
      %v4319 = vadd.f32 0.0, %v4318
      %4320 = vmatprep.mubr.f32.mxu0 0.0
      %4321 = vmatmul.mubr.f32.gmra.mxu0 %v4238
      %v4322 = vpop.f32.mrf.mxu0
      %v4323 = vadd.f32 0.0, %v4322
      %v4324 = vpop.f32.mrf.mxu0
      %v4325 = vadd.f32 0.0, %v4324
      %4326 = vdwg.mxu0
      %v4327 = vadd.f32 %v4193, %v4311
      %v4328 = vadd.f32 %v4194, %v4313
      %v4329 = vadd.f32 %v4195, %v4317
      %v4330 = vadd.f32 %v4196, %v4319
      %v4331 = vadd.f32 %v4197, %v4323
      %v4332 = vadd.f32 %v4198, %v4325
      %s4333 = scalar_lea.vmem %s3, 432
      %v4334 = vld [vmem:[%s4333] sm:$0xff]
      %v4335 = vld [vmem:[%s4333 + $0x8] sm:$0xff]
      %v4336 = vld [vmem:[%s4333 + $0x10] sm:$0xf]
      %4337 = vrot.lane.b32.xlu0 %v2037, 77
      %v4338 = vpop.permute.xlu0 %4337
      %4339 = vrot.lane.b32.xlu0 %v2038, 77
      %v4340 = vpop.permute.xlu0 %4339
      %4341 = vrot.lane.b32.xlu0 %v2039, 77
      %v4342 = vpop.permute.xlu0 %4341
      %4343 = vrot.lane.b32.xlu0 %v2040, 77
      %v4344 = vpop.permute.xlu0 %4343
      %4345 = vrot.lane.b32.xlu0 %v2041, 77
      %v4346 = vpop.permute.xlu0 %4345
      %4347 = vrot.lane.b32.xlu0 %v2042, 77
      %v4348 = vpop.permute.xlu0 %4347
      %4349 = vrot.lane.b32.xlu0 %v2043, 77
      %v4350 = vpop.permute.xlu0 %4349
      %4351 = vrot.lane.b32.xlu0 %v2044, 77
      %v4352 = vpop.permute.xlu0 %4351
      %4353 = vrot.lane.b32.xlu0 %v2045, 77
      %v4354 = vpop.permute.xlu0 %4353
      %v4355 = vsel %vm1474, %v4338, %v4340
      %v4356 = vsel %vm1474, %v4340, %v4342
      %v4357 = vsel %vm1474, %v4344, %v4346
      %v4358 = vsel %vm1474, %v4346, %v4348
      %v4359 = vsel %vm1474, %v4350, %v4352
      %v4360 = vsel %vm1474, %v4352, %v4354
      %v4366 = vsel %vm1931, %v4334, 0
      %v4369 = vsel %vm1931, %v4335, 0
      %v4372 = vsel %vm1931, %v4336, 0
      %v4374 = vsel %vm1941, %v4359, 0
      %v4376 = vsel %vm1941, %v4360, 0
      %4378 = vmatprep.subr.mxu0 0.0
      %4379 = vmatpush1.msra.mxu0 0.0
      %4380 = vmatprep.subr.mxu0 0.0
      %4381 = vmatpush1.msra.mxu0 0.0
      %4382 = vmatprep.subr.mxu0 0.0
      %4383 = vmatpush1.msra.mxu0 0.0
      %4384 = vmatprep.subr.mxu0 0.0
      %4385 = vmatpush1.msra.mxu0 0.0
      %4386 = vmatprep.subr.mxu0 0.0
      %4387 = vmatpush1.msra.mxu0 0.0
      %4388 = vmatprep.subr.mxu0 0.0
      %4389 = vmatpush1.msra.mxu0 0.0
      %4390 = vmatprep.subr.mxu0 0.0
      %4391 = vmatpush1.msra.mxu0 0.0
      %4392 = vmatprep.subr.mxu0 0.0
      %4393 = vmatpush1.msra.mxu0 0.0
      %4394 = vmatprep.subr.mxu0 0.0
      %4395 = vmatpush1.msra.mxu0 0.0
      %4396 = vmatprep.subr.mxu0 0.0
      %4397 = vmatpush1.msra.mxu0 0.0
      %4398 = vmatprep.subr.mxu0 0.0
      %4399 = vmatpush1.msra.mxu0 0.0
      %4400 = vmatprep.subr.mxu0 0.0
      %4401 = vmatpush1.msra.mxu0 0.0
      %4402 = vmatprep.subr.mxu0 0.0
      %4403 = vmatpush1.msra.mxu0 0.0
      %4404 = vmatprep.subr.mxu0 %v4376
      %4405 = vmatpush1.msra.mxu0 %v4374
      %4406 = vmatprep.subr.mxu0 %v4358
      %4407 = vmatpush1.msra.mxu0 %v4357
      %4408 = vmatprep.subr.mxu0 %v4356
      %4409 = vmatpush1.msra.mxu0 %v4355
      %4410 = vmatprep.subr.mxu0 0.0
      %4411 = vmatpush2.msra.mxu0 0.0
      %4412 = vmatprep.subr.mxu0 0.0
      %4413 = vmatpush2.msra.mxu0 0.0
      %4414 = vmatprep.subr.mxu0 0.0
      %4415 = vmatpush2.msra.mxu0 0.0
      %4416 = vmatprep.subr.mxu0 0.0
      %4417 = vmatpush2.msra.mxu0 0.0
      %4418 = vmatprep.subr.mxu0 0.0
      %4419 = vmatpush2.msra.mxu0 0.0
      %4420 = vmatprep.subr.mxu0 0.0
      %4421 = vmatpush2.msra.mxu0 0.0
      %4422 = vmatprep.subr.mxu0 0.0
      %4423 = vmatpush2.msra.mxu0 0.0
      %4424 = vmatprep.subr.mxu0 0.0
      %4425 = vmatpush2.msra.mxu0 0.0
      %4426 = vmatprep.subr.mxu0 0.0
      %4427 = vmatpush2.msra.mxu0 0.0
      %4428 = vmatprep.subr.mxu0 0.0
      %4429 = vmatpush2.msra.mxu0 0.0
      %4430 = vmatprep.subr.mxu0 0.0
      %4431 = vmatpush2.msra.mxu0 0.0
      %4432 = vmatprep.subr.mxu0 0.0
      %4433 = vmatpush2.msra.mxu0 0.0
      %4434 = vmatprep.subr.mxu0 0.0
      %4435 = vmatpush2.msra.mxu0 0.0
      %4436 = vmatprep.subr.mxu0 0.0
      %4437 = vmatpush2.msra.mxu0 0.0
      %4438 = vmatprep.subr.mxu0 0.0
      %4439 = vmatpush2.msra.mxu0 0.0
      %4440 = vmatprep.subr.mxu0 0.0
      %4441 = vmatpush2.msra.mxu0 0.0
      %4442 = vmatprep.mubr.f32.mxu0 0.0
      %4443 = vmatmul.mubr.f32.gmra.mxu0 %v4366
      %v4444 = vpop.f32.mrf.mxu0
      %v4445 = vadd.f32 0.0, %v4444
      %v4446 = vpop.f32.mrf.mxu0
      %v4447 = vadd.f32 0.0, %v4446
      %4448 = vmatprep.mubr.f32.mxu0 0.0
      %4449 = vmatmul.mubr.f32.gmra.mxu0 %v4369
      %v4450 = vpop.f32.mrf.mxu0
      %v4451 = vadd.f32 0.0, %v4450
      %v4452 = vpop.f32.mrf.mxu0
      %v4453 = vadd.f32 0.0, %v4452
      %4454 = vmatprep.mubr.f32.mxu0 0.0
      %4455 = vmatmul.mubr.f32.gmra.mxu0 %v4372
      %v4456 = vpop.f32.mrf.mxu0
      %v4457 = vadd.f32 0.0, %v4456
      %v4458 = vpop.f32.mrf.mxu0
      %v4459 = vadd.f32 0.0, %v4458
      %4460 = vdwg.mxu0
      %v4461 = vadd.f32 %v4327, %v4445
      %v4462 = vadd.f32 %v4328, %v4447
      %v4463 = vadd.f32 %v4329, %v4451
      %v4464 = vadd.f32 %v4330, %v4453
      %v4465 = vadd.f32 %v4331, %v4457
      %v4466 = vadd.f32 %v4332, %v4459
      %s4467 = scalar_lea.vmem %s3, 456
      %v4468 = vld [vmem:[%s4467] sm:$0xff]
      %v4469 = vld [vmem:[%s4467 + $0x8] sm:$0xff]
      %v4470 = vld [vmem:[%s4467 + $0x10] sm:$0xf]
      %4471 = vrot.lane.b32.xlu0 %v2037, 76
      %v4472 = vpop.permute.xlu0 %4471
      %4473 = vrot.lane.b32.xlu0 %v2038, 76
      %v4474 = vpop.permute.xlu0 %4473
      %4475 = vrot.lane.b32.xlu0 %v2039, 76
      %v4476 = vpop.permute.xlu0 %4475
      %4477 = vrot.lane.b32.xlu0 %v2040, 76
      %v4478 = vpop.permute.xlu0 %4477
      %4479 = vrot.lane.b32.xlu0 %v2041, 76
      %v4480 = vpop.permute.xlu0 %4479
      %4481 = vrot.lane.b32.xlu0 %v2042, 76
      %v4482 = vpop.permute.xlu0 %4481
      %4483 = vrot.lane.b32.xlu0 %v2043, 76
      %v4484 = vpop.permute.xlu0 %4483
      %4485 = vrot.lane.b32.xlu0 %v2044, 76
      %v4486 = vpop.permute.xlu0 %4485
      %4487 = vrot.lane.b32.xlu0 %v2045, 76
      %v4488 = vpop.permute.xlu0 %4487
      %v4489 = vsel %vm1541, %v4472, %v4474
      %v4490 = vsel %vm1541, %v4474, %v4476
      %v4491 = vsel %vm1541, %v4478, %v4480
      %v4492 = vsel %vm1541, %v4480, %v4482
      %v4493 = vsel %vm1541, %v4484, %v4486
      %v4494 = vsel %vm1541, %v4486, %v4488
      %v4500 = vsel %vm1931, %v4468, 0
      %v4503 = vsel %vm1931, %v4469, 0
      %v4506 = vsel %vm1931, %v4470, 0
      %v4508 = vsel %vm1941, %v4493, 0
      %v4510 = vsel %vm1941, %v4494, 0
      %4512 = vmatprep.subr.mxu0 0.0
      %4513 = vmatpush1.msra.mxu0 0.0
      %4514 = vmatprep.subr.mxu0 0.0
      %4515 = vmatpush1.msra.mxu0 0.0
      %4516 = vmatprep.subr.mxu0 0.0
      %4517 = vmatpush1.msra.mxu0 0.0
      %4518 = vmatprep.subr.mxu0 0.0
      %4519 = vmatpush1.msra.mxu0 0.0
      %4520 = vmatprep.subr.mxu0 0.0
      %4521 = vmatpush1.msra.mxu0 0.0
      %4522 = vmatprep.subr.mxu0 0.0
      %4523 = vmatpush1.msra.mxu0 0.0
      %4524 = vmatprep.subr.mxu0 0.0
      %4525 = vmatpush1.msra.mxu0 0.0
      %4526 = vmatprep.subr.mxu0 0.0
      %4527 = vmatpush1.msra.mxu0 0.0
      %4528 = vmatprep.subr.mxu0 0.0
      %4529 = vmatpush1.msra.mxu0 0.0
      %4530 = vmatprep.subr.mxu0 0.0
      %4531 = vmatpush1.msra.mxu0 0.0
      %4532 = vmatprep.subr.mxu0 0.0
      %4533 = vmatpush1.msra.mxu0 0.0
      %4534 = vmatprep.subr.mxu0 0.0
      %4535 = vmatpush1.msra.mxu0 0.0
      %4536 = vmatprep.subr.mxu0 0.0
      %4537 = vmatpush1.msra.mxu0 0.0
      %4538 = vmatprep.subr.mxu0 %v4510
      %4539 = vmatpush1.msra.mxu0 %v4508
      %4540 = vmatprep.subr.mxu0 %v4492
      %4541 = vmatpush1.msra.mxu0 %v4491
      %4542 = vmatprep.subr.mxu0 %v4490
      %4543 = vmatpush1.msra.mxu0 %v4489
      %4544 = vmatprep.subr.mxu0 0.0
      %4545 = vmatpush2.msra.mxu0 0.0
      %4546 = vmatprep.subr.mxu0 0.0
      %4547 = vmatpush2.msra.mxu0 0.0
      %4548 = vmatprep.subr.mxu0 0.0
      %4549 = vmatpush2.msra.mxu0 0.0
      %4550 = vmatprep.subr.mxu0 0.0
      %4551 = vmatpush2.msra.mxu0 0.0
      %4552 = vmatprep.subr.mxu0 0.0
      %4553 = vmatpush2.msra.mxu0 0.0
      %4554 = vmatprep.subr.mxu0 0.0
      %4555 = vmatpush2.msra.mxu0 0.0
      %4556 = vmatprep.subr.mxu0 0.0
      %4557 = vmatpush2.msra.mxu0 0.0
      %4558 = vmatprep.subr.mxu0 0.0
      %4559 = vmatpush2.msra.mxu0 0.0
      %4560 = vmatprep.subr.mxu0 0.0
      %4561 = vmatpush2.msra.mxu0 0.0
      %4562 = vmatprep.subr.mxu0 0.0
      %4563 = vmatpush2.msra.mxu0 0.0
      %4564 = vmatprep.subr.mxu0 0.0
      %4565 = vmatpush2.msra.mxu0 0.0
      %4566 = vmatprep.subr.mxu0 0.0
      %4567 = vmatpush2.msra.mxu0 0.0
      %4568 = vmatprep.subr.mxu0 0.0
      %4569 = vmatpush2.msra.mxu0 0.0
      %4570 = vmatprep.subr.mxu0 0.0
      %4571 = vmatpush2.msra.mxu0 0.0
      %4572 = vmatprep.subr.mxu0 0.0
      %4573 = vmatpush2.msra.mxu0 0.0
      %4574 = vmatprep.subr.mxu0 0.0
      %4575 = vmatpush2.msra.mxu0 0.0
      %4576 = vmatprep.mubr.f32.mxu0 0.0
      %4577 = vmatmul.mubr.f32.gmra.mxu0 %v4500
      %v4578 = vpop.f32.mrf.mxu0
      %v4579 = vadd.f32 0.0, %v4578
      %v4580 = vpop.f32.mrf.mxu0
      %v4581 = vadd.f32 0.0, %v4580
      %4582 = vmatprep.mubr.f32.mxu0 0.0
      %4583 = vmatmul.mubr.f32.gmra.mxu0 %v4503
      %v4584 = vpop.f32.mrf.mxu0
      %v4585 = vadd.f32 0.0, %v4584
      %v4586 = vpop.f32.mrf.mxu0
      %v4587 = vadd.f32 0.0, %v4586
      %4588 = vmatprep.mubr.f32.mxu0 0.0
      %4589 = vmatmul.mubr.f32.gmra.mxu0 %v4506
      %v4590 = vpop.f32.mrf.mxu0
      %v4591 = vadd.f32 0.0, %v4590
      %v4592 = vpop.f32.mrf.mxu0
      %v4593 = vadd.f32 0.0, %v4592
      %4594 = vdwg.mxu0
      %v4595 = vadd.f32 %v4461, %v4579
      %v4596 = vadd.f32 %v4462, %v4581
      %v4597 = vadd.f32 %v4463, %v4585
      %v4598 = vadd.f32 %v4464, %v4587
      %v4599 = vadd.f32 %v4465, %v4591
      %v4600 = vadd.f32 %v4466, %v4593
      %s4601 = scalar_lea.vmem %s3, 480
      %v4602 = vld [vmem:[%s4601] sm:$0xff]
      %v4603 = vld [vmem:[%s4601 + $0x8] sm:$0xff]
      %v4604 = vld [vmem:[%s4601 + $0x10] sm:$0xf]
      %4605 = vrot.lane.b32.xlu0 %v2037, 64
      %v4606 = vpop.permute.xlu0 %4605
      %4607 = vrot.lane.b32.xlu0 %v2038, 64
      %v4608 = vpop.permute.xlu0 %4607
      %4609 = vrot.lane.b32.xlu0 %v2039, 64
      %v4610 = vpop.permute.xlu0 %4609
      %4611 = vrot.lane.b32.xlu0 %v2040, 64
      %v4612 = vpop.permute.xlu0 %4611
      %4613 = vrot.lane.b32.xlu0 %v2041, 64
      %v4614 = vpop.permute.xlu0 %4613
      %4615 = vrot.lane.b32.xlu0 %v2042, 64
      %v4616 = vpop.permute.xlu0 %4615
      %4617 = vrot.lane.b32.xlu0 %v2043, 64
      %v4618 = vpop.permute.xlu0 %4617
      %4619 = vrot.lane.b32.xlu0 %v2044, 64
      %v4620 = vpop.permute.xlu0 %4619
      %4621 = vrot.lane.b32.xlu0 %v2045, 64
      %v4622 = vpop.permute.xlu0 %4621
      %v4623 = vsel %vm1608, %v4606, %v4608
      %v4624 = vsel %vm1608, %v4608, %v4610
      %v4625 = vsel %vm1608, %v4612, %v4614
      %v4626 = vsel %vm1608, %v4614, %v4616
      %v4627 = vsel %vm1608, %v4618, %v4620
      %v4628 = vsel %vm1608, %v4620, %v4622
      %v4634 = vsel %vm1931, %v4602, 0
      %v4637 = vsel %vm1931, %v4603, 0
      %v4640 = vsel %vm1931, %v4604, 0
      %v4642 = vsel %vm1941, %v4627, 0
      %v4644 = vsel %vm1941, %v4628, 0
      %4646 = vmatprep.subr.mxu0 0.0
      %4647 = vmatpush1.msra.mxu0 0.0
      %4648 = vmatprep.subr.mxu0 0.0
      %4649 = vmatpush1.msra.mxu0 0.0
      %4650 = vmatprep.subr.mxu0 0.0
      %4651 = vmatpush1.msra.mxu0 0.0
      %4652 = vmatprep.subr.mxu0 0.0
      %4653 = vmatpush1.msra.mxu0 0.0
      %4654 = vmatprep.subr.mxu0 0.0
      %4655 = vmatpush1.msra.mxu0 0.0
      %4656 = vmatprep.subr.mxu0 0.0
      %4657 = vmatpush1.msra.mxu0 0.0
      %4658 = vmatprep.subr.mxu0 0.0
      %4659 = vmatpush1.msra.mxu0 0.0
      %4660 = vmatprep.subr.mxu0 0.0
      %4661 = vmatpush1.msra.mxu0 0.0
      %4662 = vmatprep.subr.mxu0 0.0
      %4663 = vmatpush1.msra.mxu0 0.0
      %4664 = vmatprep.subr.mxu0 0.0
      %4665 = vmatpush1.msra.mxu0 0.0
      %4666 = vmatprep.subr.mxu0 0.0
      %4667 = vmatpush1.msra.mxu0 0.0
      %4668 = vmatprep.subr.mxu0 0.0
      %4669 = vmatpush1.msra.mxu0 0.0
      %4670 = vmatprep.subr.mxu0 0.0
      %4671 = vmatpush1.msra.mxu0 0.0
      %4672 = vmatprep.subr.mxu0 %v4644
      %4673 = vmatpush1.msra.mxu0 %v4642
      %4674 = vmatprep.subr.mxu0 %v4626
      %4675 = vmatpush1.msra.mxu0 %v4625
      %4676 = vmatprep.subr.mxu0 %v4624
      %4677 = vmatpush1.msra.mxu0 %v4623
      %4678 = vmatprep.subr.mxu0 0.0
      %4679 = vmatpush2.msra.mxu0 0.0
      %4680 = vmatprep.subr.mxu0 0.0
      %4681 = vmatpush2.msra.mxu0 0.0
      %4682 = vmatprep.subr.mxu0 0.0
      %4683 = vmatpush2.msra.mxu0 0.0
      %4684 = vmatprep.subr.mxu0 0.0
      %4685 = vmatpush2.msra.mxu0 0.0
      %4686 = vmatprep.subr.mxu0 0.0
      %4687 = vmatpush2.msra.mxu0 0.0
      %4688 = vmatprep.subr.mxu0 0.0
      %4689 = vmatpush2.msra.mxu0 0.0
      %4690 = vmatprep.subr.mxu0 0.0
      %4691 = vmatpush2.msra.mxu0 0.0
      %4692 = vmatprep.subr.mxu0 0.0
      %4693 = vmatpush2.msra.mxu0 0.0
      %4694 = vmatprep.subr.mxu0 0.0
      %4695 = vmatpush2.msra.mxu0 0.0
      %4696 = vmatprep.subr.mxu0 0.0
      %4697 = vmatpush2.msra.mxu0 0.0
      %4698 = vmatprep.subr.mxu0 0.0
      %4699 = vmatpush2.msra.mxu0 0.0
      %4700 = vmatprep.subr.mxu0 0.0
      %4701 = vmatpush2.msra.mxu0 0.0
      %4702 = vmatprep.subr.mxu0 0.0
      %4703 = vmatpush2.msra.mxu0 0.0
      %4704 = vmatprep.subr.mxu0 0.0
      %4705 = vmatpush2.msra.mxu0 0.0
      %4706 = vmatprep.subr.mxu0 0.0
      %4707 = vmatpush2.msra.mxu0 0.0
      %4708 = vmatprep.subr.mxu0 0.0
      %4709 = vmatpush2.msra.mxu0 0.0
      %4710 = vmatprep.mubr.f32.mxu0 0.0
      %4711 = vmatmul.mubr.f32.gmra.mxu0 %v4634
      %v4712 = vpop.f32.mrf.mxu0
      %v4713 = vadd.f32 0.0, %v4712
      %v4714 = vpop.f32.mrf.mxu0
      %v4715 = vadd.f32 0.0, %v4714
      %4716 = vmatprep.mubr.f32.mxu0 0.0
      %4717 = vmatmul.mubr.f32.gmra.mxu0 %v4637
      %v4718 = vpop.f32.mrf.mxu0
      %v4719 = vadd.f32 0.0, %v4718
      %v4720 = vpop.f32.mrf.mxu0
      %v4721 = vadd.f32 0.0, %v4720
      %4722 = vmatprep.mubr.f32.mxu0 0.0
      %4723 = vmatmul.mubr.f32.gmra.mxu0 %v4640
      %v4724 = vpop.f32.mrf.mxu0
      %v4725 = vadd.f32 0.0, %v4724
      %v4726 = vpop.f32.mrf.mxu0
      %v4727 = vadd.f32 0.0, %v4726
      %4728 = vdwg.mxu0
      %v4729 = vadd.f32 %v4595, %v4713
      %v4730 = vadd.f32 %v4596, %v4715
      %v4731 = vadd.f32 %v4597, %v4719
      %v4732 = vadd.f32 %v4598, %v4721
      %v4733 = vadd.f32 %v4599, %v4725
      %v4734 = vadd.f32 %v4600, %v4727
      %s4735 = scalar_lea.vmem %s3, 504
      %v4736 = vld [vmem:[%s4735] sm:$0xff]
      %v4737 = vld [vmem:[%s4735 + $0x8] sm:$0xff]
      %v4738 = vld [vmem:[%s4735 + $0x10] sm:$0xf]
      %4739 = vrot.lane.b32.xlu0 %v2037, 63
      %v4740 = vpop.permute.xlu0 %4739
      %4741 = vrot.lane.b32.xlu0 %v2038, 63
      %v4742 = vpop.permute.xlu0 %4741
      %4743 = vrot.lane.b32.xlu0 %v2039, 63
      %v4744 = vpop.permute.xlu0 %4743
      %4745 = vrot.lane.b32.xlu0 %v2040, 63
      %v4746 = vpop.permute.xlu0 %4745
      %4747 = vrot.lane.b32.xlu0 %v2041, 63
      %v4748 = vpop.permute.xlu0 %4747
      %4749 = vrot.lane.b32.xlu0 %v2042, 63
      %v4750 = vpop.permute.xlu0 %4749
      %4751 = vrot.lane.b32.xlu0 %v2043, 63
      %v4752 = vpop.permute.xlu0 %4751
      %4753 = vrot.lane.b32.xlu0 %v2044, 63
      %v4754 = vpop.permute.xlu0 %4753
      %4755 = vrot.lane.b32.xlu0 %v2045, 63
      %v4756 = vpop.permute.xlu0 %4755
      %v4757 = vsel %vm1675, %v4740, %v4742
      %v4758 = vsel %vm1675, %v4742, %v4744
      %v4759 = vsel %vm1675, %v4746, %v4748
      %v4760 = vsel %vm1675, %v4748, %v4750
      %v4761 = vsel %vm1675, %v4752, %v4754
      %v4762 = vsel %vm1675, %v4754, %v4756
      %v4768 = vsel %vm1931, %v4736, 0
      %v4771 = vsel %vm1931, %v4737, 0
      %v4774 = vsel %vm1931, %v4738, 0
      %v4776 = vsel %vm1941, %v4761, 0
      %v4778 = vsel %vm1941, %v4762, 0
      %4780 = vmatprep.subr.mxu0 0.0
      %4781 = vmatpush1.msra.mxu0 0.0
      %4782 = vmatprep.subr.mxu0 0.0
      %4783 = vmatpush1.msra.mxu0 0.0
      %4784 = vmatprep.subr.mxu0 0.0
      %4785 = vmatpush1.msra.mxu0 0.0
      %4786 = vmatprep.subr.mxu0 0.0
      %4787 = vmatpush1.msra.mxu0 0.0
      %4788 = vmatprep.subr.mxu0 0.0
      %4789 = vmatpush1.msra.mxu0 0.0
      %4790 = vmatprep.subr.mxu0 0.0
      %4791 = vmatpush1.msra.mxu0 0.0
      %4792 = vmatprep.subr.mxu0 0.0
      %4793 = vmatpush1.msra.mxu0 0.0
      %4794 = vmatprep.subr.mxu0 0.0
      %4795 = vmatpush1.msra.mxu0 0.0
      %4796 = vmatprep.subr.mxu0 0.0
      %4797 = vmatpush1.msra.mxu0 0.0
      %4798 = vmatprep.subr.mxu0 0.0
      %4799 = vmatpush1.msra.mxu0 0.0
      %4800 = vmatprep.subr.mxu0 0.0
      %4801 = vmatpush1.msra.mxu0 0.0
      %4802 = vmatprep.subr.mxu0 0.0
      %4803 = vmatpush1.msra.mxu0 0.0
      %4804 = vmatprep.subr.mxu0 0.0
      %4805 = vmatpush1.msra.mxu0 0.0
      %4806 = vmatprep.subr.mxu0 %v4778
      %4807 = vmatpush1.msra.mxu0 %v4776
      %4808 = vmatprep.subr.mxu0 %v4760
      %4809 = vmatpush1.msra.mxu0 %v4759
      %4810 = vmatprep.subr.mxu0 %v4758
      %4811 = vmatpush1.msra.mxu0 %v4757
      %4812 = vmatprep.subr.mxu0 0.0
      %4813 = vmatpush2.msra.mxu0 0.0
      %4814 = vmatprep.subr.mxu0 0.0
      %4815 = vmatpush2.msra.mxu0 0.0
      %4816 = vmatprep.subr.mxu0 0.0
      %4817 = vmatpush2.msra.mxu0 0.0
      %4818 = vmatprep.subr.mxu0 0.0
      %4819 = vmatpush2.msra.mxu0 0.0
      %4820 = vmatprep.subr.mxu0 0.0
      %4821 = vmatpush2.msra.mxu0 0.0
      %4822 = vmatprep.subr.mxu0 0.0
      %4823 = vmatpush2.msra.mxu0 0.0
      %4824 = vmatprep.subr.mxu0 0.0
      %4825 = vmatpush2.msra.mxu0 0.0
      %4826 = vmatprep.subr.mxu0 0.0
      %4827 = vmatpush2.msra.mxu0 0.0
      %4828 = vmatprep.subr.mxu0 0.0
      %4829 = vmatpush2.msra.mxu0 0.0
      %4830 = vmatprep.subr.mxu0 0.0
      %4831 = vmatpush2.msra.mxu0 0.0
      %4832 = vmatprep.subr.mxu0 0.0
      %4833 = vmatpush2.msra.mxu0 0.0
      %4834 = vmatprep.subr.mxu0 0.0
      %4835 = vmatpush2.msra.mxu0 0.0
      %4836 = vmatprep.subr.mxu0 0.0
      %4837 = vmatpush2.msra.mxu0 0.0
      %4838 = vmatprep.subr.mxu0 0.0
      %4839 = vmatpush2.msra.mxu0 0.0
      %4840 = vmatprep.subr.mxu0 0.0
      %4841 = vmatpush2.msra.mxu0 0.0
      %4842 = vmatprep.subr.mxu0 0.0
      %4843 = vmatpush2.msra.mxu0 0.0
      %4844 = vmatprep.mubr.f32.mxu0 0.0
      %4845 = vmatmul.mubr.f32.gmra.mxu0 %v4768
      %v4846 = vpop.f32.mrf.mxu0
      %v4847 = vadd.f32 0.0, %v4846
      %v4848 = vpop.f32.mrf.mxu0
      %v4849 = vadd.f32 0.0, %v4848
      %4850 = vmatprep.mubr.f32.mxu0 0.0
      %4851 = vmatmul.mubr.f32.gmra.mxu0 %v4771
      %v4852 = vpop.f32.mrf.mxu0
      %v4853 = vadd.f32 0.0, %v4852
      %v4854 = vpop.f32.mrf.mxu0
      %v4855 = vadd.f32 0.0, %v4854
      %4856 = vmatprep.mubr.f32.mxu0 0.0
      %4857 = vmatmul.mubr.f32.gmra.mxu0 %v4774
      %v4858 = vpop.f32.mrf.mxu0
      %v4859 = vadd.f32 0.0, %v4858
      %v4860 = vpop.f32.mrf.mxu0
      %v4861 = vadd.f32 0.0, %v4860
      %4862 = vdwg.mxu0
      %v4863 = vadd.f32 %v4729, %v4847
      %v4864 = vadd.f32 %v4730, %v4849
      %v4865 = vadd.f32 %v4731, %v4853
      %v4866 = vadd.f32 %v4732, %v4855
      %v4867 = vadd.f32 %v4733, %v4859
      %v4868 = vadd.f32 %v4734, %v4861
      %s4869 = scalar_lea.vmem %s3, 528
      %v4870 = vld [vmem:[%s4869] sm:$0xff]
      %v4871 = vld [vmem:[%s4869 + $0x8] sm:$0xff]
      %v4872 = vld [vmem:[%s4869 + $0x10] sm:$0xf]
      %4873 = vrot.lane.b32.xlu0 %v2037, 62
      %v4874 = vpop.permute.xlu0 %4873
      %4875 = vrot.lane.b32.xlu0 %v2038, 62
      %v4876 = vpop.permute.xlu0 %4875
      %4877 = vrot.lane.b32.xlu0 %v2039, 62
      %v4878 = vpop.permute.xlu0 %4877
      %4879 = vrot.lane.b32.xlu0 %v2040, 62
      %v4880 = vpop.permute.xlu0 %4879
      %4881 = vrot.lane.b32.xlu0 %v2041, 62
      %v4882 = vpop.permute.xlu0 %4881
      %4883 = vrot.lane.b32.xlu0 %v2042, 62
      %v4884 = vpop.permute.xlu0 %4883
      %4885 = vrot.lane.b32.xlu0 %v2043, 62
      %v4886 = vpop.permute.xlu0 %4885
      %4887 = vrot.lane.b32.xlu0 %v2044, 62
      %v4888 = vpop.permute.xlu0 %4887
      %4889 = vrot.lane.b32.xlu0 %v2045, 62
      %v4890 = vpop.permute.xlu0 %4889
      %v4891 = vsel %vm1742, %v4874, %v4876
      %v4892 = vsel %vm1742, %v4876, %v4878
      %v4893 = vsel %vm1742, %v4880, %v4882
      %v4894 = vsel %vm1742, %v4882, %v4884
      %v4895 = vsel %vm1742, %v4886, %v4888
      %v4896 = vsel %vm1742, %v4888, %v4890
      %v4902 = vsel %vm1931, %v4870, 0
      %v4905 = vsel %vm1931, %v4871, 0
      %v4908 = vsel %vm1931, %v4872, 0
      %v4910 = vsel %vm1941, %v4895, 0
      %v4912 = vsel %vm1941, %v4896, 0
      %4914 = vmatprep.subr.mxu0 0.0
      %4915 = vmatpush1.msra.mxu0 0.0
      %4916 = vmatprep.subr.mxu0 0.0
      %4917 = vmatpush1.msra.mxu0 0.0
      %4918 = vmatprep.subr.mxu0 0.0
      %4919 = vmatpush1.msra.mxu0 0.0
      %4920 = vmatprep.subr.mxu0 0.0
      %4921 = vmatpush1.msra.mxu0 0.0
      %4922 = vmatprep.subr.mxu0 0.0
      %4923 = vmatpush1.msra.mxu0 0.0
      %4924 = vmatprep.subr.mxu0 0.0
      %4925 = vmatpush1.msra.mxu0 0.0
      %4926 = vmatprep.subr.mxu0 0.0
      %4927 = vmatpush1.msra.mxu0 0.0
      %4928 = vmatprep.subr.mxu0 0.0
      %4929 = vmatpush1.msra.mxu0 0.0
      %4930 = vmatprep.subr.mxu0 0.0
      %4931 = vmatpush1.msra.mxu0 0.0
      %4932 = vmatprep.subr.mxu0 0.0
      %4933 = vmatpush1.msra.mxu0 0.0
      %4934 = vmatprep.subr.mxu0 0.0
      %4935 = vmatpush1.msra.mxu0 0.0
      %4936 = vmatprep.subr.mxu0 0.0
      %4937 = vmatpush1.msra.mxu0 0.0
      %4938 = vmatprep.subr.mxu0 0.0
      %4939 = vmatpush1.msra.mxu0 0.0
      %4940 = vmatprep.subr.mxu0 %v4912
      %4941 = vmatpush1.msra.mxu0 %v4910
      %4942 = vmatprep.subr.mxu0 %v4894
      %4943 = vmatpush1.msra.mxu0 %v4893
      %4944 = vmatprep.subr.mxu0 %v4892
      %4945 = vmatpush1.msra.mxu0 %v4891
      %4946 = vmatprep.subr.mxu0 0.0
      %4947 = vmatpush2.msra.mxu0 0.0
      %4948 = vmatprep.subr.mxu0 0.0
      %4949 = vmatpush2.msra.mxu0 0.0
      %4950 = vmatprep.subr.mxu0 0.0
      %4951 = vmatpush2.msra.mxu0 0.0
      %4952 = vmatprep.subr.mxu0 0.0
      %4953 = vmatpush2.msra.mxu0 0.0
      %4954 = vmatprep.subr.mxu0 0.0
      %4955 = vmatpush2.msra.mxu0 0.0
      %4956 = vmatprep.subr.mxu0 0.0
      %4957 = vmatpush2.msra.mxu0 0.0
      %4958 = vmatprep.subr.mxu0 0.0
      %4959 = vmatpush2.msra.mxu0 0.0
      %4960 = vmatprep.subr.mxu0 0.0
      %4961 = vmatpush2.msra.mxu0 0.0
      %4962 = vmatprep.subr.mxu0 0.0
      %4963 = vmatpush2.msra.mxu0 0.0
      %4964 = vmatprep.subr.mxu0 0.0
      %4965 = vmatpush2.msra.mxu0 0.0
      %4966 = vmatprep.subr.mxu0 0.0
      %4967 = vmatpush2.msra.mxu0 0.0
      %4968 = vmatprep.subr.mxu0 0.0
      %4969 = vmatpush2.msra.mxu0 0.0
      %4970 = vmatprep.subr.mxu0 0.0
      %4971 = vmatpush2.msra.mxu0 0.0
      %4972 = vmatprep.subr.mxu0 0.0
      %4973 = vmatpush2.msra.mxu0 0.0
      %4974 = vmatprep.subr.mxu0 0.0
      %4975 = vmatpush2.msra.mxu0 0.0
      %4976 = vmatprep.subr.mxu0 0.0
      %4977 = vmatpush2.msra.mxu0 0.0
      %4978 = vmatprep.mubr.f32.mxu0 0.0
      %4979 = vmatmul.mubr.f32.gmra.mxu0 %v4902
      %v4980 = vpop.f32.mrf.mxu0
      %v4981 = vadd.f32 0.0, %v4980
      %v4982 = vpop.f32.mrf.mxu0
      %v4983 = vadd.f32 0.0, %v4982
      %4984 = vmatprep.mubr.f32.mxu0 0.0
      %4985 = vmatmul.mubr.f32.gmra.mxu0 %v4905
      %v4986 = vpop.f32.mrf.mxu0
      %v4987 = vadd.f32 0.0, %v4986
      %v4988 = vpop.f32.mrf.mxu0
      %v4989 = vadd.f32 0.0, %v4988
      %4990 = vmatprep.mubr.f32.mxu0 0.0
      %4991 = vmatmul.mubr.f32.gmra.mxu0 %v4908
      %v4992 = vpop.f32.mrf.mxu0
      %v4993 = vadd.f32 0.0, %v4992
      %v4994 = vpop.f32.mrf.mxu0
      %v4995 = vadd.f32 0.0, %v4994
      %4996 = vdwg.mxu0
      %v4997 = vadd.f32 %v4863, %v4981
      %v4998 = vadd.f32 %v4864, %v4983
      %v4999 = vadd.f32 %v4865, %v4987
      %v5000 = vadd.f32 %v4866, %v4989
      %v5001 = vadd.f32 %v4867, %v4993
      %v5002 = vadd.f32 %v4868, %v4995
      %s5003 = scalar_lea.vmem %s3, 552
      %v5004 = vld [vmem:[%s5003] sm:$0xff]
      %v5005 = vld [vmem:[%s5003 + $0x8] sm:$0xff]
      %v5006 = vld [vmem:[%s5003 + $0x10] sm:$0xf]
      %5007 = vrot.lane.b32.xlu0 %v2037, 61
      %v5008 = vpop.permute.xlu0 %5007
      %5009 = vrot.lane.b32.xlu0 %v2038, 61
      %v5010 = vpop.permute.xlu0 %5009
      %5011 = vrot.lane.b32.xlu0 %v2039, 61
      %v5012 = vpop.permute.xlu0 %5011
      %5013 = vrot.lane.b32.xlu0 %v2040, 61
      %v5014 = vpop.permute.xlu0 %5013
      %5015 = vrot.lane.b32.xlu0 %v2041, 61
      %v5016 = vpop.permute.xlu0 %5015
      %5017 = vrot.lane.b32.xlu0 %v2042, 61
      %v5018 = vpop.permute.xlu0 %5017
      %5019 = vrot.lane.b32.xlu0 %v2043, 61
      %v5020 = vpop.permute.xlu0 %5019
      %5021 = vrot.lane.b32.xlu0 %v2044, 61
      %v5022 = vpop.permute.xlu0 %5021
      %5023 = vrot.lane.b32.xlu0 %v2045, 61
      %v5024 = vpop.permute.xlu0 %5023
      %v5025 = vsel %vm1809, %v5008, %v5010
      %v5026 = vsel %vm1809, %v5010, %v5012
      %v5027 = vsel %vm1809, %v5014, %v5016
      %v5028 = vsel %vm1809, %v5016, %v5018
      %v5029 = vsel %vm1809, %v5020, %v5022
      %v5030 = vsel %vm1809, %v5022, %v5024
      %v5036 = vsel %vm1931, %v5004, 0
      %v5039 = vsel %vm1931, %v5005, 0
      %v5042 = vsel %vm1931, %v5006, 0
      %v5044 = vsel %vm1941, %v5029, 0
      %v5046 = vsel %vm1941, %v5030, 0
      %5048 = vmatprep.subr.mxu0 0.0
      %5049 = vmatpush1.msra.mxu0 0.0
      %5050 = vmatprep.subr.mxu0 0.0
      %5051 = vmatpush1.msra.mxu0 0.0
      %5052 = vmatprep.subr.mxu0 0.0
      %5053 = vmatpush1.msra.mxu0 0.0
      %5054 = vmatprep.subr.mxu0 0.0
      %5055 = vmatpush1.msra.mxu0 0.0
      %5056 = vmatprep.subr.mxu0 0.0
      %5057 = vmatpush1.msra.mxu0 0.0
      %5058 = vmatprep.subr.mxu0 0.0
      %5059 = vmatpush1.msra.mxu0 0.0
      %5060 = vmatprep.subr.mxu0 0.0
      %5061 = vmatpush1.msra.mxu0 0.0
      %5062 = vmatprep.subr.mxu0 0.0
      %5063 = vmatpush1.msra.mxu0 0.0
      %5064 = vmatprep.subr.mxu0 0.0
      %5065 = vmatpush1.msra.mxu0 0.0
      %5066 = vmatprep.subr.mxu0 0.0
      %5067 = vmatpush1.msra.mxu0 0.0
      %5068 = vmatprep.subr.mxu0 0.0
      %5069 = vmatpush1.msra.mxu0 0.0
      %5070 = vmatprep.subr.mxu0 0.0
      %5071 = vmatpush1.msra.mxu0 0.0
      %5072 = vmatprep.subr.mxu0 0.0
      %5073 = vmatpush1.msra.mxu0 0.0
      %5074 = vmatprep.subr.mxu0 %v5046
      %5075 = vmatpush1.msra.mxu0 %v5044
      %5076 = vmatprep.subr.mxu0 %v5028
      %5077 = vmatpush1.msra.mxu0 %v5027
      %5078 = vmatprep.subr.mxu0 %v5026
      %5079 = vmatpush1.msra.mxu0 %v5025
      %5080 = vmatprep.subr.mxu0 0.0
      %5081 = vmatpush2.msra.mxu0 0.0
      %5082 = vmatprep.subr.mxu0 0.0
      %5083 = vmatpush2.msra.mxu0 0.0
      %5084 = vmatprep.subr.mxu0 0.0
      %5085 = vmatpush2.msra.mxu0 0.0
      %5086 = vmatprep.subr.mxu0 0.0
      %5087 = vmatpush2.msra.mxu0 0.0
      %5088 = vmatprep.subr.mxu0 0.0
      %5089 = vmatpush2.msra.mxu0 0.0
      %5090 = vmatprep.subr.mxu0 0.0
      %5091 = vmatpush2.msra.mxu0 0.0
      %5092 = vmatprep.subr.mxu0 0.0
      %5093 = vmatpush2.msra.mxu0 0.0
      %5094 = vmatprep.subr.mxu0 0.0
      %5095 = vmatpush2.msra.mxu0 0.0
      %5096 = vmatprep.subr.mxu0 0.0
      %5097 = vmatpush2.msra.mxu0 0.0
      %5098 = vmatprep.subr.mxu0 0.0
      %5099 = vmatpush2.msra.mxu0 0.0
      %5100 = vmatprep.subr.mxu0 0.0
      %5101 = vmatpush2.msra.mxu0 0.0
      %5102 = vmatprep.subr.mxu0 0.0
      %5103 = vmatpush2.msra.mxu0 0.0
      %5104 = vmatprep.subr.mxu0 0.0
      %5105 = vmatpush2.msra.mxu0 0.0
      %5106 = vmatprep.subr.mxu0 0.0
      %5107 = vmatpush2.msra.mxu0 0.0
      %5108 = vmatprep.subr.mxu0 0.0
      %5109 = vmatpush2.msra.mxu0 0.0
      %5110 = vmatprep.subr.mxu0 0.0
      %5111 = vmatpush2.msra.mxu0 0.0
      %5112 = vmatprep.mubr.f32.mxu0 0.0
      %5113 = vmatmul.mubr.f32.gmra.mxu0 %v5036
      %v5114 = vpop.f32.mrf.mxu0
      %v5115 = vadd.f32 0.0, %v5114
      %v5116 = vpop.f32.mrf.mxu0
      %v5117 = vadd.f32 0.0, %v5116
      %5118 = vmatprep.mubr.f32.mxu0 0.0
      %5119 = vmatmul.mubr.f32.gmra.mxu0 %v5039
      %v5120 = vpop.f32.mrf.mxu0
      %v5121 = vadd.f32 0.0, %v5120
      %v5122 = vpop.f32.mrf.mxu0
      %v5123 = vadd.f32 0.0, %v5122
      %5124 = vmatprep.mubr.f32.mxu0 0.0
      %5125 = vmatmul.mubr.f32.gmra.mxu0 %v5042
      %v5126 = vpop.f32.mrf.mxu0
      %v5127 = vadd.f32 0.0, %v5126
      %v5128 = vpop.f32.mrf.mxu0
      %v5129 = vadd.f32 0.0, %v5128
      %5130 = vdwg.mxu0
      %v5131 = vadd.f32 %v4997, %v5115
      %v5132 = vadd.f32 %v4998, %v5117
      %v5133 = vadd.f32 %v4999, %v5121
      %v5134 = vadd.f32 %v5000, %v5123
      %v5135 = vadd.f32 %v5001, %v5127
      %v5136 = vadd.f32 %v5002, %v5129
      %s5137 = scalar_lea.vmem %s3, 576
      %v5138 = vld [vmem:[%s5137] sm:$0xff]
      %v5139 = vld [vmem:[%s5137 + $0x8] sm:$0xff]
      %v5140 = vld [vmem:[%s5137 + $0x10] sm:$0xf]
      %5141 = vrot.lane.b32.xlu0 %v2037, 60
      %v5142 = vpop.permute.xlu0 %5141
      %5143 = vrot.lane.b32.xlu0 %v2038, 60
      %v5144 = vpop.permute.xlu0 %5143
      %5145 = vrot.lane.b32.xlu0 %v2039, 60
      %v5146 = vpop.permute.xlu0 %5145
      %5147 = vrot.lane.b32.xlu0 %v2040, 60
      %v5148 = vpop.permute.xlu0 %5147
      %5149 = vrot.lane.b32.xlu0 %v2041, 60
      %v5150 = vpop.permute.xlu0 %5149
      %5151 = vrot.lane.b32.xlu0 %v2042, 60
      %v5152 = vpop.permute.xlu0 %5151
      %5153 = vrot.lane.b32.xlu0 %v2043, 60
      %v5154 = vpop.permute.xlu0 %5153
      %5155 = vrot.lane.b32.xlu0 %v2044, 60
      %v5156 = vpop.permute.xlu0 %5155
      %5157 = vrot.lane.b32.xlu0 %v2045, 60
      %v5158 = vpop.permute.xlu0 %5157
      %v5159 = vsel %vm1876, %v5142, %v5144
      %v5160 = vsel %vm1876, %v5144, %v5146
      %v5161 = vsel %vm1876, %v5148, %v5150
      %v5162 = vsel %vm1876, %v5150, %v5152
      %v5163 = vsel %vm1876, %v5154, %v5156
      %v5164 = vsel %vm1876, %v5156, %v5158
      %v5170 = vsel %vm1931, %v5138, 0
      %v5173 = vsel %vm1931, %v5139, 0
      %v5176 = vsel %vm1931, %v5140, 0
      %v5178 = vsel %vm1941, %v5163, 0
      %v5180 = vsel %vm1941, %v5164, 0
      %5182 = vmatprep.subr.mxu0 0.0
      %5183 = vmatpush1.msra.mxu0 0.0
      %5184 = vmatprep.subr.mxu0 0.0
      %5185 = vmatpush1.msra.mxu0 0.0
      %5186 = vmatprep.subr.mxu0 0.0
      %5187 = vmatpush1.msra.mxu0 0.0
      %5188 = vmatprep.subr.mxu0 0.0
      %5189 = vmatpush1.msra.mxu0 0.0
      %5190 = vmatprep.subr.mxu0 0.0
      %5191 = vmatpush1.msra.mxu0 0.0
      %5192 = vmatprep.subr.mxu0 0.0
      %5193 = vmatpush1.msra.mxu0 0.0
      %5194 = vmatprep.subr.mxu0 0.0
      %5195 = vmatpush1.msra.mxu0 0.0
      %5196 = vmatprep.subr.mxu0 0.0
      %5197 = vmatpush1.msra.mxu0 0.0
      %5198 = vmatprep.subr.mxu0 0.0
      %5199 = vmatpush1.msra.mxu0 0.0
      %5200 = vmatprep.subr.mxu0 0.0
      %5201 = vmatpush1.msra.mxu0 0.0
      %5202 = vmatprep.subr.mxu0 0.0
      %5203 = vmatpush1.msra.mxu0 0.0
      %5204 = vmatprep.subr.mxu0 0.0
      %5205 = vmatpush1.msra.mxu0 0.0
      %5206 = vmatprep.subr.mxu0 0.0
      %5207 = vmatpush1.msra.mxu0 0.0
      %5208 = vmatprep.subr.mxu0 %v5180
      %5209 = vmatpush1.msra.mxu0 %v5178
      %5210 = vmatprep.subr.mxu0 %v5162
      %5211 = vmatpush1.msra.mxu0 %v5161
      %5212 = vmatprep.subr.mxu0 %v5160
      %5213 = vmatpush1.msra.mxu0 %v5159
      %5214 = vmatprep.subr.mxu0 0.0
      %5215 = vmatpush2.msra.mxu0 0.0
      %5216 = vmatprep.subr.mxu0 0.0
      %5217 = vmatpush2.msra.mxu0 0.0
      %5218 = vmatprep.subr.mxu0 0.0
      %5219 = vmatpush2.msra.mxu0 0.0
      %5220 = vmatprep.subr.mxu0 0.0
      %5221 = vmatpush2.msra.mxu0 0.0
      %5222 = vmatprep.subr.mxu0 0.0
      %5223 = vmatpush2.msra.mxu0 0.0
      %5224 = vmatprep.subr.mxu0 0.0
      %5225 = vmatpush2.msra.mxu0 0.0
      %5226 = vmatprep.subr.mxu0 0.0
      %5227 = vmatpush2.msra.mxu0 0.0
      %5228 = vmatprep.subr.mxu0 0.0
      %5229 = vmatpush2.msra.mxu0 0.0
      %5230 = vmatprep.subr.mxu0 0.0
      %5231 = vmatpush2.msra.mxu0 0.0
      %5232 = vmatprep.subr.mxu0 0.0
      %5233 = vmatpush2.msra.mxu0 0.0
      %5234 = vmatprep.subr.mxu0 0.0
      %5235 = vmatpush2.msra.mxu0 0.0
      %5236 = vmatprep.subr.mxu0 0.0
      %5237 = vmatpush2.msra.mxu0 0.0
      %5238 = vmatprep.subr.mxu0 0.0
      %5239 = vmatpush2.msra.mxu0 0.0
      %5240 = vmatprep.subr.mxu0 0.0
      %5241 = vmatpush2.msra.mxu0 0.0
      %5242 = vmatprep.subr.mxu0 0.0
      %5243 = vmatpush2.msra.mxu0 0.0
      %5244 = vmatprep.subr.mxu0 0.0
      %5245 = vmatpush2.msra.mxu0 0.0
      %5246 = vmatprep.mubr.f32.mxu0 0.0
      %5247 = vmatmul.mubr.f32.gmra.mxu0 %v5170
      %v5248 = vpop.f32.mrf.mxu0
      %v5249 = vadd.f32 0.0, %v5248
      %v5250 = vpop.f32.mrf.mxu0
      %v5251 = vadd.f32 0.0, %v5250
      %5252 = vmatprep.mubr.f32.mxu0 0.0
      %5253 = vmatmul.mubr.f32.gmra.mxu0 %v5173
      %v5254 = vpop.f32.mrf.mxu0
      %v5255 = vadd.f32 0.0, %v5254
      %v5256 = vpop.f32.mrf.mxu0
      %v5257 = vadd.f32 0.0, %v5256
      %5258 = vmatprep.mubr.f32.mxu0 0.0
      %5259 = vmatmul.mubr.f32.gmra.mxu0 %v5176
      %v5260 = vpop.f32.mrf.mxu0
      %v5261 = vadd.f32 0.0, %v5260
      %v5262 = vpop.f32.mrf.mxu0
      %v5263 = vadd.f32 0.0, %v5262
      %5264 = vdwg.mxu0
      %v5265 = vadd.f32 %v5131, %v5249
      %v5266 = vadd.f32 %v5132, %v5251
      %v5267 = vadd.f32 %v5133, %v5255
      %v5268 = vadd.f32 %v5134, %v5257
      %v5269 = vadd.f32 %v5135, %v5261
      %v5270 = vadd.f32 %v5136, %v5263
      %5271 = vst [vmem:[%s221] sm:$0xff] %v5265
      %5272 = vst [vmem:[%s221 + $0x8] sm:$0xff] %v5266
      %5273 = vst [vmem:[%s221 + $0x10] sm:$0xff] %v5267
      %5274 = vst [vmem:[%s221 + $0x18] sm:$0xff] %v5268
      %5275 = vst [vmem:[%s221 + $0x20] sm:$0xf] %v5269
      %5276 = vst [vmem:[%s221 + $0x28] sm:$0xf] %v5270
      %p5277 = scmp.lt.s32.totalorder %s16, 1
      %s5278 = scalar_select %p5277, %s16, 1
      %s5279 = smul.addr %s5278, 6
      %s5280 = smul.addr %s5279, 8
      %s5281 = scalar_lea.vmem %s5, %s5280
      // Predicated region
      $region41: #{_forward.1} parent=39 // pred_check
        %p5282 = pneg %p144
      $region42: #{_forward.1} parent=39 // pred_check_branch
        %5284 = sbr.rel (%p5282) target = $region44
      $region43: #{_forward.1} parent=39 // pred_region
        _
      $region44: #{_forward.1} parent=39 // pred_fallthru
        _
    $region40: #{_forward.1} parent=5 // pred_fallthru
      _
    %p5285 = scmp.le.s32.totalorder 2, %s11
    // Predicated region
    $region45: #{_forward.1} parent=5 // pred_check
      %p5286 = pneg %p5285
    $region46: #{_forward.1} parent=5 // pred_check_branch
      %5288 = sbr.rel (%p5286) target = $region48
    $region47: #{_forward.1} parent=5 // pred_region
      %s5289 = ssub.s32 %s11, 2
      // Predicated region
      $region49: #{_forward.1} parent=47 // pred_check
        %p5290 = pneg %p150
      $region50: #{_forward.1} parent=47 // pred_check_branch
        %5292 = sbr.rel (%p5290) target = $region52
      $region51: #{_forward.1} parent=47 // pred_region
        %p5293 = scmp.lt.s32.totalorder %s17, 1
        %s5294 = scalar_select %p5293, %s17, 1
        %s5295 = smul.addr %s5294, 6
        %s5296 = smul.addr %s5295, 8
        %s5297 = scalar_lea.vmem %s5, %s5296
      $region52: #{_forward.1} parent=47 // pred_fallthru
        _
    $region48: #{_forward.1} parent=5 // pred_fallthru
      _
  $region6: #{_forward.1} parent=0 // loop_footer
    %s15 = sadd.s32 1, %s11
  $region7: #{_forward.1} parent=0 // loop_footer_branch
    %10 = sbr.rel target = $region3
  $region8: #{_forward.1} parent=0 // loop_exit
    _

</llo_original>
